<compile_context>
chip_gen: v5e
topology: v5e:2x2
jax: 0.10.0
libtpu: 0.0.40
codegen_flags: <defaults>
</compile_context>

<pallas_src>
import functools

import jax
import jax.numpy as jnp
from jax import lax
from jax.experimental import pallas as pl
from jax.experimental.pallas import tpu as pltpu

_NEG_BIG = -1e30


def _attnmil_kernel(x_ref, w1t_ref, wvut_ref, bvu_ref, ww_ref, bw_ref,
                    om_ref, ol_ref, oacc_ref,
                    m_ref, l_ref, acc_ref, *,
                    n_tokens, tile_n, attn_d, tiles_per_split):
    c = pl.program_id(0)          # token-range split (parallel across TCs)
    j = pl.program_id(1)          # token tile within this split (reduction)

    # ---- init per-split online-softmax state ----------------------------
    @pl.when(j == 0)
    def _():
        m_ref[...] = jnp.full_like(m_ref, _NEG_BIG)
        l_ref[...] = jnp.zeros_like(l_ref)
        acc_ref[...] = jnp.zeros_like(acc_ref)

    tile_start = (c * tiles_per_split + j) * tile_n

    # ---- dim reduction: h = relu(x @ W1^T), bf16 MXU / f32 accumulate ----
    x16 = x_ref[...].astype(jnp.bfloat16)                     # (tile_n, d_feat)
    h = jnp.maximum(
        jnp.dot(x16, w1t_ref[...], preferred_element_type=jnp.float32), 0.0)

    # zero-mask rows past the bag: ragged / overhanging blocks contain
    # unspecified data which must never reach the p @ h accumulate.
    row = lax.broadcasted_iota(jnp.int32, (tile_n, 1), 0) + tile_start
    h = jnp.where(row < n_tokens, h, 0.0)                     # (tile_n, d_inner)
    h16 = h.astype(jnp.bfloat16)

    # ---- fused gated attention projection [V | U] ------------------------
    vu = jnp.dot(h16, wvut_ref[...],
                 preferred_element_type=jnp.float32) + bvu_ref[...]
    g = jnp.tanh(vu[:, :attn_d]) * jax.nn.sigmoid(vu[:, attn_d:])
    g16 = g.astype(jnp.bfloat16)                              # (tile_n, attn_d)

    # attention logits, already transposed to (K, tile_n): contract
    # last-with-last (same q @ k^T pattern as flash attention), so the big
    # activation tile is never explicitly transposed through the XLU.
    a_t = lax.dot_general(ww_ref[...], g16, (((1,), (1,)), ((), ())),
                          preferred_element_type=jnp.float32) + bw_ref[...]

    col = lax.broadcasted_iota(jnp.int32, a_t.shape, 1) + tile_start
    valid = col < n_tokens
    a_t = jnp.where(valid, a_t, _NEG_BIG)

    # ---- online softmax accumulation (per attention head) ----------------
    m_old = m_ref[...]                                        # (K, 1)
    m_new = jnp.maximum(m_old, jnp.max(a_t, axis=1, keepdims=True))
    alpha = jnp.exp(m_old - m_new)                            # (K, 1)
    p = jnp.where(valid, jnp.exp(a_t - m_new), 0.0)           # (K, tile_n)
    l_ref[...] = alpha * l_ref[...] + jnp.sum(p, axis=1, keepdims=True)
    acc_ref[...] = alpha * acc_ref[...] + jnp.dot(
        p.astype(jnp.bfloat16), h16, preferred_element_type=jnp.float32)
    m_ref[...] = m_new

    # ---- emit this split's partials --------------------------------------
    @pl.when(j == pl.num_programs(1) - 1)
    def _():
        k = m_ref.shape[0]
        om_ref[...] = m_ref[...].reshape(1, k, 1)
        ol_ref[...] = l_ref[...].reshape(1, k, 1)
        oacc_ref[...] = acc_ref[...].reshape(1, k, acc_ref.shape[1])


def attnmil6_forward(x, w1, wv, bv, wu, bu, ww, bw, *, tile_n=512):
    """x: (N, D_feat) bag of patch features. Returns bag_feat (1, D_inner)."""
    n, d_feat = x.shape
    d_inner = w1.shape[0]
    attn_d = wv.shape[0]
    k = ww.shape[0]

    if tile_n % 128 != 0:
        raise ValueError("tile_n must be a multiple of 128")
    # shrink tile for tiny bags (stays a multiple of 128)
    tile_n = min(tile_n, max(128, ((n + 127) // 128) * 128))

    num_tiles = pl.cdiv(n, tile_n)
    n_split = 2 if num_tiles >= 2 else 1          # 2-way TC split (v7x megacore)
    tiles_per_split = pl.cdiv(num_tiles, n_split)

    # one-time parameter layout glue (tiny): bf16 MXU weights, fused [Wv|Wu]
    w1t = jnp.asarray(w1, jnp.bfloat16).T                      # (d_feat, d_inner)
    wvut = jnp.concatenate([jnp.asarray(wv, jnp.bfloat16).T,
                            jnp.asarray(wu, jnp.bfloat16).T], axis=1)
    bvu = jnp.concatenate([jnp.asarray(bv, jnp.float32),
                           jnp.asarray(bu, jnp.float32)]).reshape(1, 2 * attn_d)
    ww2 = jnp.asarray(ww, jnp.bfloat16)                        # (k, attn_d)
    bw2 = jnp.asarray(bw, jnp.float32).reshape(k, 1)

    def x_map(c, j):
        # clamp overhanging tiles of the second split to the last real block;
        # their contribution is fully masked out inside the kernel.
        return (jnp.minimum(c * tiles_per_split + j, num_tiles - 1), 0)

    kernel = functools.partial(_attnmil_kernel, n_tokens=n, tile_n=tile_n,
                               attn_d=attn_d, tiles_per_split=tiles_per_split)

    # NOTE: constant-index weight blocks could use pipeline_mode=pl.Buffered(1)
    # to reclaim a few hundred KB of VMEM on v7x; left at defaults here since
    # total weight footprint is ~0.3 MB.
    part_m, part_l, part_acc = pl.pallas_call(
        kernel,
        out_shape=(jax.ShapeDtypeStruct((n_split, k, 1), jnp.float32),
                   jax.ShapeDtypeStruct((n_split, k, 1), jnp.float32),
                   jax.ShapeDtypeStruct((n_split, k, d_inner), jnp.float32)),
        grid=(n_split, tiles_per_split),
        in_specs=[
            pl.BlockSpec((tile_n, d_feat), x_map),                  # x stream
            pl.BlockSpec((d_feat, d_inner), lambda c, j: (0, 0)),   # W1^T
            pl.BlockSpec((d_inner, 2 * attn_d), lambda c, j: (0, 0)),  # [Wv|Wu]^T
            pl.BlockSpec((1, 2 * attn_d), lambda c, j: (0, 0)),     # [bv|bu]
            pl.BlockSpec((k, attn_d), lambda c, j: (0, 0)),         # Ww
            pl.BlockSpec((k, 1), lambda c, j: (0, 0)),              # bw
        ],
        out_specs=(
            pl.BlockSpec((1, k, 1), lambda c, j: (c, 0, 0)),        # m partial
            pl.BlockSpec((1, k, 1), lambda c, j: (c, 0, 0)),        # l partial
            pl.BlockSpec((1, k, d_inner), lambda c, j: (c, 0, 0)),  # acc partial
        ),
        scratch_shapes=[
            pltpu.VMEM((k, 1), jnp.float32),         # running max   m
            pltpu.VMEM((k, 1), jnp.float32),         # running sum   l
            pltpu.VMEM((k, d_inner), jnp.float32),   # running acc
        ],
        compiler_params=pltpu.CompilerParams(
            dimension_semantics=("parallel", "arbitrary")),
    )(x, w1t, wvut, bvu, ww2, bw2)

    # tiny epilogue: log-sum-exp merge of the per-split online-softmax
    # partials, normalize, then mean over the K attention heads.
    m = jnp.max(part_m, axis=0)                         # (K, 1)
    w = jnp.exp(part_m - m)                             # (n_split, K, 1)
    l = jnp.sum(part_l * w, axis=0)                     # (K, 1)
    acc = jnp.sum(part_acc * w, axis=0)                 # (K, d_inner)
    bag = jnp.sum(acc / l, axis=0, keepdims=True) / k   # (1, d_inner)
    return bag


def attnmil6_reference(x, w1, wv, bv, wu, bu, ww, bw):
    """Pure-JAX f32 reference mirroring AttnMIL6.forward (mask off, eval)."""
    h = jax.nn.relu(x @ w1.T)
    av = jnp.tanh(h @ wv.T + bv)
    au = jax.nn.sigmoid(h @ wu.T + bu)
    a = (av * au) @ ww.T + bw              # (N, K)
    a = a.T                                # (K, N)
    a_soft = jax.nn.softmax(a, axis=1)
    bag_a = a_soft.mean(axis=0, keepdims=True)   # (1, N)
    return bag_a @ h                             # (1, D_inner)


if __name__ == "__main__":
    key = jax.random.PRNGKey(0)
    ks = jax.random.split(key, 8)

    # small shapes consistent with the module: bag of N patches with D_feat
    # features, DimReduction -> D_inner, attention hidden attn_d,
    # K = conf.n_token attention heads.
    n, d_feat = 700, 256
    d_inner = 128
    attn_d = 128
    n_token = 4

    x_bag = jax.random.normal(ks[0], (1, n, d_feat), jnp.float32)  # x[0] -> bag
    w1 = jax.random.normal(ks[1], (d_inner, d_feat), jnp.float32) * 0.05
    wv = jax.random.normal(ks[2], (attn_d, d_inner), jnp.float32) * 0.05
    bv = jax.random.normal(ks[3], (attn_d,), jnp.float32) * 0.05
    wu = jax.random.normal(ks[4], (attn_d, d_inner), jnp.float32) * 0.05
    bu = jax.random.normal(ks[5], (attn_d,), jnp.float32) * 0.05
    ww = jax.random.normal(ks[6], (n_token, attn_d), jnp.float32) * 0.05
    bw = jax.random.normal(ks[7], (n_token,), jnp.float32) * 0.05

    # TODO(synk): the use_attention_mask=True branch (topk + random scatter
    # masking), dropout (droprate=0 eval no-op) and the unused classifier
    # heads / afeat side-computation are not implemented in the kernel.

    ref = attnmil6_reference(x_bag[0], w1, wv, bv, wu, bu, ww, bw)
    ref = jax.block_until_ready(ref)

    # default config: tile_n=512 -> 2 tiles, one per parallel split
    out = attnmil6_forward(x_bag[0], w1, wv, bv, wu, bu, ww, bw)
    out = jax.block_until_ready(out)
    assert out.shape == (1, d_inner)
    # bf16 MXU operands (f32 accumulate) -> bf16-appropriate tolerance
    err = float(jnp.max(jnp.abs(out - ref)))
    if not jnp.allclose(out, ref, atol=3e-2, rtol=3e-2):
        raise AssertionError(f"mismatch vs reference (tile_n=512), max abs err={err}")

    # smaller tile exercises multi-tile online-softmax accumulation, ragged
    # masking and clamped overhanging tiles on the second split.
    out2 = attnmil6_forward(x_bag[0], w1, wv, bv, wu, bu, ww, bw, tile_n=256)
    out2 = jax.block_until_ready(out2)
    err2 = float(jnp.max(jnp.abs(out2 - ref)))
    if not jnp.allclose(out2, ref, atol=3e-2, rtol=3e-2):
        raise AssertionError(f"mismatch vs reference (tile_n=256), max abs err={err2}")

    print("KERNEL_OK")
</pallas_src>

<mosaic_0001>
module attributes {stable_mosaic.version = 11 : i64} {
  func.func @_attnmil_kernel(%arg0: i32, %arg1: i32, %arg2: memref<512x256xf32, #tpu.memory_space<vmem>>, %arg3: memref<256x128xbf16, #tpu.memory_space<vmem>>, %arg4: memref<128x256xbf16, #tpu.memory_space<vmem>>, %arg5: memref<1x256xf32, #tpu.memory_space<vmem>>, %arg6: memref<4x128xbf16, #tpu.memory_space<vmem>>, %arg7: memref<4x1xf32, #tpu.memory_space<vmem>>, %arg8: memref<1x4x1xf32, #tpu.memory_space<vmem>>, %arg9: memref<1x4x1xf32, #tpu.memory_space<vmem>>, %arg10: memref<1x4x128xf32, #tpu.memory_space<vmem>>, %arg11: memref<4x1xf32, #tpu.memory_space<vmem>>, %arg12: memref<4x1xf32, #tpu.memory_space<vmem>>, %arg13: memref<4x128xf32, #tpu.memory_space<vmem>>) attributes {dimension_semantics = [#tpu.dimension_semantics<parallel>, #tpu.dimension_semantics<arbitrary>], iteration_bounds = array<i64: 2, 1>, scalar_prefetch = 0 : i64, scratch_operands = 3 : i64, tpu.core_type = #tpu.core_type<tc>, window_params = [{transform_indices = @transform_0, window_bounds = array<i64: 512, 256>}, {pipeline_mode = #tpu.pipeline_mode<synchronous>, transform_indices = @transform_1, window_bounds = array<i64: 256, 128>}, {pipeline_mode = #tpu.pipeline_mode<synchronous>, transform_indices = @transform_2, window_bounds = array<i64: 128, 256>}, {pipeline_mode = #tpu.pipeline_mode<synchronous>, transform_indices = @transform_3, window_bounds = array<i64: 1, 256>}, {pipeline_mode = #tpu.pipeline_mode<synchronous>, transform_indices = @transform_4, window_bounds = array<i64: 4, 128>}, {pipeline_mode = #tpu.pipeline_mode<synchronous>, transform_indices = @transform_5, window_bounds = array<i64: 4, 1>}, {transform_indices = @transform_6, window_bounds = array<i64: 1, 4, 1>}, {transform_indices = @transform_7, window_bounds = array<i64: 1, 4, 1>}, {transform_indices = @transform_8, window_bounds = array<i64: 1, 4, 128>}]} {
    %c0_i32 = arith.constant 0 : i32
    %0 = arith.cmpi eq, %arg1, %c0_i32 : i32
    %1 = arith.extui %0 : i1 to i32
    %c0_i32_0 = arith.constant 0 : i32
    %2 = arith.cmpi ne, %1, %c0_i32_0 : i32
    scf.if %2 {
      %cst_37 = arith.constant -1.000000e+30 : f32
      %77 = vector.broadcast %cst_37 : f32 to vector<4x1xf32>
      %c0_38 = arith.constant 0 : index
      %c0_39 = arith.constant 0 : index
      %78 = vector.load %arg11[%c0_38, %c0_39] : memref<4x1xf32, #tpu.memory_space<vmem>>, vector<4x1xf32>
      tpu.vector_store %arg11[%c0_38, %c0_39], %77 {strides = array<i32>} : memref<4x1xf32, #tpu.memory_space<vmem>>, vector<4x1xf32>,
      %cst_40 = arith.constant 0.000000e+00 : f32
      %79 = vector.broadcast %cst_40 : f32 to vector<4x1xf32>
      %c0_41 = arith.constant 0 : index
      %c0_42 = arith.constant 0 : index
      %80 = vector.load %arg12[%c0_41, %c0_42] : memref<4x1xf32, #tpu.memory_space<vmem>>, vector<4x1xf32>
      tpu.vector_store %arg12[%c0_41, %c0_42], %79 {strides = array<i32>} : memref<4x1xf32, #tpu.memory_space<vmem>>, vector<4x1xf32>,
      %cst_43 = arith.constant 0.000000e+00 : f32
      %81 = vector.broadcast %cst_43 : f32 to vector<4x128xf32>
      %c0_44 = arith.constant 0 : index
      %c0_45 = arith.constant 0 : index
      %82 = vector.load %arg13[%c0_44, %c0_45] : memref<4x128xf32, #tpu.memory_space<vmem>>, vector<4x128xf32>
      tpu.vector_store %arg13[%c0_44, %c0_45], %81 {strides = array<i32>} : memref<4x128xf32, #tpu.memory_space<vmem>>, vector<4x128xf32>,
    } else {
    }
    %c1_i32 = arith.constant 1 : i32
    %3 = arith.muli %arg0, %c1_i32 : i32
    %4 = arith.addi %3, %arg1 : i32
    %c512_i32 = arith.constant 512 : i32
    %5 = arith.muli %4, %c512_i32 : i32
    %c0 = arith.constant 0 : index
    %c0_1 = arith.constant 0 : index
    %6 = vector.load %arg2[%c0, %c0_1] : memref<512x256xf32, #tpu.memory_space<vmem>>, vector<512x256xf32>
    %7 = arith.truncf %6 : vector<512x256xf32> to vector<512x256xbf16>
    %c0_2 = arith.constant 0 : index
    %c0_3 = arith.constant 0 : index
    %8 = vector.load %arg3[%c0_2, %c0_3] : memref<256x128xbf16, #tpu.memory_space<vmem>>, vector<256x128xbf16>
    %cst = arith.constant dense<0.000000e+00> : vector<512x128xf32>
    %9 = tpu.matmul %7, %8, %cst {dimension_numbers = #tpu.dot_dimension_numbers<[1], [0], [0], [1], [0, 0, 1, 1], [], []>} : vector<512x256xbf16>, vector<256x128xbf16>, vector<512x128xf32> -> vector<512x128xf32>
    %cst_4 = arith.constant 0.000000e+00 : f32
    %10 = vector.broadcast %cst_4 : f32 to vector<512x128xf32>
    %11 = arith.maximumf %9, %10 : vector<512x128xf32>
    %12 = tpu.iota {dimensions = array<i32: 0>} : vector<512x1xi32>
    %13 = vector.broadcast %5 : i32 to vector<512x1xi32>
    %14 = arith.addi %12, %13 : vector<512x1xi32>
    %c700_i32 = arith.constant 700 : i32
    %15 = vector.broadcast %c700_i32 : i32 to vector<512x1xi32>
    %16 = arith.cmpi slt, %14, %15 : vector<512x1xi32>
    %cst_5 = arith.constant 0.000000e+00 : f32
    %17 = vector.shape_cast %16 : vector<512x1xi1> to vector<512x1xi1>
    %18 = vector.broadcast %17 : vector<512x1xi1> to vector<512x128xi1>
    %19 = vector.broadcast %cst_5 : f32 to vector<512x128xf32>
    %20 = arith.select %18, %11, %19 : vector<512x128xi1>, vector<512x128xf32>
    %21 = arith.truncf %20 : vector<512x128xf32> to vector<512x128xbf16>
    %c0_6 = arith.constant 0 : index
    %c0_7 = arith.constant 0 : index
    %22 = vector.load %arg4[%c0_6, %c0_7] : memref<128x256xbf16, #tpu.memory_space<vmem>>, vector<128x256xbf16>
    %cst_8 = arith.constant dense<0.000000e+00> : vector<512x256xf32>
    %23 = tpu.matmul %21, %22, %cst_8 {dimension_numbers = #tpu.dot_dimension_numbers<[1], [0], [0], [1], [0, 0, 1, 1], [], []>} : vector<512x128xbf16>, vector<128x256xbf16>, vector<512x256xf32> -> vector<512x256xf32>
    %c0_9 = arith.constant 0 : index
    %c0_10 = arith.constant 0 : index
    %24 = vector.load %arg5[%c0_9, %c0_10] : memref<1x256xf32, #tpu.memory_space<vmem>>, vector<1x256xf32>
    %25 = vector.broadcast %24 : vector<1x256xf32> to vector<512x256xf32>
    %26 = arith.addf %23, %25 : vector<512x256xf32>
    %27 = vector.extract_strided_slice %26 {offsets = [0, 0], sizes = [512, 128], strides = [1, 1]} : vector<512x256xf32> to vector<512x128xf32>
    %28 = math.tanh %27 : vector<512x128xf32>
    %29 = vector.extract_strided_slice %26 {offsets = [0, 128], sizes = [512, 128], strides = [1, 1]} : vector<512x256xf32> to vector<512x128xf32>
    %30 = arith.negf %29 : vector<512x128xf32>
    %31 = math.exp %30 : vector<512x128xf32>
    %cst_11 = arith.constant 1.000000e+00 : f32
    %32 = vector.broadcast %cst_11 : f32 to vector<512x128xf32>
    %33 = arith.addf %32, %31 : vector<512x128xf32>
    %34 = arith.divf %32, %33 : vector<512x128xf32>
    %35 = arith.mulf %28, %34 : vector<512x128xf32>
    %36 = arith.truncf %35 : vector<512x128xf32> to vector<512x128xbf16>
    %c0_12 = arith.constant 0 : index
    %c0_13 = arith.constant 0 : index
    %37 = vector.load %arg6[%c0_12, %c0_13] : memref<4x128xbf16, #tpu.memory_space<vmem>>, vector<4x128xbf16>
    %cst_14 = arith.constant dense<0.000000e+00> : vector<4x512xf32>
    %38 = tpu.matmul %37, %36, %cst_14 {dimension_numbers = #tpu.dot_dimension_numbers<[1], [1], [0], [0], [0, 0, 1, 0], [], []>} : vector<4x128xbf16>, vector<512x128xbf16>, vector<4x512xf32> -> vector<4x512xf32>
    %c0_15 = arith.constant 0 : index
    %c0_16 = arith.constant 0 : index
    %39 = vector.load %arg7[%c0_15, %c0_16] : memref<4x1xf32, #tpu.memory_space<vmem>>, vector<4x1xf32>
    %40 = vector.broadcast %39 : vector<4x1xf32> to vector<4x512xf32>
    %41 = arith.addf %38, %40 : vector<4x512xf32>
    %42 = tpu.iota {dimensions = array<i32: 1>} : vector<4x512xi32>
    %43 = vector.broadcast %5 : i32 to vector<4x512xi32>
    %44 = arith.addi %42, %43 : vector<4x512xi32>
    %c700_i32_17 = arith.constant 700 : i32
    %45 = vector.broadcast %c700_i32_17 : i32 to vector<4x512xi32>
    %46 = arith.cmpi slt, %44, %45 : vector<4x512xi32>
    %cst_18 = arith.constant -1.000000e+30 : f32
    %47 = vector.broadcast %cst_18 : f32 to vector<4x512xf32>
    %48 = arith.select %46, %41, %47 : vector<4x512xi1>, vector<4x512xf32>
    %c0_19 = arith.constant 0 : index
    %c0_20 = arith.constant 0 : index
    %49 = vector.load %arg11[%c0_19, %c0_20] : memref<4x1xf32, #tpu.memory_space<vmem>>, vector<4x1xf32>
    %cst_21 = arith.constant dense<0xFF800000> : vector<4xf32>
    %50 = vector.multi_reduction <maximumf>, %48, %cst_21 [1] : vector<4x512xf32> to vector<4xf32>
    %51 = vector.shape_cast %50 : vector<4xf32> to vector<4x1xf32>
    %52 = arith.maximumf %49, %51 : vector<4x1xf32>
    %53 = arith.subf %49, %52 : vector<4x1xf32>
    %54 = math.exp %53 : vector<4x1xf32>
    %55 = vector.broadcast %52 : vector<4x1xf32> to vector<4x512xf32>
    %56 = arith.subf %48, %55 : vector<4x512xf32>
    %57 = math.exp %56 : vector<4x512xf32>
    %cst_22 = arith.constant 0.000000e+00 : f32
    %58 = vector.broadcast %cst_22 : f32 to vector<4x512xf32>
    %59 = arith.select %46, %57, %58 : vector<4x512xi1>, vector<4x512xf32>
    %c0_23 = arith.constant 0 : index
    %c0_24 = arith.constant 0 : index
    %60 = vector.load %arg12[%c0_23, %c0_24] : memref<4x1xf32, #tpu.memory_space<vmem>>, vector<4x1xf32>
    %61 = arith.mulf %54, %60 : vector<4x1xf32>
    %cst_25 = arith.constant dense<0.000000e+00> : vector<4xf32>
    %62 = vector.multi_reduction <add>, %59, %cst_25 [1] : vector<4x512xf32> to vector<4xf32>
    %63 = vector.shape_cast %62 : vector<4xf32> to vector<4x1xf32>
    %64 = arith.addf %61, %63 : vector<4x1xf32>
    %c0_26 = arith.constant 0 : index
    %c0_27 = arith.constant 0 : index
    %65 = vector.load %arg12[%c0_26, %c0_27] : memref<4x1xf32, #tpu.memory_space<vmem>>, vector<4x1xf32>
    tpu.vector_store %arg12[%c0_26, %c0_27], %64 {strides = array<i32>} : memref<4x1xf32, #tpu.memory_space<vmem>>, vector<4x1xf32>,
    %c0_28 = arith.constant 0 : index
    %c0_29 = arith.constant 0 : index
    %66 = vector.load %arg13[%c0_28, %c0_29] : memref<4x128xf32, #tpu.memory_space<vmem>>, vector<4x128xf32>
    %67 = vector.broadcast %54 : vector<4x1xf32> to vector<4x128xf32>
    %68 = arith.mulf %67, %66 : vector<4x128xf32>
    %69 = arith.truncf %59 : vector<4x512xf32> to vector<4x512xbf16>
    %cst_30 = arith.constant dense<0.000000e+00> : vector<4x128xf32>
    %70 = tpu.matmul %69, %21, %cst_30 {dimension_numbers = #tpu.dot_dimension_numbers<[1], [0], [0], [1], [0, 0, 1, 1], [], []>} : vector<4x512xbf16>, vector<512x128xbf16>, vector<4x128xf32> -> vector<4x128xf32>
    %71 = arith.addf %68, %70 : vector<4x128xf32>
    %c0_31 = arith.constant 0 : index
    %c0_32 = arith.constant 0 : index
    %72 = vector.load %arg13[%c0_31, %c0_32] : memref<4x128xf32, #tpu.memory_space<vmem>>, vector<4x128xf32>
    tpu.vector_store %arg13[%c0_31, %c0_32], %71 {strides = array<i32>} : memref<4x128xf32, #tpu.memory_space<vmem>>, vector<4x128xf32>,
    %c0_33 = arith.constant 0 : index
    %c0_34 = arith.constant 0 : index
    %73 = vector.load %arg11[%c0_33, %c0_34] : memref<4x1xf32, #tpu.memory_space<vmem>>, vector<4x1xf32>
    tpu.vector_store %arg11[%c0_33, %c0_34], %52 {strides = array<i32>} : memref<4x1xf32, #tpu.memory_space<vmem>>, vector<4x1xf32>,
    %c0_i32_35 = arith.constant 0 : i32
    %74 = arith.cmpi eq, %arg1, %c0_i32_35 : i32
    %75 = arith.extui %74 : i1 to i32
    %c0_i32_36 = arith.constant 0 : i32
    %76 = arith.cmpi ne, %75, %c0_i32_36 : i32
    scf.if %76 {
      %c0_37 = arith.constant 0 : index
      %c0_38 = arith.constant 0 : index
      %77 = vector.load %arg11[%c0_37, %c0_38] : memref<4x1xf32, #tpu.memory_space<vmem>>, vector<4x1xf32>
      %78 = vector.shape_cast %77 : vector<4x1xf32> to vector<1x4x1xf32>
      %c0_39 = arith.constant 0 : index
      %c0_40 = arith.constant 0 : index
      %c0_41 = arith.constant 0 : index
      %79 = vector.load %arg8[%c0_39, %c0_40, %c0_41] : memref<1x4x1xf32, #tpu.memory_space<vmem>>, vector<1x4x1xf32>
      tpu.vector_store %arg8[%c0_39, %c0_40, %c0_41], %78 {strides = array<i32>} : memref<1x4x1xf32, #tpu.memory_space<vmem>>, vector<1x4x1xf32>,
      %c0_42 = arith.constant 0 : index
      %c0_43 = arith.constant 0 : index
      %80 = vector.load %arg12[%c0_42, %c0_43] : memref<4x1xf32, #tpu.memory_space<vmem>>, vector<4x1xf32>
      %81 = vector.shape_cast %80 : vector<4x1xf32> to vector<1x4x1xf32>
      %c0_44 = arith.constant 0 : index
      %c0_45 = arith.constant 0 : index
      %c0_46 = arith.constant 0 : index
      %82 = vector.load %arg9[%c0_44, %c0_45, %c0_46] : memref<1x4x1xf32, #tpu.memory_space<vmem>>, vector<1x4x1xf32>
      tpu.vector_store %arg9[%c0_44, %c0_45, %c0_46], %81 {strides = array<i32>} : memref<1x4x1xf32, #tpu.memory_space<vmem>>, vector<1x4x1xf32>,
      %c0_47 = arith.constant 0 : index
      %c0_48 = arith.constant 0 : index
      %83 = vector.load %arg13[%c0_47, %c0_48] : memref<4x128xf32, #tpu.memory_space<vmem>>, vector<4x128xf32>
      %84 = vector.shape_cast %83 : vector<4x128xf32> to vector<1x4x128xf32>
      %c0_49 = arith.constant 0 : index
      %c0_50 = arith.constant 0 : index
      %c0_51 = arith.constant 0 : index
      %85 = vector.load %arg10[%c0_49, %c0_50, %c0_51] : memref<1x4x128xf32, #tpu.memory_space<vmem>>, vector<1x4x128xf32>
      tpu.vector_store %arg10[%c0_49, %c0_50, %c0_51], %84 {strides = array<i32>} : memref<1x4x128xf32, #tpu.memory_space<vmem>>, vector<1x4x128xf32>,
    } else {
    }
    return
  }
  func.func @transform_0(%arg0: i32, %arg1: i32) -> (i32, i32) {
    %c1_i32 = arith.constant 1 : i32
    %0 = arith.muli %arg0, %c1_i32 : i32
    %1 = arith.addi %0, %arg1 : i32
    %c1_i32_0 = arith.constant 1 : i32
    %2 = arith.minsi %1, %c1_i32_0 : i32
    %c0_i32 = arith.constant 0 : i32
    %c0_i32_1 = arith.constant 0 : i32
    return %2, %c0_i32 : i32, i32
  }
  func.func @transform_1(%arg0: i32, %arg1: i32) -> (i32, i32) {
    %c0_i32 = arith.constant 0 : i32
    %c0_i32_0 = arith.constant 0 : i32
    %c0_i32_1 = arith.constant 0 : i32
    return %c0_i32, %c0_i32_0 : i32, i32
  }
  func.func @transform_2(%arg0: i32, %arg1: i32) -> (i32, i32) {
    %c0_i32 = arith.constant 0 : i32
    %c0_i32_0 = arith.constant 0 : i32
    %c0_i32_1 = arith.constant 0 : i32
    return %c0_i32, %c0_i32_0 : i32, i32
  }
  func.func @transform_3(%arg0: i32, %arg1: i32) -> (i32, i32) {
    %c0_i32 = arith.constant 0 : i32
    %c0_i32_0 = arith.constant 0 : i32
    %c0_i32_1 = arith.constant 0 : i32
    return %c0_i32, %c0_i32_0 : i32, i32
  }
  func.func @transform_4(%arg0: i32, %arg1: i32) -> (i32, i32) {
    %c0_i32 = arith.constant 0 : i32
    %c0_i32_0 = arith.constant 0 : i32
    %c0_i32_1 = arith.constant 0 : i32
    return %c0_i32, %c0_i32_0 : i32, i32
  }
  func.func @transform_5(%arg0: i32, %arg1: i32) -> (i32, i32) {
    %c0_i32 = arith.constant 0 : i32
    %c0_i32_0 = arith.constant 0 : i32
    %c0_i32_1 = arith.constant 0 : i32
    return %c0_i32, %c0_i32_0 : i32, i32
  }
  func.func @transform_6(%arg0: i32, %arg1: i32) -> (i32, i32, i32) {
    %c0_i32 = arith.constant 0 : i32
    %c0_i32_0 = arith.constant 0 : i32
    %c0_i32_1 = arith.constant 0 : i32
    return %arg0, %c0_i32, %c0_i32_0 : i32, i32, i32
  }
  func.func @transform_7(%arg0: i32, %arg1: i32) -> (i32, i32, i32) {
    %c0_i32 = arith.constant 0 : i32
    %c0_i32_0 = arith.constant 0 : i32
    %c0_i32_1 = arith.constant 0 : i32
    return %arg0, %c0_i32, %c0_i32_0 : i32, i32, i32
  }
  func.func @transform_8(%arg0: i32, %arg1: i32) -> (i32, i32, i32) {
    %c0_i32 = arith.constant 0 : i32
    %c0_i32_0 = arith.constant 0 : i32
    %c0_i32_1 = arith.constant 0 : i32
    return %arg0, %c0_i32, %c0_i32_0 : i32, i32, i32
  }
}

</mosaic_0001>

<llo_original>
// kernel: tpu_custom_call.1
$region0: #{tpu_custom_call.1}
  #allocation0 [shape = 'u32[]', space=smem, size = 0x4, offset = 0x4, fixed_abs, tag = 'smem constant byte address 0x4 - core index']
  #allocation1 [shape = 'u32[72,128]{1,0:T(1,128)}', space=vmem, size = 0x9000, scoped, tag = 'internal scratch']
  #allocation2 [shape = 'f32[4,1]{1,0:T(4,128)}', space=vmem, size = 0x800, scoped, tag = 'scratch operand']
  #allocation3 [shape = 'f32[4,1]{1,0:T(4,128)}', space=vmem, size = 0x800, scoped, tag = 'scratch operand']
  #allocation4 [shape = 'f32[4,128]{1,0:T(4,128)}', space=vmem, size = 0x800, scoped, tag = 'scratch operand']
  %s0 = inlined_call_operand.hbm [shape: f32[700,256], index: 0, kind: input, shape index: {}]
  %s1 = inlined_call_operand.hbm [shape: bf16[256,128], index: 1, kind: input, shape index: {}]
  %s2 = inlined_call_operand.hbm [shape: bf16[128,256], index: 2, kind: input, shape index: {}]
  %s3 = inlined_call_operand.vmem [shape: f32[1,256], index: 3, kind: input, shape index: {}]
  %s4 = inlined_call_operand.vmem [shape: bf16[4,128], index: 4, kind: input, shape index: {}]
  %s5 = inlined_call_operand.vmem [shape: f32[4,1], index: 5, kind: input, shape index: {}]
  %s6 = inlined_call_operand.vmem [shape: f32[2,4,1], index: 6, kind: output, shape index: {0}]
  %s7 = inlined_call_operand.vmem [shape: f32[2,4,1], index: 7, kind: output, shape index: {1}]
  %s8 = inlined_call_operand.hbm [shape: f32[2,4,128], index: 8, kind: output, shape index: {2}]
  %9 = xla_tuple %s6, %s7, %s8
  %s10 = sld [smem:[#allocation0]]
  $region93: #{tpu_custom_call.1} parent=0
    _
  %s12 = ssub.s32 1, %s10
  %s13 = scalar_select 0, %s12, %s10
  $region1: #{tpu_custom_call.1} parent=0
    #allocation5 [shape = 'u8[1048576]{0}', space=vmem, size = 0x100000, scoped, tag = 'input window, operand 0']
    #allocation6 [shape = 's32[2]{0}', space=sflag, size = 0x8, scoped, tag = 'scoped memory for tpu_custom_call.1']
    #allocation7 [shape = 's32[2]{0}', space=sflag, size = 0x8, scoped, tag = 'scoped memory for tpu_custom_call.1']
    #allocation8 [shape = 'u8[65536]{0}', space=vmem, size = 0x10000, scoped, tag = 'input window, operand 1, single buffered']
    #allocation9 [shape = 's32[1]{0}', space=sflag, size = 0x4, scoped, tag = 'scoped memory for tpu_custom_call.1']
    #allocation10 [shape = 'u8[65536]{0}', space=vmem, size = 0x10000, scoped, tag = 'input window, operand 2, single buffered']
    #allocation11 [shape = 'u8[4096]{0}', space=vmem, size = 0x1000, scoped, tag = 'output window, operand 2']
    %14 = vsyncpa [#allocation6], 0
    %s15 = scalar_lea.sflag [#allocation6], 1
    %16 = vsyncpa %s15, 0
    %17 = vsyncpa [#allocation9], 0
    %18 = vsyncpa [#allocation7], 0
    %s19 = scalar_lea.sflag [#allocation7], 1
    %20 = vsyncpa %s19, 0
    loop: start=0, step=1, limit=4
    $region2: #{tpu_custom_call.1} parent=1 // loop_pre_header
      _
    $region3: #{tpu_custom_call.1} parent=1 // loop_header
      %s22 = sphi 0, %s26
      %p23 = scmp.ge.s32.totalorder %s22, 4
      %s29 = sphi 0, %s41
      %s30 = sphi 0, %s37
      %s31 = sphi 0, %s29
      %s32 = sphi 0, %s30
      %s33 = sphi 0, %s31
      %s34 = sphi 0, %s32
      %s50 = sphi 0, %s52
      %s53 = sphi 0, %s50
      %s54 = sphi 0, %s53
      %s70 = sphi 0, %s54
      %s74 = sphi 0, %s74
      %s76 = sphi 0, %s74
      %s77 = sphi 0, %s76
      %s91 = sphi 0, %s77
      %s95 = sphi 0, %s95
      %s97 = sphi 0, %s95
      %s98 = sphi 0, %s97
      %s112 = sphi 0, %s98
      %s116 = sphi 0, %s116
      %s118 = sphi 0, %s116
      %s119 = sphi 0, %s118
      %s133 = sphi 0, %s119
      %s137 = sphi 0, %s137
      %s139 = sphi 0, %s137
      %s140 = sphi 0, %s139
      %s154 = sphi 0, %s140
      %s158 = sphi 0, %s158
      %s160 = sphi 0, %s158
      %s161 = sphi 0, %s160
      %s175 = sphi 0, %s161
      %s181 = sphi 0, %s183
      %s184 = sphi 0, %s181
      %s185 = sphi 0, %s184
      %s201 = sphi 0, %s185
      %s207 = sphi 0, %s209
      %s210 = sphi 0, %s207
      %s211 = sphi 0, %s210
      %s227 = sphi 0, %s211
      %s233 = sphi 0, %s235
      %s236 = sphi 0, %s233
      %s237 = sphi 0, %s236
      %s253 = sphi 0, %s237
    $region4: #{tpu_custom_call.1} parent=1 // loop_header_branch
      %25 = sbr.rel (%p23) target = $region8
    $region5: #{tpu_custom_call.1} parent=1 // loop_body
      %s27 = ssub.s32 %s22, 1
      %s28 = ssub.s32 %s22, 2
      %s35 = sadd.s32 1, %s30
      %p36 = scmp.ge.s32.totalorder %s35, 1
      %s37 = scalar_select %p36, 0, %s35
      %s38 = sadd.s32 1, %s29
      %s39 = scalar_select %p36, %s38, %s29
      %p40 = scmp.ge.s32.totalorder %s39, 2
      %s41 = scalar_select %p40, 0, %s39
      %s42 = sadd.s32 %s29, %s30
      %p43 = scmp.lt.s32.totalorder %s42, 1
      %s44 = scalar_select %p43, %s42, 1
      %s45 = sadd.s32 %s41, %s37
      %p46 = scmp.lt.s32.totalorder %s45, 1
      %s47 = scalar_select %p46, %s45, 1
      %s48 = ssub.s32 %s44, %s47
      %p49 = scmp.eq.s32.totalorder %s48, 0
      %s51 = sadd.s32 %s50, 1
      %s52 = scalar_select %p49, %s50, %s51
      %p55 = pneg %p49
      %p56 = scmp.eq.s32.totalorder %s22, 1
      %p57 = por %p55, %p56
      %p58 = scmp.ne.s32.totalorder %s50, %s53
      %p59 = scmp.eq.s32.totalorder %s22, 0
      %p60 = por %p58, %p59
      %p61 = scmp.ne.s32.totalorder %s50, %s53
      %p62 = scmp.eq.s32.totalorder %s27, 1
      %p63 = por %p61, %p62
      %p64 = scmp.ne.s32.totalorder %s53, %s54
      %p65 = scmp.eq.s32.totalorder %s27, 0
      %p66 = por %p64, %p65
      %p67 = scmp.ne.s32.totalorder %s53, %s54
      %p68 = scmp.eq.s32.totalorder %s28, 1
      %p69 = por %p67, %p68
      %p71 = scmp.ne.s32.totalorder %s54, %s70
      %p72 = scmp.eq.s32.totalorder %s28, 0
      %p73 = por %p71, %p72
      %s75 = sadd.s32 %s74, 1
      %p78 = scmp.eq.s32.totalorder %s22, 1
      %p79 = scmp.ne.s32.totalorder %s74, %s76
      %p80 = scmp.eq.s32.totalorder %s22, 0
      %p81 = por %p79, %p80
      %p82 = scmp.ne.s32.totalorder %s74, %s76
      %p83 = scmp.eq.s32.totalorder %s27, 1
      %p84 = por %p82, %p83
      %p85 = scmp.ne.s32.totalorder %s76, %s77
      %p86 = scmp.eq.s32.totalorder %s27, 0
      %p87 = por %p85, %p86
      %p88 = scmp.ne.s32.totalorder %s76, %s77
      %p89 = scmp.eq.s32.totalorder %s28, 1
      %p90 = por %p88, %p89
      %p92 = scmp.ne.s32.totalorder %s77, %s91
      %p93 = scmp.eq.s32.totalorder %s28, 0
      %p94 = por %p92, %p93
      %s96 = sadd.s32 %s95, 1
      %p99 = scmp.eq.s32.totalorder %s22, 1
      %p100 = scmp.ne.s32.totalorder %s95, %s97
      %p101 = scmp.eq.s32.totalorder %s22, 0
      %p102 = por %p100, %p101
      %p103 = scmp.ne.s32.totalorder %s95, %s97
      %p104 = scmp.eq.s32.totalorder %s27, 1
      %p105 = por %p103, %p104
      %p106 = scmp.ne.s32.totalorder %s97, %s98
      %p107 = scmp.eq.s32.totalorder %s27, 0
      %p108 = por %p106, %p107
      %p109 = scmp.ne.s32.totalorder %s97, %s98
      %p110 = scmp.eq.s32.totalorder %s28, 1
      %p111 = por %p109, %p110
      %p113 = scmp.ne.s32.totalorder %s98, %s112
      %p114 = scmp.eq.s32.totalorder %s28, 0
      %p115 = por %p113, %p114
      %s117 = sadd.s32 %s116, 1
      %p120 = scmp.eq.s32.totalorder %s22, 1
      %p121 = scmp.ne.s32.totalorder %s116, %s118
      %p122 = scmp.eq.s32.totalorder %s22, 0
      %p123 = por %p121, %p122
      %p124 = scmp.ne.s32.totalorder %s116, %s118
      %p125 = scmp.eq.s32.totalorder %s27, 1
      %p126 = por %p124, %p125
      %p127 = scmp.ne.s32.totalorder %s118, %s119
      %p128 = scmp.eq.s32.totalorder %s27, 0
      %p129 = por %p127, %p128
      %p130 = scmp.ne.s32.totalorder %s118, %s119
      %p131 = scmp.eq.s32.totalorder %s28, 1
      %p132 = por %p130, %p131
      %p134 = scmp.ne.s32.totalorder %s119, %s133
      %p135 = scmp.eq.s32.totalorder %s28, 0
      %p136 = por %p134, %p135
      %s138 = sadd.s32 %s137, 1
      %p141 = scmp.eq.s32.totalorder %s22, 1
      %p142 = scmp.ne.s32.totalorder %s137, %s139
      %p143 = scmp.eq.s32.totalorder %s22, 0
      %p144 = por %p142, %p143
      %p145 = scmp.ne.s32.totalorder %s137, %s139
      %p146 = scmp.eq.s32.totalorder %s27, 1
      %p147 = por %p145, %p146
      %p148 = scmp.ne.s32.totalorder %s139, %s140
      %p149 = scmp.eq.s32.totalorder %s27, 0
      %p150 = por %p148, %p149
      %p151 = scmp.ne.s32.totalorder %s139, %s140
      %p152 = scmp.eq.s32.totalorder %s28, 1
      %p153 = por %p151, %p152
      %p155 = scmp.ne.s32.totalorder %s140, %s154
      %p156 = scmp.eq.s32.totalorder %s28, 0
      %p157 = por %p155, %p156
      %s159 = sadd.s32 %s158, 1
      %p162 = scmp.eq.s32.totalorder %s22, 1
      %p163 = scmp.ne.s32.totalorder %s158, %s160
      %p164 = scmp.eq.s32.totalorder %s22, 0
      %p165 = por %p163, %p164
      %p166 = scmp.ne.s32.totalorder %s158, %s160
      %p167 = scmp.eq.s32.totalorder %s27, 1
      %p168 = por %p166, %p167
      %p169 = scmp.ne.s32.totalorder %s160, %s161
      %p170 = scmp.eq.s32.totalorder %s27, 0
      %p171 = por %p169, %p170
      %p172 = scmp.ne.s32.totalorder %s160, %s161
      %p173 = scmp.eq.s32.totalorder %s28, 1
      %p174 = por %p172, %p173
      %p176 = scmp.ne.s32.totalorder %s161, %s175
      %p177 = scmp.eq.s32.totalorder %s28, 0
      %p178 = por %p176, %p177
      %s179 = ssub.s32 %s29, %s41
      %p180 = scmp.eq.s32.totalorder %s179, 0
      %s182 = sadd.s32 %s181, 1
      %s183 = scalar_select %p180, %s181, %s182
      %p186 = pneg %p180
      %p187 = scmp.eq.s32.totalorder %s22, 1
      %p188 = por %p186, %p187
      %p189 = scmp.ne.s32.totalorder %s181, %s184
      %p190 = scmp.eq.s32.totalorder %s22, 0
      %p191 = por %p189, %p190
      %p192 = scmp.ne.s32.totalorder %s181, %s184
      %p193 = scmp.eq.s32.totalorder %s27, 1
      %p194 = por %p192, %p193
      %p195 = scmp.ne.s32.totalorder %s184, %s185
      %p196 = scmp.eq.s32.totalorder %s27, 0
      %p197 = por %p195, %p196
      %p198 = scmp.ne.s32.totalorder %s184, %s185
      %p199 = scmp.eq.s32.totalorder %s28, 1
      %p200 = por %p198, %p199
      %p202 = scmp.ne.s32.totalorder %s185, %s201
      %p203 = scmp.eq.s32.totalorder %s28, 0
      %p204 = por %p202, %p203
      %s205 = ssub.s32 %s29, %s41
      %p206 = scmp.eq.s32.totalorder %s205, 0
      %s208 = sadd.s32 %s207, 1
      %s209 = scalar_select %p206, %s207, %s208
      %p212 = pneg %p206
      %p213 = scmp.eq.s32.totalorder %s22, 1
      %p214 = por %p212, %p213
      %p215 = scmp.ne.s32.totalorder %s207, %s210
      %p216 = scmp.eq.s32.totalorder %s22, 0
      %p217 = por %p215, %p216
      %p218 = scmp.ne.s32.totalorder %s207, %s210
      %p219 = scmp.eq.s32.totalorder %s27, 1
      %p220 = por %p218, %p219
      %p221 = scmp.ne.s32.totalorder %s210, %s211
      %p222 = scmp.eq.s32.totalorder %s27, 0
      %p223 = por %p221, %p222
      %p224 = scmp.ne.s32.totalorder %s210, %s211
      %p225 = scmp.eq.s32.totalorder %s28, 1
      %p226 = por %p224, %p225
      %p228 = scmp.ne.s32.totalorder %s211, %s227
      %p229 = scmp.eq.s32.totalorder %s28, 0
      %p230 = por %p228, %p229
      %s231 = ssub.s32 %s29, %s41
      %p232 = scmp.eq.s32.totalorder %s231, 0
      %s234 = sadd.s32 %s233, 1
      %s235 = scalar_select %p232, %s233, %s234
      %p238 = pneg %p232
      %p239 = scmp.eq.s32.totalorder %s22, 1
      %p240 = por %p238, %p239
      %p241 = scmp.ne.s32.totalorder %s233, %s236
      %p242 = scmp.eq.s32.totalorder %s22, 0
      %p243 = por %p241, %p242
      %p244 = scmp.ne.s32.totalorder %s233, %s236
      %p245 = scmp.eq.s32.totalorder %s27, 1
      %p246 = por %p244, %p245
      %p247 = scmp.ne.s32.totalorder %s236, %s237
      %p248 = scmp.eq.s32.totalorder %s27, 0
      %p249 = por %p247, %p248
      %p250 = scmp.ne.s32.totalorder %s236, %s237
      %p251 = scmp.eq.s32.totalorder %s28, 1
      %p252 = por %p250, %p251
      %p254 = scmp.ne.s32.totalorder %s237, %s253
      %p255 = scmp.eq.s32.totalorder %s28, 0
      %p256 = por %p254, %p255
      %p257 = scmp.le.s32.totalorder 1, %s22
      %p258 = scmp.lt.s32.totalorder %s22, 3
      %p259 = pnand %p257, %p258
      %p260 = pneg %p259
      // Predicated region
      $region9: #{tpu_custom_call.1} parent=5 // pred_check
        _
      $region10: #{tpu_custom_call.1} parent=5 // pred_check_branch
        %262 = sbr.rel (%p259) target = $region12
      $region11: #{tpu_custom_call.1} parent=5 // pred_region
        %s263 = ssub.s32 %s22, 1
        // Predicated region
        $region13: #{tpu_custom_call.1} parent=11 // pred_check
          %p264 = pneg %p87
        $region14: #{tpu_custom_call.1} parent=11 // pred_check_branch
          %266 = sbr.rel (%p264) target = $region16
        $region15: #{tpu_custom_call.1} parent=11 // pred_region
          %268 = vsyncadd [#allocation9], 0
          %s269 = sshll.u32 %s1, 4
          %s270 = int_to_ptr.hbm [resolvable:$true] %s269
          %s271 = sshll.u32 [#allocation8], 4
          %s272 = int_to_ptr.vmem [resolvable:$true] %s271
          %277 = dma.hbm_to_vmem [thread:$0]  %s270, 2048, %s272, [#allocation9], 64, 64, 4
        $region16: #{tpu_custom_call.1} parent=11 // pred_fallthru
          _
        // Predicated region
        $region17: #{tpu_custom_call.1} parent=11 // pred_check
          %p278 = pneg %p108
        $region18: #{tpu_custom_call.1} parent=11 // pred_check_branch
          %280 = sbr.rel (%p278) target = $region20
        $region19: #{tpu_custom_call.1} parent=11 // pred_region
          %282 = vsyncadd [#allocation9], 0
          %s283 = sshll.u32 %s2, 4
          %s284 = int_to_ptr.hbm [resolvable:$true] %s283
          %s285 = sshll.u32 [#allocation10], 4
          %s286 = int_to_ptr.vmem [resolvable:$true] %s285
          %291 = dma.hbm_to_vmem [thread:$0]  %s284, 2048, %s286, [#allocation9], 128, 128, 8
        $region20: #{tpu_custom_call.1} parent=11 // pred_fallthru
          _
        // Predicated region
        $region21: #{tpu_custom_call.1} parent=11 // pred_check
          %p292 = pneg %p129
        $region22: #{tpu_custom_call.1} parent=11 // pred_check_branch
          %294 = sbr.rel (%p292) target = $region24
        $region23: #{tpu_custom_call.1} parent=11 // pred_region
          _
        $region24: #{tpu_custom_call.1} parent=11 // pred_fallthru
          _
        // Predicated region
        $region25: #{tpu_custom_call.1} parent=11 // pred_check
          %p295 = pneg %p150
        $region26: #{tpu_custom_call.1} parent=11 // pred_check_branch
          %297 = sbr.rel (%p295) target = $region28
        $region27: #{tpu_custom_call.1} parent=11 // pred_region
          _
        $region28: #{tpu_custom_call.1} parent=11 // pred_fallthru
          _
        // Predicated region
        $region29: #{tpu_custom_call.1} parent=11 // pred_check
          %p298 = pneg %p171
        $region30: #{tpu_custom_call.1} parent=11 // pred_check_branch
          %300 = sbr.rel (%p298) target = $region32
        $region31: #{tpu_custom_call.1} parent=11 // pred_region
          _
        $region32: #{tpu_custom_call.1} parent=11 // pred_fallthru
          _
      $region12: #{tpu_custom_call.1} parent=5 // pred_fallthru
        _
      %p301 = scmp.lt.s32.totalorder %s22, 2
      // Predicated region
      $region33: #{tpu_custom_call.1} parent=5 // pred_check
        %p302 = pneg %p301
      $region34: #{tpu_custom_call.1} parent=5 // pred_check_branch
        %304 = sbr.rel (%p302) target = $region36
      $region35: #{tpu_custom_call.1} parent=5 // pred_region
        // Predicated region
        $region37: #{tpu_custom_call.1} parent=35 // pred_check
          %p305 = pneg %p60
        $region38: #{tpu_custom_call.1} parent=35 // pred_check_branch
          %307 = sbr.rel (%p305) target = $region40
        $region39: #{tpu_custom_call.1} parent=35 // pred_region
          %s308 = sand.u32 %s50, 1
          %s309 = scalar_lea.sflag [#allocation6], %s308
          %s310 = sand.u32 %s50, 1
          %s311 = smul.addr %s310, 1024
          %s312 = scalar_lea.vmem [#allocation5], %s311
          %s313 = sadd.s32 %s29, %s30
          %p314 = scmp.lt.s32.totalorder %s313, 1
          %s315 = scalar_select %p314, %s313, 1
          %s316 = smul.u32 64, %s315
          %s317 = ssub.s32 88, %s316
          %p318 = scmp.lt.s32.totalorder %s317, 64
          %s319 = scalar_select %p318, %s317, 64
          %s320 = smul.u32 8, %s319
          %s321 = smul.u32 %s320, 2
          %s322 = ssub.s32 1024, %s321
          %s323 = sshll.u32 %s322, 4
          %324 = vsyncadd %s309, %s323
          %p325 = scmp.ne.s32.totalorder 0, %s321
          %s326 = smul.addr %s316, 2
          %s327 = smul.addr %s326, 8
          %s328 = scalar_lea.hbm %s0, %s327
          %s329 = smul.u32 16, %s319
          %s330 = sshll.u32 %s328, 4
          %s331 = int_to_ptr.hbm [resolvable:$true] %s330
          %s332 = sshll.u32 %s312, 4
          %s333 = int_to_ptr.vmem [resolvable:$true] %s332
          %s334 = sshll.u32 %s329, 4
          %338 = dma.hbm_to_vmem [thread:$0]  (%p325), %s331, %s334, %s333, %s309, 256, 256, 16
        $region40: #{tpu_custom_call.1} parent=35 // pred_fallthru
          _
      $region36: #{tpu_custom_call.1} parent=5 // pred_fallthru
        _
      %p339 = scmp.le.s32.totalorder 1, %s22
      %p340 = scmp.lt.s32.totalorder %s22, 3
      %p341 = pnand %p339, %p340
      %p342 = pneg %p341
      // Predicated region
      $region41: #{tpu_custom_call.1} parent=5 // pred_check
        _
      $region42: #{tpu_custom_call.1} parent=5 // pred_check_branch
        %344 = sbr.rel (%p341) target = $region44
      $region43: #{tpu_custom_call.1} parent=5 // pred_region
        %s345 = ssub.s32 %s22, 1
        %s346 = sand.u32 %s53, 1
        %s347 = scalar_lea.sflag [#allocation6], %s346
        %s348 = sand.u32 %s53, 1
        %s349 = smul.addr %s348, 1024
        %s350 = scalar_lea.vmem [#allocation5], %s349
        // Predicated region
        $region45: #{tpu_custom_call.1} parent=43 // pred_check
          %p351 = pneg %p66
        $region46: #{tpu_custom_call.1} parent=43 // pred_check_branch
          %353 = sbr.rel (%p351) target = $region48
        $region47: #{tpu_custom_call.1} parent=43 // pred_region
          %355 = dma.done %s347, 16384
        $region48: #{tpu_custom_call.1} parent=43 // pred_fallthru
          _
        // Predicated region
        $region49: #{tpu_custom_call.1} parent=43 // pred_check
          %p356 = pneg %p87
        $region50: #{tpu_custom_call.1} parent=43 // pred_check_branch
          %358 = sbr.rel (%p356) target = $region52
        $region51: #{tpu_custom_call.1} parent=43 // pred_region
          %360 = dma.done [#allocation9], 2048
        $region52: #{tpu_custom_call.1} parent=43 // pred_fallthru
          _
        // Predicated region
        $region53: #{tpu_custom_call.1} parent=43 // pred_check
          %p361 = pneg %p108
        $region54: #{tpu_custom_call.1} parent=43 // pred_check_branch
          %363 = sbr.rel (%p361) target = $region56
        $region55: #{tpu_custom_call.1} parent=43 // pred_region
          %365 = dma.done [#allocation9], 2048
        $region56: #{tpu_custom_call.1} parent=43 // pred_fallthru
          _
        %s366 = sand.u32 %s53, 1
        %s367 = scalar_lea.sflag [#allocation6], %s366
        %s368 = sand.u32 %s53, 1
        %s369 = smul.addr %s368, 1024
        %s370 = scalar_lea.vmem [#allocation5], %s369
        %p371 = pneg %p66
        %p372 = pneg %p63
        %p373 = pneg %p87
        %p374 = pneg %p84
        %p375 = pneg %p108
        %p376 = pneg %p105
        %p377 = pneg %p129
        %p378 = pneg %p126
        %p379 = pneg %p150
        %p380 = pneg %p147
        %p381 = pneg %p171
        %p382 = pneg %p168
        %p383 = pneg %p197
        %p384 = pneg %p194
        %p385 = scmp.lt.s32.totalorder %s31, 1
        %s386 = scalar_select %p385, %s31, 1
        %s387 = smul.addr %s386, 4
        %s388 = scalar_lea.vmem %s6, %s387
        %p389 = pneg %p223
        %p390 = pneg %p220
        %p391 = scmp.lt.s32.totalorder %s31, 1
        %s392 = scalar_select %p391, %s31, 1
        %s393 = smul.addr %s392, 4
        %s394 = scalar_lea.vmem %s7, %s393
        %p395 = pneg %p249
        %p396 = pneg %p246
        %s397 = sand.u32 %s236, 1
        %s398 = scalar_lea.sflag [#allocation7], %s397
        %s399 = sand.u32 %s236, 1
        %s400 = smul.addr %s399, 4
        %s401 = scalar_lea.vmem [#allocation11], %s400
        %s402 = sadd.s32 %s31, %s32
        %p403 = scmp.lt.s32.totalorder %s402, 1
        %s404 = scalar_select %p403, %s402, 1
        %s405 = smul.u32 64, %s404
        %s406 = ssub.s32 88, %s405
        %p407 = scmp.lt.s32.totalorder %s406, 64
        %s408 = scalar_select %p407, %s406, 64
        %s409 = smul.u32 8, %s408
        %s410 = smul.u32 %s409, 2
        %p411 = scmp.lt.s32.totalorder %s31, 1
        %s412 = scalar_select %p411, %s31, 1
        %s413 = smul.addr %s412, 4
        %s414 = scalar_lea.vmem %s6, %s413
        %p415 = scmp.lt.s32.totalorder %s31, 1
        %s416 = scalar_select %p415, %s31, 1
        %s417 = smul.addr %s416, 4
        %s418 = scalar_lea.vmem %s7, %s417
        %p419 = scmp.eq.s32.totalorder %s32, 0
        // Predicated region
        $region57: #{tpu_custom_call.1} parent=43 // pred_check
          %p420 = pneg %p419
        $region58: #{tpu_custom_call.1} parent=43 // pred_check_branch
          %422 = sbr.rel (%p420) target = $region60
        $region59: #{tpu_custom_call.1} parent=43 // pred_region
          %vm423 = vcmask 3072
          %424 = vst.msk [vmem:[#allocation2] sm:$0xf] %vm423, -1e+30
          %425 = vst.msk [vmem:[#allocation3] sm:$0xf] %vm423, 0.0
          %426 = vst [vmem:[#allocation4] sm:$0xf] 0.0
        $region60: #{tpu_custom_call.1} parent=43 // pred_fallthru
          _
        %s427 = sadd.s32 %s31, %s32
        %s428 = smul.u32 %s427, 512
        %v429 = vld [vmem:[%s350] sm:$0xff]
        %v430 = vld [vmem:[%s350 + $0x8] sm:$0xff]
        %v431 = vld [vmem:[%s350 + $0x10] sm:$0xff]
        %v432 = vld [vmem:[%s350 + $0x18] sm:$0xff]
        %v433 = vld [vmem:[%s350 + $0x20] sm:$0xff]
        %v434 = vld [vmem:[%s350 + $0x28] sm:$0xff]
        %v435 = vld [vmem:[%s350 + $0x30] sm:$0xff]
        %v436 = vld [vmem:[%s350 + $0x38] sm:$0xff]
        %v437 = vld [vmem:[%s350 + $0x40] sm:$0xff]
        %v438 = vld [vmem:[%s350 + $0x48] sm:$0xff]
        %v439 = vld [vmem:[%s350 + $0x50] sm:$0xff]
        %v440 = vld [vmem:[%s350 + $0x58] sm:$0xff]
        %v441 = vld [vmem:[%s350 + $0x60] sm:$0xff]
        %v442 = vld [vmem:[%s350 + $0x68] sm:$0xff]
        %v443 = vld [vmem:[%s350 + $0x70] sm:$0xff]
        %v444 = vld [vmem:[%s350 + $0x78] sm:$0xff]
        %v445 = vld [vmem:[%s350 + $0x80] sm:$0xff]
        %v446 = vld [vmem:[%s350 + $0x88] sm:$0xff]
        %v447 = vld [vmem:[%s350 + $0x90] sm:$0xff]
        %v448 = vld [vmem:[%s350 + $0x98] sm:$0xff]
        %v449 = vld [vmem:[%s350 + $0xa0] sm:$0xff]
        %v450 = vld [vmem:[%s350 + $0xa8] sm:$0xff]
        %v451 = vld [vmem:[%s350 + $0xb0] sm:$0xff]
        %v452 = vld [vmem:[%s350 + $0xb8] sm:$0xff]
        %v453 = vld [vmem:[%s350 + $0xc0] sm:$0xff]
        %v454 = vld [vmem:[%s350 + $0xc8] sm:$0xff]
        %v455 = vld [vmem:[%s350 + $0xd0] sm:$0xff]
        %v456 = vld [vmem:[%s350 + $0xd8] sm:$0xff]
        %v457 = vld [vmem:[%s350 + $0xe0] sm:$0xff]
        %v458 = vld [vmem:[%s350 + $0xe8] sm:$0xff]
        %v459 = vld [vmem:[%s350 + $0xf0] sm:$0xff]
        %v460 = vld [vmem:[%s350 + $0xf8] sm:$0xff]
        %v461 = vld [vmem:[%s350 + $0x100] sm:$0xff]
        %v462 = vld [vmem:[%s350 + $0x108] sm:$0xff]
        %v463 = vld [vmem:[%s350 + $0x110] sm:$0xff]
        %v464 = vld [vmem:[%s350 + $0x118] sm:$0xff]
        %v465 = vld [vmem:[%s350 + $0x120] sm:$0xff]
        %v466 = vld [vmem:[%s350 + $0x128] sm:$0xff]
        %v467 = vld [vmem:[%s350 + $0x130] sm:$0xff]
        %v468 = vld [vmem:[%s350 + $0x138] sm:$0xff]
        %v469 = vld [vmem:[%s350 + $0x140] sm:$0xff]
        %v470 = vld [vmem:[%s350 + $0x148] sm:$0xff]
        %v471 = vld [vmem:[%s350 + $0x150] sm:$0xff]
        %v472 = vld [vmem:[%s350 + $0x158] sm:$0xff]
        %v473 = vld [vmem:[%s350 + $0x160] sm:$0xff]
        %v474 = vld [vmem:[%s350 + $0x168] sm:$0xff]
        %v475 = vld [vmem:[%s350 + $0x170] sm:$0xff]
        %v476 = vld [vmem:[%s350 + $0x178] sm:$0xff]
        %v477 = vld [vmem:[%s350 + $0x180] sm:$0xff]
        %v478 = vld [vmem:[%s350 + $0x188] sm:$0xff]
        %v479 = vld [vmem:[%s350 + $0x190] sm:$0xff]
        %v480 = vld [vmem:[%s350 + $0x198] sm:$0xff]
        %v481 = vld [vmem:[%s350 + $0x1a0] sm:$0xff]
        %v482 = vld [vmem:[%s350 + $0x1a8] sm:$0xff]
        %v483 = vld [vmem:[%s350 + $0x1b0] sm:$0xff]
        %v484 = vld [vmem:[%s350 + $0x1b8] sm:$0xff]
        %v485 = vld [vmem:[%s350 + $0x1c0] sm:$0xff]
        %v486 = vld [vmem:[%s350 + $0x1c8] sm:$0xff]
        %v487 = vld [vmem:[%s350 + $0x1d0] sm:$0xff]
        %v488 = vld [vmem:[%s350 + $0x1d8] sm:$0xff]
        %v489 = vld [vmem:[%s350 + $0x1e0] sm:$0xff]
        %v490 = vld [vmem:[%s350 + $0x1e8] sm:$0xff]
        %v491 = vld [vmem:[%s350 + $0x1f0] sm:$0xff]
        %v492 = vld [vmem:[%s350 + $0x1f8] sm:$0xff]
        %v493 = vld [vmem:[%s350 + $0x200] sm:$0xff]
        %v494 = vld [vmem:[%s350 + $0x208] sm:$0xff]
        %v495 = vld [vmem:[%s350 + $0x210] sm:$0xff]
        %v496 = vld [vmem:[%s350 + $0x218] sm:$0xff]
        %v497 = vld [vmem:[%s350 + $0x220] sm:$0xff]
        %v498 = vld [vmem:[%s350 + $0x228] sm:$0xff]
        %v499 = vld [vmem:[%s350 + $0x230] sm:$0xff]
        %v500 = vld [vmem:[%s350 + $0x238] sm:$0xff]
        %v501 = vld [vmem:[%s350 + $0x240] sm:$0xff]
        %v502 = vld [vmem:[%s350 + $0x248] sm:$0xff]
        %v503 = vld [vmem:[%s350 + $0x250] sm:$0xff]
        %v504 = vld [vmem:[%s350 + $0x258] sm:$0xff]
        %v505 = vld [vmem:[%s350 + $0x260] sm:$0xff]
        %v506 = vld [vmem:[%s350 + $0x268] sm:$0xff]
        %v507 = vld [vmem:[%s350 + $0x270] sm:$0xff]
        %v508 = vld [vmem:[%s350 + $0x278] sm:$0xff]
        %v509 = vld [vmem:[%s350 + $0x280] sm:$0xff]
        %v510 = vld [vmem:[%s350 + $0x288] sm:$0xff]
        %v511 = vld [vmem:[%s350 + $0x290] sm:$0xff]
        %v512 = vld [vmem:[%s350 + $0x298] sm:$0xff]
        %v513 = vld [vmem:[%s350 + $0x2a0] sm:$0xff]
        %v514 = vld [vmem:[%s350 + $0x2a8] sm:$0xff]
        %v515 = vld [vmem:[%s350 + $0x2b0] sm:$0xff]
        %v516 = vld [vmem:[%s350 + $0x2b8] sm:$0xff]
        %v517 = vld [vmem:[%s350 + $0x2c0] sm:$0xff]
        %v518 = vld [vmem:[%s350 + $0x2c8] sm:$0xff]
        %v519 = vld [vmem:[%s350 + $0x2d0] sm:$0xff]
        %v520 = vld [vmem:[%s350 + $0x2d8] sm:$0xff]
        %v521 = vld [vmem:[%s350 + $0x2e0] sm:$0xff]
        %v522 = vld [vmem:[%s350 + $0x2e8] sm:$0xff]
        %v523 = vld [vmem:[%s350 + $0x2f0] sm:$0xff]
        %v524 = vld [vmem:[%s350 + $0x2f8] sm:$0xff]
        %v525 = vld [vmem:[%s350 + $0x300] sm:$0xff]
        %v526 = vld [vmem:[%s350 + $0x308] sm:$0xff]
        %v527 = vld [vmem:[%s350 + $0x310] sm:$0xff]
        %v528 = vld [vmem:[%s350 + $0x318] sm:$0xff]
        %v529 = vld [vmem:[%s350 + $0x320] sm:$0xff]
        %v530 = vld [vmem:[%s350 + $0x328] sm:$0xff]
        %v531 = vld [vmem:[%s350 + $0x330] sm:$0xff]
        %v532 = vld [vmem:[%s350 + $0x338] sm:$0xff]
        %v533 = vld [vmem:[%s350 + $0x340] sm:$0xff]
        %v534 = vld [vmem:[%s350 + $0x348] sm:$0xff]
        %v535 = vld [vmem:[%s350 + $0x350] sm:$0xff]
        %v536 = vld [vmem:[%s350 + $0x358] sm:$0xff]
        %v537 = vld [vmem:[%s350 + $0x360] sm:$0xff]
        %v538 = vld [vmem:[%s350 + $0x368] sm:$0xff]
        %v539 = vld [vmem:[%s350 + $0x370] sm:$0xff]
        %v540 = vld [vmem:[%s350 + $0x378] sm:$0xff]
        %v541 = vld [vmem:[%s350 + $0x380] sm:$0xff]
        %v542 = vld [vmem:[%s350 + $0x388] sm:$0xff]
        %v543 = vld [vmem:[%s350 + $0x390] sm:$0xff]
        %v544 = vld [vmem:[%s350 + $0x398] sm:$0xff]
        %v545 = vld [vmem:[%s350 + $0x3a0] sm:$0xff]
        %v546 = vld [vmem:[%s350 + $0x3a8] sm:$0xff]
        %v547 = vld [vmem:[%s350 + $0x3b0] sm:$0xff]
        %v548 = vld [vmem:[%s350 + $0x3b8] sm:$0xff]
        %v549 = vld [vmem:[%s350 + $0x3c0] sm:$0xff]
        %v550 = vld [vmem:[%s350 + $0x3c8] sm:$0xff]
        %v551 = vld [vmem:[%s350 + $0x3d0] sm:$0xff]
        %v552 = vld [vmem:[%s350 + $0x3d8] sm:$0xff]
        %v553 = vld [vmem:[%s350 + $0x3e0] sm:$0xff]
        %v554 = vld [vmem:[%s350 + $0x3e8] sm:$0xff]
        %v555 = vld [vmem:[%s350 + $0x3f0] sm:$0xff]
        %v556 = vld [vmem:[%s350 + $0x3f8] sm:$0xff]
        %v557 = vpack.c.bf16 %v431, %v429
        %v558 = vpack.c.bf16 %v432, %v430
        %v559 = vpack.c.bf16 %v435, %v433
        %v560 = vpack.c.bf16 %v436, %v434
        %v561 = vpack.c.bf16 %v439, %v437
        %v562 = vpack.c.bf16 %v440, %v438
        %v563 = vpack.c.bf16 %v443, %v441
        %v564 = vpack.c.bf16 %v444, %v442
        %v565 = vpack.c.bf16 %v447, %v445
        %v566 = vpack.c.bf16 %v448, %v446
        %v567 = vpack.c.bf16 %v451, %v449
        %v568 = vpack.c.bf16 %v452, %v450
        %v569 = vpack.c.bf16 %v455, %v453
        %v570 = vpack.c.bf16 %v456, %v454
        %v571 = vpack.c.bf16 %v459, %v457
        %v572 = vpack.c.bf16 %v460, %v458
        %v573 = vpack.c.bf16 %v463, %v461
        %v574 = vpack.c.bf16 %v464, %v462
        %v575 = vpack.c.bf16 %v467, %v465
        %v576 = vpack.c.bf16 %v468, %v466
        %v577 = vpack.c.bf16 %v471, %v469
        %v578 = vpack.c.bf16 %v472, %v470
        %v579 = vpack.c.bf16 %v475, %v473
        %v580 = vpack.c.bf16 %v476, %v474
        %v581 = vpack.c.bf16 %v479, %v477
        %v582 = vpack.c.bf16 %v480, %v478
        %v583 = vpack.c.bf16 %v483, %v481
        %v584 = vpack.c.bf16 %v484, %v482
        %v585 = vpack.c.bf16 %v487, %v485
        %v586 = vpack.c.bf16 %v488, %v486
        %v587 = vpack.c.bf16 %v491, %v489
        %v588 = vpack.c.bf16 %v492, %v490
        %v589 = vpack.c.bf16 %v495, %v493
        %v590 = vpack.c.bf16 %v496, %v494
        %v591 = vpack.c.bf16 %v499, %v497
        %v592 = vpack.c.bf16 %v500, %v498
        %v593 = vpack.c.bf16 %v503, %v501
        %v594 = vpack.c.bf16 %v504, %v502
        %v595 = vpack.c.bf16 %v507, %v505
        %v596 = vpack.c.bf16 %v508, %v506
        %v597 = vpack.c.bf16 %v511, %v509
        %v598 = vpack.c.bf16 %v512, %v510
        %v599 = vpack.c.bf16 %v515, %v513
        %v600 = vpack.c.bf16 %v516, %v514
        %v601 = vpack.c.bf16 %v519, %v517
        %v602 = vpack.c.bf16 %v520, %v518
        %v603 = vpack.c.bf16 %v523, %v521
        %v604 = vpack.c.bf16 %v524, %v522
        %v605 = vpack.c.bf16 %v527, %v525
        %v606 = vpack.c.bf16 %v528, %v526
        %v607 = vpack.c.bf16 %v531, %v529
        %v608 = vpack.c.bf16 %v532, %v530
        %v609 = vpack.c.bf16 %v535, %v533
        %v610 = vpack.c.bf16 %v536, %v534
        %v611 = vpack.c.bf16 %v539, %v537
        %v612 = vpack.c.bf16 %v540, %v538
        %v613 = vpack.c.bf16 %v543, %v541
        %v614 = vpack.c.bf16 %v544, %v542
        %v615 = vpack.c.bf16 %v547, %v545
        %v616 = vpack.c.bf16 %v548, %v546
        %v617 = vpack.c.bf16 %v551, %v549
        %v618 = vpack.c.bf16 %v552, %v550
        %v619 = vpack.c.bf16 %v555, %v553
        %v620 = vpack.c.bf16 %v556, %v554
        %v621 = vld [vmem:[#allocation8] sm:$0xf]
        %v622 = vld [vmem:[#allocation8 + $0x4] sm:$0xf]
        %v623 = vld [vmem:[#allocation8 + $0x8] sm:$0xf]
        %v624 = vld [vmem:[#allocation8 + $0xc] sm:$0xf]
        %v625 = vld [vmem:[#allocation8 + $0x10] sm:$0xf]
        %v626 = vld [vmem:[#allocation8 + $0x14] sm:$0xf]
        %v627 = vld [vmem:[#allocation8 + $0x18] sm:$0xf]
        %v628 = vld [vmem:[#allocation8 + $0x1c] sm:$0xf]
        %v629 = vld [vmem:[#allocation8 + $0x20] sm:$0xf]
        %v630 = vld [vmem:[#allocation8 + $0x24] sm:$0xf]
        %v631 = vld [vmem:[#allocation8 + $0x28] sm:$0xf]
        %v632 = vld [vmem:[#allocation8 + $0x2c] sm:$0xf]
        %v633 = vld [vmem:[#allocation8 + $0x30] sm:$0xf]
        %v634 = vld [vmem:[#allocation8 + $0x34] sm:$0xf]
        %v635 = vld [vmem:[#allocation8 + $0x38] sm:$0xf]
        %v636 = vld [vmem:[#allocation8 + $0x3c] sm:$0xf]
        %v637 = vld [vmem:[#allocation8 + $0x40] sm:$0xf]
        %v638 = vld [vmem:[#allocation8 + $0x44] sm:$0xf]
        %v639 = vld [vmem:[#allocation8 + $0x48] sm:$0xf]
        %v640 = vld [vmem:[#allocation8 + $0x4c] sm:$0xf]
        %v641 = vld [vmem:[#allocation8 + $0x50] sm:$0xf]
        %v642 = vld [vmem:[#allocation8 + $0x54] sm:$0xf]
        %v643 = vld [vmem:[#allocation8 + $0x58] sm:$0xf]
        %v644 = vld [vmem:[#allocation8 + $0x5c] sm:$0xf]
        %v645 = vld [vmem:[#allocation8 + $0x60] sm:$0xf]
        %v646 = vld [vmem:[#allocation8 + $0x64] sm:$0xf]
        %v647 = vld [vmem:[#allocation8 + $0x68] sm:$0xf]
        %v648 = vld [vmem:[#allocation8 + $0x6c] sm:$0xf]
        %v649 = vld [vmem:[#allocation8 + $0x70] sm:$0xf]
        %v650 = vld [vmem:[#allocation8 + $0x74] sm:$0xf]
        %v651 = vld [vmem:[#allocation8 + $0x78] sm:$0xf]
        %v652 = vld [vmem:[#allocation8 + $0x7c] sm:$0xf]
        %v685 = vunpack.c.l.b16 %v621
        %v686 = vunpack.c.l.b16 %v622
        %v687 = vunpack.c.l.b16 %v623
        %v688 = vunpack.c.l.b16 %v624
        %v689 = vunpack.c.l.b16 %v625
        %v690 = vunpack.c.l.b16 %v626
        %v691 = vunpack.c.l.b16 %v627
        %v692 = vunpack.c.l.b16 %v628
        %v693 = vunpack.c.l.b16 %v629
        %v694 = vunpack.c.l.b16 %v630
        %v695 = vunpack.c.l.b16 %v631
        %v696 = vunpack.c.l.b16 %v632
        %v697 = vunpack.c.l.b16 %v633
        %v698 = vunpack.c.l.b16 %v634
        %v699 = vunpack.c.l.b16 %v635
        %v700 = vunpack.c.l.b16 %v636
        %v701 = vunpack.c.l.b16 %v637
        %v702 = vunpack.c.l.b16 %v638
        %v703 = vunpack.c.l.b16 %v639
        %v704 = vunpack.c.l.b16 %v640
        %v705 = vunpack.c.l.b16 %v641
        %v706 = vunpack.c.l.b16 %v642
        %v707 = vunpack.c.l.b16 %v643
        %v708 = vunpack.c.l.b16 %v644
        %v709 = vunpack.c.l.b16 %v645
        %v710 = vunpack.c.l.b16 %v646
        %v711 = vunpack.c.l.b16 %v647
        %v712 = vunpack.c.l.b16 %v648
        %v713 = vunpack.c.l.b16 %v649
        %v714 = vunpack.c.l.b16 %v650
        %v715 = vunpack.c.l.b16 %v651
        %v716 = vunpack.c.l.b16 %v652
        %v717 = vpack.c.b16 %v686, %v685
        %v718 = vpack.c.b16 %v688, %v687
        %v719 = vpack.c.b16 %v690, %v689
        %v720 = vpack.c.b16 %v692, %v691
        %v721 = vpack.c.b16 %v694, %v693
        %v722 = vpack.c.b16 %v696, %v695
        %v723 = vpack.c.b16 %v698, %v697
        %v724 = vpack.c.b16 %v700, %v699
        %v725 = vpack.c.b16 %v702, %v701
        %v726 = vpack.c.b16 %v704, %v703
        %v727 = vpack.c.b16 %v706, %v705
        %v728 = vpack.c.b16 %v708, %v707
        %v729 = vpack.c.b16 %v710, %v709
        %v730 = vpack.c.b16 %v712, %v711
        %v731 = vpack.c.b16 %v714, %v713
        %v732 = vpack.c.b16 %v716, %v715
        %749 = vmatpush.bf16.msra.mxu0 %v724
        %750 = vmatpush.bf16.msra.mxu0 %v723
        %751 = vmatpush.bf16.msra.mxu0 %v722
        %752 = vmatpush.bf16.msra.mxu0 %v721
        %753 = vmatpush.bf16.msra.mxu0 %v720
        %754 = vmatpush.bf16.msra.mxu0 %v719
        %755 = vmatpush.bf16.msra.mxu0 %v718
        %756 = vmatpush.bf16.msra.mxu0 %v717
        %757 = vmatmul.bf16.gmra.mxu0 %v557
        %v758 = vpop.f32.mrf.mxu0
        %v759 = vadd.f32 0.0, %v758
        %v760 = vpop.f32.mrf.mxu0
        %v761 = vadd.f32 0.0, %v760
        %762 = vmatmul.bf16.gmra.mxu0 %v559
        %v763 = vpop.f32.mrf.mxu0
        %v764 = vadd.f32 0.0, %v763
        %v765 = vpop.f32.mrf.mxu0
        %v766 = vadd.f32 0.0, %v765
        %767 = vmatmul.bf16.gmra.mxu0 %v561
        %v768 = vpop.f32.mrf.mxu0
        %v769 = vadd.f32 0.0, %v768
        %v770 = vpop.f32.mrf.mxu0
        %v771 = vadd.f32 0.0, %v770
        %772 = vmatmul.bf16.gmra.mxu0 %v563
        %v773 = vpop.f32.mrf.mxu0
        %v774 = vadd.f32 0.0, %v773
        %v775 = vpop.f32.mrf.mxu0
        %v776 = vadd.f32 0.0, %v775
        %777 = vmatmul.bf16.gmra.mxu0 %v565
        %v778 = vpop.f32.mrf.mxu0
        %v779 = vadd.f32 0.0, %v778
        %v780 = vpop.f32.mrf.mxu0
        %v781 = vadd.f32 0.0, %v780
        %782 = vmatmul.bf16.gmra.mxu0 %v567
        %v783 = vpop.f32.mrf.mxu0
        %v784 = vadd.f32 0.0, %v783
        %v785 = vpop.f32.mrf.mxu0
        %v786 = vadd.f32 0.0, %v785
        %787 = vmatmul.bf16.gmra.mxu0 %v569
        %v788 = vpop.f32.mrf.mxu0
        %v789 = vadd.f32 0.0, %v788
        %v790 = vpop.f32.mrf.mxu0
        %v791 = vadd.f32 0.0, %v790
        %792 = vmatmul.bf16.gmra.mxu0 %v571
        %v793 = vpop.f32.mrf.mxu0
        %v794 = vadd.f32 0.0, %v793
        %v795 = vpop.f32.mrf.mxu0
        %v796 = vadd.f32 0.0, %v795
        %797 = vmatmul.bf16.gmra.mxu0 %v573
        %v798 = vpop.f32.mrf.mxu0
        %v799 = vadd.f32 0.0, %v798
        %v800 = vpop.f32.mrf.mxu0
        %v801 = vadd.f32 0.0, %v800
        %802 = vmatmul.bf16.gmra.mxu0 %v575
        %v803 = vpop.f32.mrf.mxu0
        %v804 = vadd.f32 0.0, %v803
        %v805 = vpop.f32.mrf.mxu0
        %v806 = vadd.f32 0.0, %v805
        %807 = vmatmul.bf16.gmra.mxu0 %v577
        %v808 = vpop.f32.mrf.mxu0
        %v809 = vadd.f32 0.0, %v808
        %v810 = vpop.f32.mrf.mxu0
        %v811 = vadd.f32 0.0, %v810
        %812 = vmatmul.bf16.gmra.mxu0 %v579
        %v813 = vpop.f32.mrf.mxu0
        %v814 = vadd.f32 0.0, %v813
        %v815 = vpop.f32.mrf.mxu0
        %v816 = vadd.f32 0.0, %v815
        %817 = vmatmul.bf16.gmra.mxu0 %v581
        %v818 = vpop.f32.mrf.mxu0
        %v819 = vadd.f32 0.0, %v818
        %v820 = vpop.f32.mrf.mxu0
        %v821 = vadd.f32 0.0, %v820
        %822 = vmatmul.bf16.gmra.mxu0 %v583
        %v823 = vpop.f32.mrf.mxu0
        %v824 = vadd.f32 0.0, %v823
        %v825 = vpop.f32.mrf.mxu0
        %v826 = vadd.f32 0.0, %v825
        %827 = vmatmul.bf16.gmra.mxu0 %v585
        %v828 = vpop.f32.mrf.mxu0
        %v829 = vadd.f32 0.0, %v828
        %v830 = vpop.f32.mrf.mxu0
        %v831 = vadd.f32 0.0, %v830
        %832 = vmatmul.bf16.gmra.mxu0 %v587
        %v833 = vpop.f32.mrf.mxu0
        %v834 = vadd.f32 0.0, %v833
        %v835 = vpop.f32.mrf.mxu0
        %v836 = vadd.f32 0.0, %v835
        %837 = vmatmul.bf16.gmra.mxu0 %v589
        %v838 = vpop.f32.mrf.mxu0
        %v839 = vadd.f32 0.0, %v838
        %v840 = vpop.f32.mrf.mxu0
        %v841 = vadd.f32 0.0, %v840
        %842 = vmatmul.bf16.gmra.mxu0 %v591
        %v843 = vpop.f32.mrf.mxu0
        %v844 = vadd.f32 0.0, %v843
        %v845 = vpop.f32.mrf.mxu0
        %v846 = vadd.f32 0.0, %v845
        %847 = vmatmul.bf16.gmra.mxu0 %v593
        %v848 = vpop.f32.mrf.mxu0
        %v849 = vadd.f32 0.0, %v848
        %v850 = vpop.f32.mrf.mxu0
        %v851 = vadd.f32 0.0, %v850
        %852 = vmatmul.bf16.gmra.mxu0 %v595
        %v853 = vpop.f32.mrf.mxu0
        %v854 = vadd.f32 0.0, %v853
        %v855 = vpop.f32.mrf.mxu0
        %v856 = vadd.f32 0.0, %v855
        %857 = vmatmul.bf16.gmra.mxu0 %v597
        %v858 = vpop.f32.mrf.mxu0
        %v859 = vadd.f32 0.0, %v858
        %v860 = vpop.f32.mrf.mxu0
        %v861 = vadd.f32 0.0, %v860
        %862 = vmatmul.bf16.gmra.mxu0 %v599
        %v863 = vpop.f32.mrf.mxu0
        %v864 = vadd.f32 0.0, %v863
        %v865 = vpop.f32.mrf.mxu0
        %v866 = vadd.f32 0.0, %v865
        %867 = vmatmul.bf16.gmra.mxu0 %v601
        %v868 = vpop.f32.mrf.mxu0
        %v869 = vadd.f32 0.0, %v868
        %v870 = vpop.f32.mrf.mxu0
        %v871 = vadd.f32 0.0, %v870
        %872 = vmatmul.bf16.gmra.mxu0 %v603
        %v873 = vpop.f32.mrf.mxu0
        %v874 = vadd.f32 0.0, %v873
        %v875 = vpop.f32.mrf.mxu0
        %v876 = vadd.f32 0.0, %v875
        %877 = vmatmul.bf16.gmra.mxu0 %v605
        %v878 = vpop.f32.mrf.mxu0
        %v879 = vadd.f32 0.0, %v878
        %v880 = vpop.f32.mrf.mxu0
        %v881 = vadd.f32 0.0, %v880
        %882 = vmatmul.bf16.gmra.mxu0 %v607
        %v883 = vpop.f32.mrf.mxu0
        %v884 = vadd.f32 0.0, %v883
        %v885 = vpop.f32.mrf.mxu0
        %v886 = vadd.f32 0.0, %v885
        %887 = vmatmul.bf16.gmra.mxu0 %v609
        %v888 = vpop.f32.mrf.mxu0
        %v889 = vadd.f32 0.0, %v888
        %v890 = vpop.f32.mrf.mxu0
        %v891 = vadd.f32 0.0, %v890
        %892 = vmatmul.bf16.gmra.mxu0 %v611
        %v893 = vpop.f32.mrf.mxu0
        %v894 = vadd.f32 0.0, %v893
        %v895 = vpop.f32.mrf.mxu0
        %v896 = vadd.f32 0.0, %v895
        %897 = vmatmul.bf16.gmra.mxu0 %v613
        %v898 = vpop.f32.mrf.mxu0
        %v899 = vadd.f32 0.0, %v898
        %v900 = vpop.f32.mrf.mxu0
        %v901 = vadd.f32 0.0, %v900
        %902 = vmatmul.bf16.gmra.mxu0 %v615
        %v903 = vpop.f32.mrf.mxu0
        %v904 = vadd.f32 0.0, %v903
        %v905 = vpop.f32.mrf.mxu0
        %v906 = vadd.f32 0.0, %v905
        %907 = vmatmul.bf16.gmra.mxu0 %v617
        %v908 = vpop.f32.mrf.mxu0
        %v909 = vadd.f32 0.0, %v908
        %v910 = vpop.f32.mrf.mxu0
        %v911 = vadd.f32 0.0, %v910
        %912 = vmatmul.bf16.gmra.mxu0 %v619
        %v913 = vpop.f32.mrf.mxu0
        %v914 = vadd.f32 0.0, %v913
        %v915 = vpop.f32.mrf.mxu0
        %v916 = vadd.f32 0.0, %v915
        %917 = vdwg.mxu0
        %918 = vmatpush.bf16.msra.mxu0 %v732
        %919 = vmatpush.bf16.msra.mxu0 %v731
        %920 = vmatpush.bf16.msra.mxu0 %v730
        %921 = vmatpush.bf16.msra.mxu0 %v729
        %922 = vmatpush.bf16.msra.mxu0 %v728
        %923 = vmatpush.bf16.msra.mxu0 %v727
        %924 = vmatpush.bf16.msra.mxu0 %v726
        %925 = vmatpush.bf16.msra.mxu0 %v725
        %926 = vmatmul.bf16.gmra.mxu0 %v558
        %v927 = vpop.f32.mrf.mxu0
        %v928 = vadd.f32 %v759, %v927
        %v929 = vpop.f32.mrf.mxu0
        %v930 = vadd.f32 %v761, %v929
        %931 = vmatmul.bf16.gmra.mxu0 %v560
        %v932 = vpop.f32.mrf.mxu0
        %v933 = vadd.f32 %v764, %v932
        %v934 = vpop.f32.mrf.mxu0
        %v935 = vadd.f32 %v766, %v934
        %936 = vmatmul.bf16.gmra.mxu0 %v562
        %v937 = vpop.f32.mrf.mxu0
        %v938 = vadd.f32 %v769, %v937
        %v939 = vpop.f32.mrf.mxu0
        %v940 = vadd.f32 %v771, %v939
        %941 = vmatmul.bf16.gmra.mxu0 %v564
        %v942 = vpop.f32.mrf.mxu0
        %v943 = vadd.f32 %v774, %v942
        %v944 = vpop.f32.mrf.mxu0
        %v945 = vadd.f32 %v776, %v944
        %946 = vmatmul.bf16.gmra.mxu0 %v566
        %v947 = vpop.f32.mrf.mxu0
        %v948 = vadd.f32 %v779, %v947
        %v949 = vpop.f32.mrf.mxu0
        %v950 = vadd.f32 %v781, %v949
        %951 = vmatmul.bf16.gmra.mxu0 %v568
        %v952 = vpop.f32.mrf.mxu0
        %v953 = vadd.f32 %v784, %v952
        %v954 = vpop.f32.mrf.mxu0
        %v955 = vadd.f32 %v786, %v954
        %956 = vmatmul.bf16.gmra.mxu0 %v570
        %v957 = vpop.f32.mrf.mxu0
        %v958 = vadd.f32 %v789, %v957
        %v959 = vpop.f32.mrf.mxu0
        %v960 = vadd.f32 %v791, %v959
        %961 = vmatmul.bf16.gmra.mxu0 %v572
        %v962 = vpop.f32.mrf.mxu0
        %v963 = vadd.f32 %v794, %v962
        %v964 = vpop.f32.mrf.mxu0
        %v965 = vadd.f32 %v796, %v964
        %966 = vmatmul.bf16.gmra.mxu0 %v574
        %v967 = vpop.f32.mrf.mxu0
        %v968 = vadd.f32 %v799, %v967
        %v969 = vpop.f32.mrf.mxu0
        %v970 = vadd.f32 %v801, %v969
        %971 = vmatmul.bf16.gmra.mxu0 %v576
        %v972 = vpop.f32.mrf.mxu0
        %v973 = vadd.f32 %v804, %v972
        %v974 = vpop.f32.mrf.mxu0
        %v975 = vadd.f32 %v806, %v974
        %976 = vmatmul.bf16.gmra.mxu0 %v578
        %v977 = vpop.f32.mrf.mxu0
        %v978 = vadd.f32 %v809, %v977
        %v979 = vpop.f32.mrf.mxu0
        %v980 = vadd.f32 %v811, %v979
        %981 = vmatmul.bf16.gmra.mxu0 %v580
        %v982 = vpop.f32.mrf.mxu0
        %v983 = vadd.f32 %v814, %v982
        %v984 = vpop.f32.mrf.mxu0
        %v985 = vadd.f32 %v816, %v984
        %986 = vmatmul.bf16.gmra.mxu0 %v582
        %v987 = vpop.f32.mrf.mxu0
        %v988 = vadd.f32 %v819, %v987
        %v989 = vpop.f32.mrf.mxu0
        %v990 = vadd.f32 %v821, %v989
        %991 = vmatmul.bf16.gmra.mxu0 %v584
        %v992 = vpop.f32.mrf.mxu0
        %v993 = vadd.f32 %v824, %v992
        %v994 = vpop.f32.mrf.mxu0
        %v995 = vadd.f32 %v826, %v994
        %996 = vmatmul.bf16.gmra.mxu0 %v586
        %v997 = vpop.f32.mrf.mxu0
        %v998 = vadd.f32 %v829, %v997
        %v999 = vpop.f32.mrf.mxu0
        %v1000 = vadd.f32 %v831, %v999
        %1001 = vmatmul.bf16.gmra.mxu0 %v588
        %v1002 = vpop.f32.mrf.mxu0
        %v1003 = vadd.f32 %v834, %v1002
        %v1004 = vpop.f32.mrf.mxu0
        %v1005 = vadd.f32 %v836, %v1004
        %1006 = vmatmul.bf16.gmra.mxu0 %v590
        %v1007 = vpop.f32.mrf.mxu0
        %v1008 = vadd.f32 %v839, %v1007
        %v1009 = vpop.f32.mrf.mxu0
        %v1010 = vadd.f32 %v841, %v1009
        %1011 = vmatmul.bf16.gmra.mxu0 %v592
        %v1012 = vpop.f32.mrf.mxu0
        %v1013 = vadd.f32 %v844, %v1012
        %v1014 = vpop.f32.mrf.mxu0
        %v1015 = vadd.f32 %v846, %v1014
        %1016 = vmatmul.bf16.gmra.mxu0 %v594
        %v1017 = vpop.f32.mrf.mxu0
        %v1018 = vadd.f32 %v849, %v1017
        %v1019 = vpop.f32.mrf.mxu0
        %v1020 = vadd.f32 %v851, %v1019
        %1021 = vmatmul.bf16.gmra.mxu0 %v596
        %v1022 = vpop.f32.mrf.mxu0
        %v1023 = vadd.f32 %v854, %v1022
        %v1024 = vpop.f32.mrf.mxu0
        %v1025 = vadd.f32 %v856, %v1024
        %1026 = vmatmul.bf16.gmra.mxu0 %v598
        %v1027 = vpop.f32.mrf.mxu0
        %v1028 = vadd.f32 %v859, %v1027
        %v1029 = vpop.f32.mrf.mxu0
        %v1030 = vadd.f32 %v861, %v1029
        %1031 = vmatmul.bf16.gmra.mxu0 %v600
        %v1032 = vpop.f32.mrf.mxu0
        %v1033 = vadd.f32 %v864, %v1032
        %v1034 = vpop.f32.mrf.mxu0
        %v1035 = vadd.f32 %v866, %v1034
        %1036 = vmatmul.bf16.gmra.mxu0 %v602
        %v1037 = vpop.f32.mrf.mxu0
        %v1038 = vadd.f32 %v869, %v1037
        %v1039 = vpop.f32.mrf.mxu0
        %v1040 = vadd.f32 %v871, %v1039
        %1041 = vmatmul.bf16.gmra.mxu0 %v604
        %v1042 = vpop.f32.mrf.mxu0
        %v1043 = vadd.f32 %v874, %v1042
        %v1044 = vpop.f32.mrf.mxu0
        %v1045 = vadd.f32 %v876, %v1044
        %1046 = vmatmul.bf16.gmra.mxu0 %v606
        %v1047 = vpop.f32.mrf.mxu0
        %v1048 = vadd.f32 %v879, %v1047
        %v1049 = vpop.f32.mrf.mxu0
        %v1050 = vadd.f32 %v881, %v1049
        %1051 = vmatmul.bf16.gmra.mxu0 %v608
        %v1052 = vpop.f32.mrf.mxu0
        %v1053 = vadd.f32 %v884, %v1052
        %v1054 = vpop.f32.mrf.mxu0
        %v1055 = vadd.f32 %v886, %v1054
        %1056 = vmatmul.bf16.gmra.mxu0 %v610
        %v1057 = vpop.f32.mrf.mxu0
        %v1058 = vadd.f32 %v889, %v1057
        %v1059 = vpop.f32.mrf.mxu0
        %v1060 = vadd.f32 %v891, %v1059
        %1061 = vmatmul.bf16.gmra.mxu0 %v612
        %v1062 = vpop.f32.mrf.mxu0
        %v1063 = vadd.f32 %v894, %v1062
        %v1064 = vpop.f32.mrf.mxu0
        %v1065 = vadd.f32 %v896, %v1064
        %1066 = vmatmul.bf16.gmra.mxu0 %v614
        %v1067 = vpop.f32.mrf.mxu0
        %v1068 = vadd.f32 %v899, %v1067
        %v1069 = vpop.f32.mrf.mxu0
        %v1070 = vadd.f32 %v901, %v1069
        %1071 = vmatmul.bf16.gmra.mxu0 %v616
        %v1072 = vpop.f32.mrf.mxu0
        %v1073 = vadd.f32 %v904, %v1072
        %v1074 = vpop.f32.mrf.mxu0
        %v1075 = vadd.f32 %v906, %v1074
        %1076 = vmatmul.bf16.gmra.mxu0 %v618
        %v1077 = vpop.f32.mrf.mxu0
        %v1078 = vadd.f32 %v909, %v1077
        %v1079 = vpop.f32.mrf.mxu0
        %v1080 = vadd.f32 %v911, %v1079
        %1081 = vmatmul.bf16.gmra.mxu0 %v620
        %v1082 = vpop.f32.mrf.mxu0
        %v1083 = vadd.f32 %v914, %v1082
        %v1084 = vpop.f32.mrf.mxu0
        %v1085 = vadd.f32 %v916, %v1084
        %1086 = vdwg.mxu0
        %v1087 = vmax.f32 %v928, 0.0
        %v1088 = vmax.f32 %v930, 0.0
        %v1089 = vmax.f32 %v933, 0.0
        %v1090 = vmax.f32 %v935, 0.0
        %v1091 = vmax.f32 %v938, 0.0
        %v1092 = vmax.f32 %v940, 0.0
        %v1093 = vmax.f32 %v943, 0.0
        %v1094 = vmax.f32 %v945, 0.0
        %v1095 = vmax.f32 %v948, 0.0
        %v1096 = vmax.f32 %v950, 0.0
        %v1097 = vmax.f32 %v953, 0.0
        %v1098 = vmax.f32 %v955, 0.0
        %v1099 = vmax.f32 %v958, 0.0
        %v1100 = vmax.f32 %v960, 0.0
        %v1101 = vmax.f32 %v963, 0.0
        %v1102 = vmax.f32 %v965, 0.0
        %v1103 = vmax.f32 %v968, 0.0
        %v1104 = vmax.f32 %v970, 0.0
        %v1105 = vmax.f32 %v973, 0.0
        %v1106 = vmax.f32 %v975, 0.0
        %v1107 = vmax.f32 %v978, 0.0
        %v1108 = vmax.f32 %v980, 0.0
        %v1109 = vmax.f32 %v983, 0.0
        %v1110 = vmax.f32 %v985, 0.0
        %v1111 = vmax.f32 %v988, 0.0
        %v1112 = vmax.f32 %v990, 0.0
        %v1113 = vmax.f32 %v993, 0.0
        %v1114 = vmax.f32 %v995, 0.0
        %v1115 = vmax.f32 %v998, 0.0
        %v1116 = vmax.f32 %v1000, 0.0
        %v1117 = vmax.f32 %v1003, 0.0
        %v1118 = vmax.f32 %v1005, 0.0
        %v1119 = vmax.f32 %v1008, 0.0
        %v1120 = vmax.f32 %v1010, 0.0
        %v1121 = vmax.f32 %v1013, 0.0
        %v1122 = vmax.f32 %v1015, 0.0
        %v1123 = vmax.f32 %v1018, 0.0
        %v1124 = vmax.f32 %v1020, 0.0
        %v1125 = vmax.f32 %v1023, 0.0
        %v1126 = vmax.f32 %v1025, 0.0
        %v1127 = vmax.f32 %v1028, 0.0
        %v1128 = vmax.f32 %v1030, 0.0
        %v1129 = vmax.f32 %v1033, 0.0
        %v1130 = vmax.f32 %v1035, 0.0
        %v1131 = vmax.f32 %v1038, 0.0
        %v1132 = vmax.f32 %v1040, 0.0
        %v1133 = vmax.f32 %v1043, 0.0
        %v1134 = vmax.f32 %v1045, 0.0
        %v1135 = vmax.f32 %v1048, 0.0
        %v1136 = vmax.f32 %v1050, 0.0
        %v1137 = vmax.f32 %v1053, 0.0
        %v1138 = vmax.f32 %v1055, 0.0
        %v1139 = vmax.f32 %v1058, 0.0
        %v1140 = vmax.f32 %v1060, 0.0
        %v1141 = vmax.f32 %v1063, 0.0
        %v1142 = vmax.f32 %v1065, 0.0
        %v1143 = vmax.f32 %v1068, 0.0
        %v1144 = vmax.f32 %v1070, 0.0
        %v1145 = vmax.f32 %v1073, 0.0
        %v1146 = vmax.f32 %v1075, 0.0
        %v1147 = vmax.f32 %v1078, 0.0
        %v1148 = vmax.f32 %v1080, 0.0
        %v1149 = vmax.f32 %v1083, 0.0
        %v1150 = vmax.f32 %v1085, 0.0
        %v1151 = vlaneseq
        %v1152 = vshrl.u32 %v1151, 7
        %v1153 = vadd.s32 %v1152, 8
        %v1154 = vadd.s32 %v1152, 16
        %v1155 = vadd.s32 %v1152, 24
        %v1156 = vadd.s32 %v1152, 32
        %v1157 = vadd.s32 %v1152, 40
        %v1158 = vadd.s32 %v1152, 48
        %v1159 = vadd.s32 %v1152, 56
        %v1160 = vadd.s32 %v1152, 64
        %v1161 = vadd.s32 %v1152, 72
        %v1162 = vadd.s32 %v1152, 80
        %v1163 = vadd.s32 %v1152, 88
        %v1164 = vadd.s32 %v1152, 96
        %v1165 = vadd.s32 %v1152, 104
        %v1166 = vadd.s32 %v1152, 112
        %v1167 = vadd.s32 %v1152, 120
        %v1168 = vadd.s32 %v1152, 128
        %v1169 = vadd.s32 %v1152, 136
        %v1170 = vadd.s32 %v1152, 144
        %v1171 = vadd.s32 %v1152, 152
        %v1172 = vadd.s32 %v1152, 160
        %v1173 = vadd.s32 %v1152, 168
        %v1174 = vadd.s32 %v1152, 176
        %v1175 = vadd.s32 %v1152, 184
        %v1176 = vadd.s32 %v1152, 192
        %v1177 = vadd.s32 %v1152, 200
        %v1178 = vadd.s32 %v1152, 208
        %v1179 = vadd.s32 %v1152, 216
        %v1180 = vadd.s32 %v1152, 224
        %v1181 = vadd.s32 %v1152, 232
        %v1182 = vadd.s32 %v1152, 240
        %v1183 = vadd.s32 %v1152, 248
        %v1184 = vadd.s32 %v1152, 256
        %v1185 = vadd.s32 %v1152, 264
        %v1186 = vadd.s32 %v1152, 272
        %v1187 = vadd.s32 %v1152, 280
        %v1188 = vadd.s32 %v1152, 288
        %v1189 = vadd.s32 %v1152, 296
        %v1190 = vadd.s32 %v1152, 304
        %v1191 = vadd.s32 %v1152, 312
        %v1192 = vadd.s32 %v1152, 320
        %v1193 = vadd.s32 %v1152, 328
        %v1194 = vadd.s32 %v1152, 336
        %v1195 = vadd.s32 %v1152, 344
        %v1196 = vadd.s32 %v1152, 352
        %v1197 = vadd.s32 %v1152, 360
        %v1198 = vadd.s32 %v1152, 368
        %v1199 = vadd.s32 %v1152, 376
        %v1200 = vadd.s32 %v1152, 384
        %v1201 = vadd.s32 %v1152, 392
        %v1202 = vadd.s32 %v1152, 400
        %v1203 = vadd.s32 %v1152, 408
        %v1204 = vadd.s32 %v1152, 416
        %v1205 = vadd.s32 %v1152, 424
        %v1206 = vadd.s32 %v1152, 432
        %v1207 = vadd.s32 %v1152, 440
        %v1208 = vadd.s32 %v1152, 448
        %v1209 = vadd.s32 %v1152, 456
        %v1210 = vadd.s32 %v1152, 464
        %v1211 = vadd.s32 %v1152, 472
        %v1212 = vadd.s32 %v1152, 480
        %v1213 = vadd.s32 %v1152, 488
        %v1214 = vadd.s32 %v1152, 496
        %v1215 = vadd.s32 %v1152, 504
        %v1216 = vstv %s428
        %v1217 = vadd.s32 %v1152, %v1216
        %v1218 = vadd.s32 %v1153, %v1216
        %v1219 = vadd.s32 %v1154, %v1216
        %v1220 = vadd.s32 %v1155, %v1216
        %v1221 = vadd.s32 %v1156, %v1216
        %v1222 = vadd.s32 %v1157, %v1216
        %v1223 = vadd.s32 %v1158, %v1216
        %v1224 = vadd.s32 %v1159, %v1216
        %v1225 = vadd.s32 %v1160, %v1216
        %v1226 = vadd.s32 %v1161, %v1216
        %v1227 = vadd.s32 %v1162, %v1216
        %v1228 = vadd.s32 %v1163, %v1216
        %v1229 = vadd.s32 %v1164, %v1216
        %v1230 = vadd.s32 %v1165, %v1216
        %v1231 = vadd.s32 %v1166, %v1216
        %v1232 = vadd.s32 %v1167, %v1216
        %v1233 = vadd.s32 %v1168, %v1216
        %v1234 = vadd.s32 %v1169, %v1216
        %v1235 = vadd.s32 %v1170, %v1216
        %v1236 = vadd.s32 %v1171, %v1216
        %v1237 = vadd.s32 %v1172, %v1216
        %v1238 = vadd.s32 %v1173, %v1216
        %v1239 = vadd.s32 %v1174, %v1216
        %v1240 = vadd.s32 %v1175, %v1216
        %v1241 = vadd.s32 %v1176, %v1216
        %v1242 = vadd.s32 %v1177, %v1216
        %v1243 = vadd.s32 %v1178, %v1216
        %v1244 = vadd.s32 %v1179, %v1216
        %v1245 = vadd.s32 %v1180, %v1216
        %v1246 = vadd.s32 %v1181, %v1216
        %v1247 = vadd.s32 %v1182, %v1216
        %v1248 = vadd.s32 %v1183, %v1216
        %v1249 = vadd.s32 %v1184, %v1216
        %v1250 = vadd.s32 %v1185, %v1216
        %v1251 = vadd.s32 %v1186, %v1216
        %v1252 = vadd.s32 %v1187, %v1216
        %v1253 = vadd.s32 %v1188, %v1216
        %v1254 = vadd.s32 %v1189, %v1216
        %v1255 = vadd.s32 %v1190, %v1216
        %v1256 = vadd.s32 %v1191, %v1216
        %v1257 = vadd.s32 %v1192, %v1216
        %v1258 = vadd.s32 %v1193, %v1216
        %v1259 = vadd.s32 %v1194, %v1216
        %v1260 = vadd.s32 %v1195, %v1216
        %v1261 = vadd.s32 %v1196, %v1216
        %v1262 = vadd.s32 %v1197, %v1216
        %v1263 = vadd.s32 %v1198, %v1216
        %v1264 = vadd.s32 %v1199, %v1216
        %v1265 = vadd.s32 %v1200, %v1216
        %v1266 = vadd.s32 %v1201, %v1216
        %v1267 = vadd.s32 %v1202, %v1216
        %v1268 = vadd.s32 %v1203, %v1216
        %v1269 = vadd.s32 %v1204, %v1216
        %v1270 = vadd.s32 %v1205, %v1216
        %v1271 = vadd.s32 %v1206, %v1216
        %v1272 = vadd.s32 %v1207, %v1216
        %v1273 = vadd.s32 %v1208, %v1216
        %v1274 = vadd.s32 %v1209, %v1216
        %v1275 = vadd.s32 %v1210, %v1216
        %v1276 = vadd.s32 %v1211, %v1216
        %v1277 = vadd.s32 %v1212, %v1216
        %v1278 = vadd.s32 %v1213, %v1216
        %v1279 = vadd.s32 %v1214, %v1216
        %v1280 = vadd.s32 %v1215, %v1216
        %vm1281 = vcmp.lt.s32.totalorder %v1217, 700
        %vm1282 = vcmp.lt.s32.totalorder %v1218, 700
        %vm1283 = vcmp.lt.s32.totalorder %v1219, 700
        %vm1284 = vcmp.lt.s32.totalorder %v1220, 700
        %vm1285 = vcmp.lt.s32.totalorder %v1221, 700
        %vm1286 = vcmp.lt.s32.totalorder %v1222, 700
        %vm1287 = vcmp.lt.s32.totalorder %v1223, 700
        %vm1288 = vcmp.lt.s32.totalorder %v1224, 700
        %vm1289 = vcmp.lt.s32.totalorder %v1225, 700
        %vm1290 = vcmp.lt.s32.totalorder %v1226, 700
        %vm1291 = vcmp.lt.s32.totalorder %v1227, 700
        %vm1292 = vcmp.lt.s32.totalorder %v1228, 700
        %vm1293 = vcmp.lt.s32.totalorder %v1229, 700
        %vm1294 = vcmp.lt.s32.totalorder %v1230, 700
        %vm1295 = vcmp.lt.s32.totalorder %v1231, 700
        %vm1296 = vcmp.lt.s32.totalorder %v1232, 700
        %vm1297 = vcmp.lt.s32.totalorder %v1233, 700
        %vm1298 = vcmp.lt.s32.totalorder %v1234, 700
        %vm1299 = vcmp.lt.s32.totalorder %v1235, 700
        %vm1300 = vcmp.lt.s32.totalorder %v1236, 700
        %vm1301 = vcmp.lt.s32.totalorder %v1237, 700
        %vm1302 = vcmp.lt.s32.totalorder %v1238, 700
        %vm1303 = vcmp.lt.s32.totalorder %v1239, 700
        %vm1304 = vcmp.lt.s32.totalorder %v1240, 700
        %vm1305 = vcmp.lt.s32.totalorder %v1241, 700
        %vm1306 = vcmp.lt.s32.totalorder %v1242, 700
        %vm1307 = vcmp.lt.s32.totalorder %v1243, 700
        %vm1308 = vcmp.lt.s32.totalorder %v1244, 700
        %vm1309 = vcmp.lt.s32.totalorder %v1245, 700
        %vm1310 = vcmp.lt.s32.totalorder %v1246, 700
        %vm1311 = vcmp.lt.s32.totalorder %v1247, 700
        %vm1312 = vcmp.lt.s32.totalorder %v1248, 700
        %vm1313 = vcmp.lt.s32.totalorder %v1249, 700
        %vm1314 = vcmp.lt.s32.totalorder %v1250, 700
        %vm1315 = vcmp.lt.s32.totalorder %v1251, 700
        %vm1316 = vcmp.lt.s32.totalorder %v1252, 700
        %vm1317 = vcmp.lt.s32.totalorder %v1253, 700
        %vm1318 = vcmp.lt.s32.totalorder %v1254, 700
        %vm1319 = vcmp.lt.s32.totalorder %v1255, 700
        %vm1320 = vcmp.lt.s32.totalorder %v1256, 700
        %vm1321 = vcmp.lt.s32.totalorder %v1257, 700
        %vm1322 = vcmp.lt.s32.totalorder %v1258, 700
        %vm1323 = vcmp.lt.s32.totalorder %v1259, 700
        %vm1324 = vcmp.lt.s32.totalorder %v1260, 700
        %vm1325 = vcmp.lt.s32.totalorder %v1261, 700
        %vm1326 = vcmp.lt.s32.totalorder %v1262, 700
        %vm1327 = vcmp.lt.s32.totalorder %v1263, 700
        %vm1328 = vcmp.lt.s32.totalorder %v1264, 700
        %vm1329 = vcmp.lt.s32.totalorder %v1265, 700
        %vm1330 = vcmp.lt.s32.totalorder %v1266, 700
        %vm1331 = vcmp.lt.s32.totalorder %v1267, 700
        %vm1332 = vcmp.lt.s32.totalorder %v1268, 700
        %vm1333 = vcmp.lt.s32.totalorder %v1269, 700
        %vm1334 = vcmp.lt.s32.totalorder %v1270, 700
        %vm1335 = vcmp.lt.s32.totalorder %v1271, 700
        %vm1336 = vcmp.lt.s32.totalorder %v1272, 700
        %vm1337 = vcmp.lt.s32.totalorder %v1273, 700
        %vm1338 = vcmp.lt.s32.totalorder %v1274, 700
        %vm1339 = vcmp.lt.s32.totalorder %v1275, 700
        %vm1340 = vcmp.lt.s32.totalorder %v1276, 700
        %vm1341 = vcmp.lt.s32.totalorder %v1277, 700
        %vm1342 = vcmp.lt.s32.totalorder %v1278, 700
        %vm1343 = vcmp.lt.s32.totalorder %v1279, 700
        %vm1344 = vcmp.lt.s32.totalorder %v1280, 700
        %v1345 = vsel %vm1281, 1, 0
        %v1346 = vsel %vm1282, 1, 0
        %v1347 = vsel %vm1283, 1, 0
        %v1348 = vsel %vm1284, 1, 0
        %v1349 = vsel %vm1285, 1, 0
        %v1350 = vsel %vm1286, 1, 0
        %v1351 = vsel %vm1287, 1, 0
        %v1352 = vsel %vm1288, 1, 0
        %v1353 = vsel %vm1289, 1, 0
        %v1354 = vsel %vm1290, 1, 0
        %v1355 = vsel %vm1291, 1, 0
        %v1356 = vsel %vm1292, 1, 0
        %v1357 = vsel %vm1293, 1, 0
        %v1358 = vsel %vm1294, 1, 0
        %v1359 = vsel %vm1295, 1, 0
        %v1360 = vsel %vm1296, 1, 0
        %v1361 = vsel %vm1297, 1, 0
        %v1362 = vsel %vm1298, 1, 0
        %v1363 = vsel %vm1299, 1, 0
        %v1364 = vsel %vm1300, 1, 0
        %v1365 = vsel %vm1301, 1, 0
        %v1366 = vsel %vm1302, 1, 0
        %v1367 = vsel %vm1303, 1, 0
        %v1368 = vsel %vm1304, 1, 0
        %v1369 = vsel %vm1305, 1, 0
        %v1370 = vsel %vm1306, 1, 0
        %v1371 = vsel %vm1307, 1, 0
        %v1372 = vsel %vm1308, 1, 0
        %v1373 = vsel %vm1309, 1, 0
        %v1374 = vsel %vm1310, 1, 0
        %v1375 = vsel %vm1311, 1, 0
        %v1376 = vsel %vm1312, 1, 0
        %v1377 = vsel %vm1313, 1, 0
        %v1378 = vsel %vm1314, 1, 0
        %v1379 = vsel %vm1315, 1, 0
        %v1380 = vsel %vm1316, 1, 0
        %v1381 = vsel %vm1317, 1, 0
        %v1382 = vsel %vm1318, 1, 0
        %v1383 = vsel %vm1319, 1, 0
        %v1384 = vsel %vm1320, 1, 0
        %v1385 = vsel %vm1321, 1, 0
        %v1386 = vsel %vm1322, 1, 0
        %v1387 = vsel %vm1323, 1, 0
        %v1388 = vsel %vm1324, 1, 0
        %v1389 = vsel %vm1325, 1, 0
        %v1390 = vsel %vm1326, 1, 0
        %v1391 = vsel %vm1327, 1, 0
        %v1392 = vsel %vm1328, 1, 0
        %v1393 = vsel %vm1329, 1, 0
        %v1394 = vsel %vm1330, 1, 0
        %v1395 = vsel %vm1331, 1, 0
        %v1396 = vsel %vm1332, 1, 0
        %v1397 = vsel %vm1333, 1, 0
        %v1398 = vsel %vm1334, 1, 0
        %v1399 = vsel %vm1335, 1, 0
        %v1400 = vsel %vm1336, 1, 0
        %v1401 = vsel %vm1337, 1, 0
        %v1402 = vsel %vm1338, 1, 0
        %v1403 = vsel %vm1339, 1, 0
        %v1404 = vsel %vm1340, 1, 0
        %v1405 = vsel %vm1341, 1, 0
        %v1406 = vsel %vm1342, 1, 0
        %v1407 = vsel %vm1343, 1, 0
        %v1408 = vsel %vm1344, 1, 0
        %vm1409 = vcmp.eq.s32.totalorder %v1345, 1
        %vm1410 = vcmp.eq.s32.totalorder %v1346, 1
        %vm1411 = vcmp.eq.s32.totalorder %v1347, 1
        %vm1412 = vcmp.eq.s32.totalorder %v1348, 1
        %vm1413 = vcmp.eq.s32.totalorder %v1349, 1
        %vm1414 = vcmp.eq.s32.totalorder %v1350, 1
        %vm1415 = vcmp.eq.s32.totalorder %v1351, 1
        %vm1416 = vcmp.eq.s32.totalorder %v1352, 1
        %vm1417 = vcmp.eq.s32.totalorder %v1353, 1
        %vm1418 = vcmp.eq.s32.totalorder %v1354, 1
        %vm1419 = vcmp.eq.s32.totalorder %v1355, 1
        %vm1420 = vcmp.eq.s32.totalorder %v1356, 1
        %vm1421 = vcmp.eq.s32.totalorder %v1357, 1
        %vm1422 = vcmp.eq.s32.totalorder %v1358, 1
        %vm1423 = vcmp.eq.s32.totalorder %v1359, 1
        %vm1424 = vcmp.eq.s32.totalorder %v1360, 1
        %vm1425 = vcmp.eq.s32.totalorder %v1361, 1
        %vm1426 = vcmp.eq.s32.totalorder %v1362, 1
        %vm1427 = vcmp.eq.s32.totalorder %v1363, 1
        %vm1428 = vcmp.eq.s32.totalorder %v1364, 1
        %vm1429 = vcmp.eq.s32.totalorder %v1365, 1
        %vm1430 = vcmp.eq.s32.totalorder %v1366, 1
        %vm1431 = vcmp.eq.s32.totalorder %v1367, 1
        %vm1432 = vcmp.eq.s32.totalorder %v1368, 1
        %vm1433 = vcmp.eq.s32.totalorder %v1369, 1
        %vm1434 = vcmp.eq.s32.totalorder %v1370, 1
        %vm1435 = vcmp.eq.s32.totalorder %v1371, 1
        %vm1436 = vcmp.eq.s32.totalorder %v1372, 1
        %vm1437 = vcmp.eq.s32.totalorder %v1373, 1
        %vm1438 = vcmp.eq.s32.totalorder %v1374, 1
        %vm1439 = vcmp.eq.s32.totalorder %v1375, 1
        %vm1440 = vcmp.eq.s32.totalorder %v1376, 1
        %vm1441 = vcmp.eq.s32.totalorder %v1377, 1
        %vm1442 = vcmp.eq.s32.totalorder %v1378, 1
        %vm1443 = vcmp.eq.s32.totalorder %v1379, 1
        %vm1444 = vcmp.eq.s32.totalorder %v1380, 1
        %vm1445 = vcmp.eq.s32.totalorder %v1381, 1
        %vm1446 = vcmp.eq.s32.totalorder %v1382, 1
        %vm1447 = vcmp.eq.s32.totalorder %v1383, 1
        %vm1448 = vcmp.eq.s32.totalorder %v1384, 1
        %vm1449 = vcmp.eq.s32.totalorder %v1385, 1
        %vm1450 = vcmp.eq.s32.totalorder %v1386, 1
        %vm1451 = vcmp.eq.s32.totalorder %v1387, 1
        %vm1452 = vcmp.eq.s32.totalorder %v1388, 1
        %vm1453 = vcmp.eq.s32.totalorder %v1389, 1
        %vm1454 = vcmp.eq.s32.totalorder %v1390, 1
        %vm1455 = vcmp.eq.s32.totalorder %v1391, 1
        %vm1456 = vcmp.eq.s32.totalorder %v1392, 1
        %vm1457 = vcmp.eq.s32.totalorder %v1393, 1
        %vm1458 = vcmp.eq.s32.totalorder %v1394, 1
        %vm1459 = vcmp.eq.s32.totalorder %v1395, 1
        %vm1460 = vcmp.eq.s32.totalorder %v1396, 1
        %vm1461 = vcmp.eq.s32.totalorder %v1397, 1
        %vm1462 = vcmp.eq.s32.totalorder %v1398, 1
        %vm1463 = vcmp.eq.s32.totalorder %v1399, 1
        %vm1464 = vcmp.eq.s32.totalorder %v1400, 1
        %vm1465 = vcmp.eq.s32.totalorder %v1401, 1
        %vm1466 = vcmp.eq.s32.totalorder %v1402, 1
        %vm1467 = vcmp.eq.s32.totalorder %v1403, 1
        %vm1468 = vcmp.eq.s32.totalorder %v1404, 1
        %vm1469 = vcmp.eq.s32.totalorder %v1405, 1
        %vm1470 = vcmp.eq.s32.totalorder %v1406, 1
        %vm1471 = vcmp.eq.s32.totalorder %v1407, 1
        %vm1472 = vcmp.eq.s32.totalorder %v1408, 1
        %v1473 = vsel %vm1409, %v1087, 0.0
        %v1474 = vsel %vm1410, %v1088, 0.0
        %v1475 = vsel %vm1411, %v1089, 0.0
        %v1476 = vsel %vm1412, %v1090, 0.0
        %v1477 = vsel %vm1413, %v1091, 0.0
        %v1478 = vsel %vm1414, %v1092, 0.0
        %v1479 = vsel %vm1415, %v1093, 0.0
        %v1480 = vsel %vm1416, %v1094, 0.0
        %v1481 = vsel %vm1417, %v1095, 0.0
        %v1482 = vsel %vm1418, %v1096, 0.0
        %v1483 = vsel %vm1419, %v1097, 0.0
        %v1484 = vsel %vm1420, %v1098, 0.0
        %v1485 = vsel %vm1421, %v1099, 0.0
        %v1486 = vsel %vm1422, %v1100, 0.0
        %v1487 = vsel %vm1423, %v1101, 0.0
        %v1488 = vsel %vm1424, %v1102, 0.0
        %v1489 = vsel %vm1425, %v1103, 0.0
        %v1490 = vsel %vm1426, %v1104, 0.0
        %v1491 = vsel %vm1427, %v1105, 0.0
        %v1492 = vsel %vm1428, %v1106, 0.0
        %v1493 = vsel %vm1429, %v1107, 0.0
        %v1494 = vsel %vm1430, %v1108, 0.0
        %v1495 = vsel %vm1431, %v1109, 0.0
        %v1496 = vsel %vm1432, %v1110, 0.0
        %v1497 = vsel %vm1433, %v1111, 0.0
        %v1498 = vsel %vm1434, %v1112, 0.0
        %v1499 = vsel %vm1435, %v1113, 0.0
        %v1500 = vsel %vm1436, %v1114, 0.0
        %v1501 = vsel %vm1437, %v1115, 0.0
        %v1502 = vsel %vm1438, %v1116, 0.0
        %v1503 = vsel %vm1439, %v1117, 0.0
        %v1504 = vsel %vm1440, %v1118, 0.0
        %v1505 = vsel %vm1441, %v1119, 0.0
        %v1506 = vsel %vm1442, %v1120, 0.0
        %v1507 = vsel %vm1443, %v1121, 0.0
        %v1508 = vsel %vm1444, %v1122, 0.0
        %v1509 = vsel %vm1445, %v1123, 0.0
        %v1510 = vsel %vm1446, %v1124, 0.0
        %v1511 = vsel %vm1447, %v1125, 0.0
        %v1512 = vsel %vm1448, %v1126, 0.0
        %v1513 = vsel %vm1449, %v1127, 0.0
        %v1514 = vsel %vm1450, %v1128, 0.0
        %v1515 = vsel %vm1451, %v1129, 0.0
        %v1516 = vsel %vm1452, %v1130, 0.0
        %v1517 = vsel %vm1453, %v1131, 0.0
        %v1518 = vsel %vm1454, %v1132, 0.0
        %v1519 = vsel %vm1455, %v1133, 0.0
        %v1520 = vsel %vm1456, %v1134, 0.0
        %v1521 = vsel %vm1457, %v1135, 0.0
        %v1522 = vsel %vm1458, %v1136, 0.0
        %v1523 = vsel %vm1459, %v1137, 0.0
        %v1524 = vsel %vm1460, %v1138, 0.0
        %v1525 = vsel %vm1461, %v1139, 0.0
        %v1526 = vsel %vm1462, %v1140, 0.0
        %v1527 = vsel %vm1463, %v1141, 0.0
        %v1528 = vsel %vm1464, %v1142, 0.0
        %v1529 = vsel %vm1465, %v1143, 0.0
        %v1530 = vsel %vm1466, %v1144, 0.0
        %v1531 = vsel %vm1467, %v1145, 0.0
        %v1532 = vsel %vm1468, %v1146, 0.0
        %v1533 = vsel %vm1469, %v1147, 0.0
        %v1534 = vsel %vm1470, %v1148, 0.0
        %v1535 = vsel %vm1471, %v1149, 0.0
        %v1536 = vsel %vm1472, %v1150, 0.0
        %v1537 = vpack.c.bf16 %v1474, %v1473
        %v1538 = vpack.c.bf16 %v1476, %v1475
        %v1539 = vpack.c.bf16 %v1478, %v1477
        %v1540 = vpack.c.bf16 %v1480, %v1479
        %v1541 = vpack.c.bf16 %v1482, %v1481
        %v1542 = vpack.c.bf16 %v1484, %v1483
        %v1543 = vpack.c.bf16 %v1486, %v1485
        %v1544 = vpack.c.bf16 %v1488, %v1487
        %v1545 = vpack.c.bf16 %v1490, %v1489
        %v1546 = vpack.c.bf16 %v1492, %v1491
        %v1547 = vpack.c.bf16 %v1494, %v1493
        %v1548 = vpack.c.bf16 %v1496, %v1495
        %v1549 = vpack.c.bf16 %v1498, %v1497
        %v1550 = vpack.c.bf16 %v1500, %v1499
        %v1551 = vpack.c.bf16 %v1502, %v1501
        %v1552 = vpack.c.bf16 %v1504, %v1503
        %v1553 = vpack.c.bf16 %v1506, %v1505
        %v1554 = vpack.c.bf16 %v1508, %v1507
        %v1555 = vpack.c.bf16 %v1510, %v1509
        %v1556 = vpack.c.bf16 %v1512, %v1511
        %v1557 = vpack.c.bf16 %v1514, %v1513
        %v1558 = vpack.c.bf16 %v1516, %v1515
        %v1559 = vpack.c.bf16 %v1518, %v1517
        %v1560 = vpack.c.bf16 %v1520, %v1519
        %v1561 = vpack.c.bf16 %v1522, %v1521
        %v1562 = vpack.c.bf16 %v1524, %v1523
        %v1563 = vpack.c.bf16 %v1526, %v1525
        %v1564 = vpack.c.bf16 %v1528, %v1527
        %v1565 = vpack.c.bf16 %v1530, %v1529
        %v1566 = vpack.c.bf16 %v1532, %v1531
        %v1567 = vpack.c.bf16 %v1534, %v1533
        %v1568 = vpack.c.bf16 %v1536, %v1535
        %v1569 = vld [vmem:[#allocation10] sm:$0xff]
        %v1570 = vld [vmem:[#allocation10 + $0x8] sm:$0xff]
        %v1571 = vld [vmem:[#allocation10 + $0x10] sm:$0xff]
        %v1572 = vld [vmem:[#allocation10 + $0x18] sm:$0xff]
        %v1573 = vld [vmem:[#allocation10 + $0x20] sm:$0xff]
        %v1574 = vld [vmem:[#allocation10 + $0x28] sm:$0xff]
        %v1575 = vld [vmem:[#allocation10 + $0x30] sm:$0xff]
        %v1576 = vld [vmem:[#allocation10 + $0x38] sm:$0xff]
        %v1577 = vld [vmem:[#allocation10 + $0x40] sm:$0xff]
        %v1578 = vld [vmem:[#allocation10 + $0x48] sm:$0xff]
        %v1579 = vld [vmem:[#allocation10 + $0x50] sm:$0xff]
        %v1580 = vld [vmem:[#allocation10 + $0x58] sm:$0xff]
        %v1581 = vld [vmem:[#allocation10 + $0x60] sm:$0xff]
        %v1582 = vld [vmem:[#allocation10 + $0x68] sm:$0xff]
        %v1583 = vld [vmem:[#allocation10 + $0x70] sm:$0xff]
        %v1584 = vld [vmem:[#allocation10 + $0x78] sm:$0xff]
        %v1585 = vld [vmem:[%s3] sm:$0x3]
        %v1587 = vperm.slane %v1585, 0
        %v1588 = vperm.slane %v1585, 1
        %v1607 = vunpack.c.l.b16 %v1569
        %v1608 = vunpack.c.h.b16 %v1569
        %v1609 = vunpack.c.l.b16 %v1570
        %v1610 = vunpack.c.h.b16 %v1570
        %v1611 = vunpack.c.l.b16 %v1571
        %v1612 = vunpack.c.h.b16 %v1571
        %v1613 = vunpack.c.l.b16 %v1572
        %v1614 = vunpack.c.h.b16 %v1572
        %v1615 = vunpack.c.l.b16 %v1573
        %v1616 = vunpack.c.h.b16 %v1573
        %v1617 = vunpack.c.l.b16 %v1574
        %v1618 = vunpack.c.h.b16 %v1574
        %v1619 = vunpack.c.l.b16 %v1575
        %v1620 = vunpack.c.h.b16 %v1575
        %v1621 = vunpack.c.l.b16 %v1576
        %v1622 = vunpack.c.h.b16 %v1576
        %v1623 = vunpack.c.l.b16 %v1577
        %v1624 = vunpack.c.h.b16 %v1577
        %v1625 = vunpack.c.l.b16 %v1578
        %v1626 = vunpack.c.h.b16 %v1578
        %v1627 = vunpack.c.l.b16 %v1579
        %v1628 = vunpack.c.h.b16 %v1579
        %v1629 = vunpack.c.l.b16 %v1580
        %v1630 = vunpack.c.h.b16 %v1580
        %v1631 = vunpack.c.l.b16 %v1581
        %v1632 = vunpack.c.h.b16 %v1581
        %v1633 = vunpack.c.l.b16 %v1582
        %v1634 = vunpack.c.h.b16 %v1582
        %v1635 = vunpack.c.l.b16 %v1583
        %v1636 = vunpack.c.h.b16 %v1583
        %v1637 = vunpack.c.l.b16 %v1584
        %v1638 = vunpack.c.h.b16 %v1584
        %v1639 = vpack.c.b16 %v1609, %v1607
        %v1640 = vpack.c.b16 %v1610, %v1608
        %v1641 = vpack.c.b16 %v1613, %v1611
        %v1642 = vpack.c.b16 %v1614, %v1612
        %v1643 = vpack.c.b16 %v1617, %v1615
        %v1644 = vpack.c.b16 %v1618, %v1616
        %v1645 = vpack.c.b16 %v1621, %v1619
        %v1646 = vpack.c.b16 %v1622, %v1620
        %v1647 = vpack.c.b16 %v1625, %v1623
        %v1648 = vpack.c.b16 %v1626, %v1624
        %v1649 = vpack.c.b16 %v1629, %v1627
        %v1650 = vpack.c.b16 %v1630, %v1628
        %v1651 = vpack.c.b16 %v1633, %v1631
        %v1652 = vpack.c.b16 %v1634, %v1632
        %v1653 = vpack.c.b16 %v1637, %v1635
        %v1654 = vpack.c.b16 %v1638, %v1636
        %1671 = vmatpush.bf16.msra.mxu0 %v1653
        %1672 = vmatpush.bf16.msra.mxu0 %v1651
        %1673 = vmatpush.bf16.msra.mxu0 %v1649
        %1674 = vmatpush.bf16.msra.mxu0 %v1647
        %1675 = vmatpush.bf16.msra.mxu0 %v1645
        %1676 = vmatpush.bf16.msra.mxu0 %v1643
        %1677 = vmatpush.bf16.msra.mxu0 %v1641
        %1678 = vmatpush.bf16.msra.mxu0 %v1639
        %1679 = vmatmul.bf16.gmra.mxu0 %v1537
        %v1680 = vpop.f32.mrf.mxu0
        %v1681 = vadd.f32 %v1587, %v1680
        %v1682 = vpop.f32.mrf.mxu0
        %v1683 = vadd.f32 %v1587, %v1682
        %1684 = vmatmul.bf16.gmra.mxu0 %v1538
        %v1685 = vpop.f32.mrf.mxu0
        %v1686 = vadd.f32 %v1587, %v1685
        %v1687 = vpop.f32.mrf.mxu0
        %v1688 = vadd.f32 %v1587, %v1687
        %1689 = vmatmul.bf16.gmra.mxu0 %v1539
        %v1690 = vpop.f32.mrf.mxu0
        %v1691 = vadd.f32 %v1587, %v1690
        %v1692 = vpop.f32.mrf.mxu0
        %v1693 = vadd.f32 %v1587, %v1692
        %1694 = vmatmul.bf16.gmra.mxu0 %v1540
        %v1695 = vpop.f32.mrf.mxu0
        %v1696 = vadd.f32 %v1587, %v1695
        %v1697 = vpop.f32.mrf.mxu0
        %v1698 = vadd.f32 %v1587, %v1697
        %1699 = vmatmul.bf16.gmra.mxu0 %v1541
        %v1700 = vpop.f32.mrf.mxu0
        %v1701 = vadd.f32 %v1587, %v1700
        %v1702 = vpop.f32.mrf.mxu0
        %v1703 = vadd.f32 %v1587, %v1702
        %1704 = vmatmul.bf16.gmra.mxu0 %v1542
        %v1705 = vpop.f32.mrf.mxu0
        %v1706 = vadd.f32 %v1587, %v1705
        %v1707 = vpop.f32.mrf.mxu0
        %v1708 = vadd.f32 %v1587, %v1707
        %1709 = vmatmul.bf16.gmra.mxu0 %v1543
        %v1710 = vpop.f32.mrf.mxu0
        %v1711 = vadd.f32 %v1587, %v1710
        %v1712 = vpop.f32.mrf.mxu0
        %v1713 = vadd.f32 %v1587, %v1712
        %1714 = vmatmul.bf16.gmra.mxu0 %v1544
        %v1715 = vpop.f32.mrf.mxu0
        %v1716 = vadd.f32 %v1587, %v1715
        %v1717 = vpop.f32.mrf.mxu0
        %v1718 = vadd.f32 %v1587, %v1717
        %1719 = vmatmul.bf16.gmra.mxu0 %v1545
        %v1720 = vpop.f32.mrf.mxu0
        %v1721 = vadd.f32 %v1587, %v1720
        %v1722 = vpop.f32.mrf.mxu0
        %v1723 = vadd.f32 %v1587, %v1722
        %1724 = vmatmul.bf16.gmra.mxu0 %v1546
        %v1725 = vpop.f32.mrf.mxu0
        %v1726 = vadd.f32 %v1587, %v1725
        %v1727 = vpop.f32.mrf.mxu0
        %v1728 = vadd.f32 %v1587, %v1727
        %1729 = vmatmul.bf16.gmra.mxu0 %v1547
        %v1730 = vpop.f32.mrf.mxu0
        %v1731 = vadd.f32 %v1587, %v1730
        %v1732 = vpop.f32.mrf.mxu0
        %v1733 = vadd.f32 %v1587, %v1732
        %1734 = vmatmul.bf16.gmra.mxu0 %v1548
        %v1735 = vpop.f32.mrf.mxu0
        %v1736 = vadd.f32 %v1587, %v1735
        %v1737 = vpop.f32.mrf.mxu0
        %v1738 = vadd.f32 %v1587, %v1737
        %1739 = vmatmul.bf16.gmra.mxu0 %v1549
        %v1740 = vpop.f32.mrf.mxu0
        %v1741 = vadd.f32 %v1587, %v1740
        %v1742 = vpop.f32.mrf.mxu0
        %v1743 = vadd.f32 %v1587, %v1742
        %1744 = vmatmul.bf16.gmra.mxu0 %v1550
        %v1745 = vpop.f32.mrf.mxu0
        %v1746 = vadd.f32 %v1587, %v1745
        %v1747 = vpop.f32.mrf.mxu0
        %v1748 = vadd.f32 %v1587, %v1747
        %1749 = vmatmul.bf16.gmra.mxu0 %v1551
        %v1750 = vpop.f32.mrf.mxu0
        %v1751 = vadd.f32 %v1587, %v1750
        %v1752 = vpop.f32.mrf.mxu0
        %v1753 = vadd.f32 %v1587, %v1752
        %1754 = vmatmul.bf16.gmra.mxu0 %v1552
        %v1755 = vpop.f32.mrf.mxu0
        %v1756 = vadd.f32 %v1587, %v1755
        %v1757 = vpop.f32.mrf.mxu0
        %v1758 = vadd.f32 %v1587, %v1757
        %1759 = vmatmul.bf16.gmra.mxu0 %v1553
        %v1760 = vpop.f32.mrf.mxu0
        %v1761 = vadd.f32 %v1587, %v1760
        %v1762 = vpop.f32.mrf.mxu0
        %v1763 = vadd.f32 %v1587, %v1762
        %1764 = vmatmul.bf16.gmra.mxu0 %v1554
        %v1765 = vpop.f32.mrf.mxu0
        %v1766 = vadd.f32 %v1587, %v1765
        %v1767 = vpop.f32.mrf.mxu0
        %v1768 = vadd.f32 %v1587, %v1767
        %1769 = vmatmul.bf16.gmra.mxu0 %v1555
        %v1770 = vpop.f32.mrf.mxu0
        %v1771 = vadd.f32 %v1587, %v1770
        %v1772 = vpop.f32.mrf.mxu0
        %v1773 = vadd.f32 %v1587, %v1772
        %1774 = vmatmul.bf16.gmra.mxu0 %v1556
        %v1775 = vpop.f32.mrf.mxu0
        %v1776 = vadd.f32 %v1587, %v1775
        %v1777 = vpop.f32.mrf.mxu0
        %v1778 = vadd.f32 %v1587, %v1777
        %1779 = vmatmul.bf16.gmra.mxu0 %v1557
        %v1780 = vpop.f32.mrf.mxu0
        %v1781 = vadd.f32 %v1587, %v1780
        %v1782 = vpop.f32.mrf.mxu0
        %v1783 = vadd.f32 %v1587, %v1782
        %1784 = vmatmul.bf16.gmra.mxu0 %v1558
        %v1785 = vpop.f32.mrf.mxu0
        %v1786 = vadd.f32 %v1587, %v1785
        %v1787 = vpop.f32.mrf.mxu0
        %v1788 = vadd.f32 %v1587, %v1787
        %1789 = vmatmul.bf16.gmra.mxu0 %v1559
        %v1790 = vpop.f32.mrf.mxu0
        %v1791 = vadd.f32 %v1587, %v1790
        %v1792 = vpop.f32.mrf.mxu0
        %v1793 = vadd.f32 %v1587, %v1792
        %1794 = vmatmul.bf16.gmra.mxu0 %v1560
        %v1795 = vpop.f32.mrf.mxu0
        %v1796 = vadd.f32 %v1587, %v1795
        %v1797 = vpop.f32.mrf.mxu0
        %v1798 = vadd.f32 %v1587, %v1797
        %1799 = vmatmul.bf16.gmra.mxu0 %v1561
        %v1800 = vpop.f32.mrf.mxu0
        %v1801 = vadd.f32 %v1587, %v1800
        %v1802 = vpop.f32.mrf.mxu0
        %v1803 = vadd.f32 %v1587, %v1802
        %1804 = vmatmul.bf16.gmra.mxu0 %v1562
        %v1805 = vpop.f32.mrf.mxu0
        %v1806 = vadd.f32 %v1587, %v1805
        %v1807 = vpop.f32.mrf.mxu0
        %v1808 = vadd.f32 %v1587, %v1807
        %1809 = vmatmul.bf16.gmra.mxu0 %v1563
        %v1810 = vpop.f32.mrf.mxu0
        %v1811 = vadd.f32 %v1587, %v1810
        %v1812 = vpop.f32.mrf.mxu0
        %v1813 = vadd.f32 %v1587, %v1812
        %1814 = vmatmul.bf16.gmra.mxu0 %v1564
        %v1815 = vpop.f32.mrf.mxu0
        %v1816 = vadd.f32 %v1587, %v1815
        %v1817 = vpop.f32.mrf.mxu0
        %v1818 = vadd.f32 %v1587, %v1817
        %1819 = vmatmul.bf16.gmra.mxu0 %v1565
        %v1820 = vpop.f32.mrf.mxu0
        %v1821 = vadd.f32 %v1587, %v1820
        %v1822 = vpop.f32.mrf.mxu0
        %v1823 = vadd.f32 %v1587, %v1822
        %1824 = vmatmul.bf16.gmra.mxu0 %v1566
        %v1825 = vpop.f32.mrf.mxu0
        %v1826 = vadd.f32 %v1587, %v1825
        %v1827 = vpop.f32.mrf.mxu0
        %v1828 = vadd.f32 %v1587, %v1827
        %1829 = vmatmul.bf16.gmra.mxu0 %v1567
        %v1830 = vpop.f32.mrf.mxu0
        %v1831 = vadd.f32 %v1587, %v1830
        %v1832 = vpop.f32.mrf.mxu0
        %v1833 = vadd.f32 %v1587, %v1832
        %1834 = vmatmul.bf16.gmra.mxu0 %v1568
        %v1835 = vpop.f32.mrf.mxu0
        %v1836 = vadd.f32 %v1587, %v1835
        %v1837 = vpop.f32.mrf.mxu0
        %v1838 = vadd.f32 %v1587, %v1837
        %1839 = vdwg.mxu0
        %1840 = vmatpush.bf16.msra.mxu0 %v1654
        %1841 = vmatpush.bf16.msra.mxu0 %v1652
        %1842 = vmatpush.bf16.msra.mxu0 %v1650
        %1843 = vmatpush.bf16.msra.mxu0 %v1648
        %1844 = vmatpush.bf16.msra.mxu0 %v1646
        %1845 = vmatpush.bf16.msra.mxu0 %v1644
        %1846 = vmatpush.bf16.msra.mxu0 %v1642
        %1847 = vmatpush.bf16.msra.mxu0 %v1640
        %1848 = vmatmul.bf16.gmra.mxu0 %v1537
        %v1849 = vpop.f32.mrf.mxu0
        %v1850 = vadd.f32 %v1588, %v1849
        %v1851 = vpop.f32.mrf.mxu0
        %v1852 = vadd.f32 %v1588, %v1851
        %1853 = vmatmul.bf16.gmra.mxu0 %v1538
        %v1854 = vpop.f32.mrf.mxu0
        %v1855 = vadd.f32 %v1588, %v1854
        %v1856 = vpop.f32.mrf.mxu0
        %v1857 = vadd.f32 %v1588, %v1856
        %1858 = vmatmul.bf16.gmra.mxu0 %v1539
        %v1859 = vpop.f32.mrf.mxu0
        %v1860 = vadd.f32 %v1588, %v1859
        %v1861 = vpop.f32.mrf.mxu0
        %v1862 = vadd.f32 %v1588, %v1861
        %1863 = vmatmul.bf16.gmra.mxu0 %v1540
        %v1864 = vpop.f32.mrf.mxu0
        %v1865 = vadd.f32 %v1588, %v1864
        %v1866 = vpop.f32.mrf.mxu0
        %v1867 = vadd.f32 %v1588, %v1866
        %1868 = vmatmul.bf16.gmra.mxu0 %v1541
        %v1869 = vpop.f32.mrf.mxu0
        %v1870 = vadd.f32 %v1588, %v1869
        %v1871 = vpop.f32.mrf.mxu0
        %v1872 = vadd.f32 %v1588, %v1871
        %1873 = vmatmul.bf16.gmra.mxu0 %v1542
        %v1874 = vpop.f32.mrf.mxu0
        %v1875 = vadd.f32 %v1588, %v1874
        %v1876 = vpop.f32.mrf.mxu0
        %v1877 = vadd.f32 %v1588, %v1876
        %1878 = vmatmul.bf16.gmra.mxu0 %v1543
        %v1879 = vpop.f32.mrf.mxu0
        %v1880 = vadd.f32 %v1588, %v1879
        %v1881 = vpop.f32.mrf.mxu0
        %v1882 = vadd.f32 %v1588, %v1881
        %1883 = vmatmul.bf16.gmra.mxu0 %v1544
        %v1884 = vpop.f32.mrf.mxu0
        %v1885 = vadd.f32 %v1588, %v1884
        %v1886 = vpop.f32.mrf.mxu0
        %v1887 = vadd.f32 %v1588, %v1886
        %1888 = vmatmul.bf16.gmra.mxu0 %v1545
        %v1889 = vpop.f32.mrf.mxu0
        %v1890 = vadd.f32 %v1588, %v1889
        %v1891 = vpop.f32.mrf.mxu0
        %v1892 = vadd.f32 %v1588, %v1891
        %1893 = vmatmul.bf16.gmra.mxu0 %v1546
        %v1894 = vpop.f32.mrf.mxu0
        %v1895 = vadd.f32 %v1588, %v1894
        %v1896 = vpop.f32.mrf.mxu0
        %v1897 = vadd.f32 %v1588, %v1896
        %1898 = vmatmul.bf16.gmra.mxu0 %v1547
        %v1899 = vpop.f32.mrf.mxu0
        %v1900 = vadd.f32 %v1588, %v1899
        %v1901 = vpop.f32.mrf.mxu0
        %v1902 = vadd.f32 %v1588, %v1901
        %1903 = vmatmul.bf16.gmra.mxu0 %v1548
        %v1904 = vpop.f32.mrf.mxu0
        %v1905 = vadd.f32 %v1588, %v1904
        %v1906 = vpop.f32.mrf.mxu0
        %v1907 = vadd.f32 %v1588, %v1906
        %1908 = vmatmul.bf16.gmra.mxu0 %v1549
        %v1909 = vpop.f32.mrf.mxu0
        %v1910 = vadd.f32 %v1588, %v1909
        %v1911 = vpop.f32.mrf.mxu0
        %v1912 = vadd.f32 %v1588, %v1911
        %1913 = vmatmul.bf16.gmra.mxu0 %v1550
        %v1914 = vpop.f32.mrf.mxu0
        %v1915 = vadd.f32 %v1588, %v1914
        %v1916 = vpop.f32.mrf.mxu0
        %v1917 = vadd.f32 %v1588, %v1916
        %1918 = vmatmul.bf16.gmra.mxu0 %v1551
        %v1919 = vpop.f32.mrf.mxu0
        %v1920 = vadd.f32 %v1588, %v1919
        %v1921 = vpop.f32.mrf.mxu0
        %v1922 = vadd.f32 %v1588, %v1921
        %1923 = vmatmul.bf16.gmra.mxu0 %v1552
        %v1924 = vpop.f32.mrf.mxu0
        %v1925 = vadd.f32 %v1588, %v1924
        %v1926 = vpop.f32.mrf.mxu0
        %v1927 = vadd.f32 %v1588, %v1926
        %1928 = vmatmul.bf16.gmra.mxu0 %v1553
        %v1929 = vpop.f32.mrf.mxu0
        %v1930 = vadd.f32 %v1588, %v1929
        %v1931 = vpop.f32.mrf.mxu0
        %v1932 = vadd.f32 %v1588, %v1931
        %1933 = vmatmul.bf16.gmra.mxu0 %v1554
        %v1934 = vpop.f32.mrf.mxu0
        %v1935 = vadd.f32 %v1588, %v1934
        %v1936 = vpop.f32.mrf.mxu0
        %v1937 = vadd.f32 %v1588, %v1936
        %1938 = vmatmul.bf16.gmra.mxu0 %v1555
        %v1939 = vpop.f32.mrf.mxu0
        %v1940 = vadd.f32 %v1588, %v1939
        %v1941 = vpop.f32.mrf.mxu0
        %v1942 = vadd.f32 %v1588, %v1941
        %1943 = vmatmul.bf16.gmra.mxu0 %v1556
        %v1944 = vpop.f32.mrf.mxu0
        %v1945 = vadd.f32 %v1588, %v1944
        %v1946 = vpop.f32.mrf.mxu0
        %v1947 = vadd.f32 %v1588, %v1946
        %1948 = vmatmul.bf16.gmra.mxu0 %v1557
        %v1949 = vpop.f32.mrf.mxu0
        %v1950 = vadd.f32 %v1588, %v1949
        %v1951 = vpop.f32.mrf.mxu0
        %v1952 = vadd.f32 %v1588, %v1951
        %1953 = vmatmul.bf16.gmra.mxu0 %v1558
        %v1954 = vpop.f32.mrf.mxu0
        %v1955 = vadd.f32 %v1588, %v1954
        %v1956 = vpop.f32.mrf.mxu0
        %v1957 = vadd.f32 %v1588, %v1956
        %1958 = vmatmul.bf16.gmra.mxu0 %v1559
        %v1959 = vpop.f32.mrf.mxu0
        %v1960 = vadd.f32 %v1588, %v1959
        %v1961 = vpop.f32.mrf.mxu0
        %v1962 = vadd.f32 %v1588, %v1961
        %1963 = vmatmul.bf16.gmra.mxu0 %v1560
        %v1964 = vpop.f32.mrf.mxu0
        %v1965 = vadd.f32 %v1588, %v1964
        %v1966 = vpop.f32.mrf.mxu0
        %v1967 = vadd.f32 %v1588, %v1966
        %1968 = vmatmul.bf16.gmra.mxu0 %v1561
        %v1969 = vpop.f32.mrf.mxu0
        %v1970 = vadd.f32 %v1588, %v1969
        %v1971 = vpop.f32.mrf.mxu0
        %v1972 = vadd.f32 %v1588, %v1971
        %1973 = vmatmul.bf16.gmra.mxu0 %v1562
        %v1974 = vpop.f32.mrf.mxu0
        %v1975 = vadd.f32 %v1588, %v1974
        %v1976 = vpop.f32.mrf.mxu0
        %v1977 = vadd.f32 %v1588, %v1976
        %1978 = vmatmul.bf16.gmra.mxu0 %v1563
        %v1979 = vpop.f32.mrf.mxu0
        %v1980 = vadd.f32 %v1588, %v1979
        %v1981 = vpop.f32.mrf.mxu0
        %v1982 = vadd.f32 %v1588, %v1981
        %1983 = vmatmul.bf16.gmra.mxu0 %v1564
        %v1984 = vpop.f32.mrf.mxu0
        %v1985 = vadd.f32 %v1588, %v1984
        %v1986 = vpop.f32.mrf.mxu0
        %v1987 = vadd.f32 %v1588, %v1986
        %1988 = vmatmul.bf16.gmra.mxu0 %v1565
        %v1989 = vpop.f32.mrf.mxu0
        %v1990 = vadd.f32 %v1588, %v1989
        %v1991 = vpop.f32.mrf.mxu0
        %v1992 = vadd.f32 %v1588, %v1991
        %1993 = vmatmul.bf16.gmra.mxu0 %v1566
        %v1994 = vpop.f32.mrf.mxu0
        %v1995 = vadd.f32 %v1588, %v1994
        %v1996 = vpop.f32.mrf.mxu0
        %v1997 = vadd.f32 %v1588, %v1996
        %1998 = vmatmul.bf16.gmra.mxu0 %v1567
        %v1999 = vpop.f32.mrf.mxu0
        %v2000 = vadd.f32 %v1588, %v1999
        %v2001 = vpop.f32.mrf.mxu0
        %v2002 = vadd.f32 %v1588, %v2001
        %2003 = vmatmul.bf16.gmra.mxu0 %v1568
        %v2004 = vpop.f32.mrf.mxu0
        %v2005 = vadd.f32 %v1588, %v2004
        %v2006 = vpop.f32.mrf.mxu0
        %v2007 = vadd.f32 %v1588, %v2006
        %2008 = vdwg.mxu0
        %v2009 = vtanh.pop %v1681
        %v2010 = vtanh.pop %v1683
        %v2011 = vtanh.pop %v1686
        %v2012 = vtanh.pop %v1688
        %v2013 = vtanh.pop %v1691
        %v2014 = vtanh.pop %v1693
        %v2015 = vtanh.pop %v1696
        %v2016 = vtanh.pop %v1698
        %v2017 = vtanh.pop %v1701
        %v2018 = vtanh.pop %v1703
        %v2019 = vtanh.pop %v1706
        %v2020 = vtanh.pop %v1708
        %v2021 = vtanh.pop %v1711
        %v2022 = vtanh.pop %v1713
        %v2023 = vtanh.pop %v1716
        %v2024 = vtanh.pop %v1718
        %v2025 = vtanh.pop %v1721
        %v2026 = vtanh.pop %v1723
        %v2027 = vtanh.pop %v1726
        %v2028 = vtanh.pop %v1728
        %v2029 = vtanh.pop %v1731
        %v2030 = vtanh.pop %v1733
        %v2031 = vtanh.pop %v1736
        %v2032 = vtanh.pop %v1738
        %v2033 = vtanh.pop %v1741
        %v2034 = vtanh.pop %v1743
        %v2035 = vtanh.pop %v1746
        %v2036 = vtanh.pop %v1748
        %v2037 = vtanh.pop %v1751
        %v2038 = vtanh.pop %v1753
        %v2039 = vtanh.pop %v1756
        %v2040 = vtanh.pop %v1758
        %v2041 = vtanh.pop %v1761
        %v2042 = vtanh.pop %v1763
        %v2043 = vtanh.pop %v1766
        %v2044 = vtanh.pop %v1768
        %v2045 = vtanh.pop %v1771
        %v2046 = vtanh.pop %v1773
        %v2047 = vtanh.pop %v1776
        %v2048 = vtanh.pop %v1778
        %v2049 = vtanh.pop %v1781
        %v2050 = vtanh.pop %v1783
        %v2051 = vtanh.pop %v1786
        %v2052 = vtanh.pop %v1788
        %v2053 = vtanh.pop %v1791
        %v2054 = vtanh.pop %v1793
        %v2055 = vtanh.pop %v1796
        %v2056 = vtanh.pop %v1798
        %v2057 = vtanh.pop %v1801
        %v2058 = vtanh.pop %v1803
        %v2059 = vtanh.pop %v1806
        %v2060 = vtanh.pop %v1808
        %v2061 = vtanh.pop %v1811
        %v2062 = vtanh.pop %v1813
        %v2063 = vtanh.pop %v1816
        %v2064 = vtanh.pop %v1818
        %v2065 = vtanh.pop %v1821
        %v2066 = vtanh.pop %v1823
        %v2067 = vtanh.pop %v1826
        %v2068 = vtanh.pop %v1828
        %v2069 = vtanh.pop %v1831
        %v2070 = vtanh.pop %v1833
        %v2071 = vtanh.pop %v1836
        %v2072 = vtanh.pop %v1838
        %v2073 = vxor.u32 %v1850, 2147483648
        %v2074 = vxor.u32 %v1852, 2147483648
        %v2075 = vxor.u32 %v1855, 2147483648
        %v2076 = vxor.u32 %v1857, 2147483648
        %v2077 = vxor.u32 %v1860, 2147483648
        %v2078 = vxor.u32 %v1862, 2147483648
        %v2079 = vxor.u32 %v1865, 2147483648
        %v2080 = vxor.u32 %v1867, 2147483648
        %v2081 = vxor.u32 %v1870, 2147483648
        %v2082 = vxor.u32 %v1872, 2147483648
        %v2083 = vxor.u32 %v1875, 2147483648
        %v2084 = vxor.u32 %v1877, 2147483648
        %v2085 = vxor.u32 %v1880, 2147483648
        %v2086 = vxor.u32 %v1882, 2147483648
        %v2087 = vxor.u32 %v1885, 2147483648
        %v2088 = vxor.u32 %v1887, 2147483648
        %v2089 = vxor.u32 %v1890, 2147483648
        %v2090 = vxor.u32 %v1892, 2147483648
        %v2091 = vxor.u32 %v1895, 2147483648
        %v2092 = vxor.u32 %v1897, 2147483648
        %v2093 = vxor.u32 %v1900, 2147483648
        %v2094 = vxor.u32 %v1902, 2147483648
        %v2095 = vxor.u32 %v1905, 2147483648
        %v2096 = vxor.u32 %v1907, 2147483648
        %v2097 = vxor.u32 %v1910, 2147483648
        %v2098 = vxor.u32 %v1912, 2147483648
        %v2099 = vxor.u32 %v1915, 2147483648
        %v2100 = vxor.u32 %v1917, 2147483648
        %v2101 = vxor.u32 %v1920, 2147483648
        %v2102 = vxor.u32 %v1922, 2147483648
        %v2103 = vxor.u32 %v1925, 2147483648
        %v2104 = vxor.u32 %v1927, 2147483648
        %v2105 = vxor.u32 %v1930, 2147483648
        %v2106 = vxor.u32 %v1932, 2147483648
        %v2107 = vxor.u32 %v1935, 2147483648
        %v2108 = vxor.u32 %v1937, 2147483648
        %v2109 = vxor.u32 %v1940, 2147483648
        %v2110 = vxor.u32 %v1942, 2147483648
        %v2111 = vxor.u32 %v1945, 2147483648
        %v2112 = vxor.u32 %v1947, 2147483648
        %v2113 = vxor.u32 %v1950, 2147483648
        %v2114 = vxor.u32 %v1952, 2147483648
        %v2115 = vxor.u32 %v1955, 2147483648
        %v2116 = vxor.u32 %v1957, 2147483648
        %v2117 = vxor.u32 %v1960, 2147483648
        %v2118 = vxor.u32 %v1962, 2147483648
        %v2119 = vxor.u32 %v1965, 2147483648
        %v2120 = vxor.u32 %v1967, 2147483648
        %v2121 = vxor.u32 %v1970, 2147483648
        %v2122 = vxor.u32 %v1972, 2147483648
        %v2123 = vxor.u32 %v1975, 2147483648
        %v2124 = vxor.u32 %v1977, 2147483648
        %v2125 = vxor.u32 %v1980, 2147483648
        %v2126 = vxor.u32 %v1982, 2147483648
        %v2127 = vxor.u32 %v1985, 2147483648
        %v2128 = vxor.u32 %v1987, 2147483648
        %v2129 = vxor.u32 %v1990, 2147483648
        %v2130 = vxor.u32 %v1992, 2147483648
        %v2131 = vxor.u32 %v1995, 2147483648
        %v2132 = vxor.u32 %v1997, 2147483648
        %v2133 = vxor.u32 %v2000, 2147483648
        %v2134 = vxor.u32 %v2002, 2147483648
        %v2135 = vxor.u32 %v2005, 2147483648
        %v2136 = vxor.u32 %v2007, 2147483648
        %v2137 = vmul.f32 %v2073, 1.442695
        %v2138 = vpow.pop %v2137
        %v2139 = vmul.f32 %v2074, 1.442695
        %v2140 = vpow.pop %v2139
        %v2141 = vmul.f32 %v2075, 1.442695
        %v2142 = vpow.pop %v2141
        %v2143 = vmul.f32 %v2076, 1.442695
        %v2144 = vpow.pop %v2143
        %v2145 = vmul.f32 %v2077, 1.442695
        %v2146 = vpow.pop %v2145
        %v2147 = vmul.f32 %v2078, 1.442695
        %v2148 = vpow.pop %v2147
        %v2149 = vmul.f32 %v2079, 1.442695
        %v2150 = vpow.pop %v2149
        %v2151 = vmul.f32 %v2080, 1.442695
        %v2152 = vpow.pop %v2151
        %v2153 = vmul.f32 %v2081, 1.442695
        %v2154 = vpow.pop %v2153
        %v2155 = vmul.f32 %v2082, 1.442695
        %v2156 = vpow.pop %v2155
        %v2157 = vmul.f32 %v2083, 1.442695
        %v2158 = vpow.pop %v2157
        %v2159 = vmul.f32 %v2084, 1.442695
        %v2160 = vpow.pop %v2159
        %v2161 = vmul.f32 %v2085, 1.442695
        %v2162 = vpow.pop %v2161
        %v2163 = vmul.f32 %v2086, 1.442695
        %v2164 = vpow.pop %v2163
        %v2165 = vmul.f32 %v2087, 1.442695
        %v2166 = vpow.pop %v2165
        %v2167 = vmul.f32 %v2088, 1.442695
        %v2168 = vpow.pop %v2167
        %v2169 = vmul.f32 %v2089, 1.442695
        %v2170 = vpow.pop %v2169
        %v2171 = vmul.f32 %v2090, 1.442695
        %v2172 = vpow.pop %v2171
        %v2173 = vmul.f32 %v2091, 1.442695
        %v2174 = vpow.pop %v2173
        %v2175 = vmul.f32 %v2092, 1.442695
        %v2176 = vpow.pop %v2175
        %v2177 = vmul.f32 %v2093, 1.442695
        %v2178 = vpow.pop %v2177
        %v2179 = vmul.f32 %v2094, 1.442695
        %v2180 = vpow.pop %v2179
        %v2181 = vmul.f32 %v2095, 1.442695
        %v2182 = vpow.pop %v2181
        %v2183 = vmul.f32 %v2096, 1.442695
        %v2184 = vpow.pop %v2183
        %v2185 = vmul.f32 %v2097, 1.442695
        %v2186 = vpow.pop %v2185
        %v2187 = vmul.f32 %v2098, 1.442695
        %v2188 = vpow.pop %v2187
        %v2189 = vmul.f32 %v2099, 1.442695
        %v2190 = vpow.pop %v2189
        %v2191 = vmul.f32 %v2100, 1.442695
        %v2192 = vpow.pop %v2191
        %v2193 = vmul.f32 %v2101, 1.442695
        %v2194 = vpow.pop %v2193
        %v2195 = vmul.f32 %v2102, 1.442695
        %v2196 = vpow.pop %v2195
        %v2197 = vmul.f32 %v2103, 1.442695
        %v2198 = vpow.pop %v2197
        %v2199 = vmul.f32 %v2104, 1.442695
        %v2200 = vpow.pop %v2199
        %v2201 = vmul.f32 %v2105, 1.442695
        %v2202 = vpow.pop %v2201
        %v2203 = vmul.f32 %v2106, 1.442695
        %v2204 = vpow.pop %v2203
        %v2205 = vmul.f32 %v2107, 1.442695
        %v2206 = vpow.pop %v2205
        %v2207 = vmul.f32 %v2108, 1.442695
        %v2208 = vpow.pop %v2207
        %v2209 = vmul.f32 %v2109, 1.442695
        %v2210 = vpow.pop %v2209
        %v2211 = vmul.f32 %v2110, 1.442695
        %v2212 = vpow.pop %v2211
        %v2213 = vmul.f32 %v2111, 1.442695
        %v2214 = vpow.pop %v2213
        %v2215 = vmul.f32 %v2112, 1.442695
        %v2216 = vpow.pop %v2215
        %v2217 = vmul.f32 %v2113, 1.442695
        %v2218 = vpow.pop %v2217
        %v2219 = vmul.f32 %v2114, 1.442695
        %v2220 = vpow.pop %v2219
        %v2221 = vmul.f32 %v2115, 1.442695
        %v2222 = vpow.pop %v2221
        %v2223 = vmul.f32 %v2116, 1.442695
        %v2224 = vpow.pop %v2223
        %v2225 = vmul.f32 %v2117, 1.442695
        %v2226 = vpow.pop %v2225
        %v2227 = vmul.f32 %v2118, 1.442695
        %v2228 = vpow.pop %v2227
        %v2229 = vmul.f32 %v2119, 1.442695
        %v2230 = vpow.pop %v2229
        %v2231 = vmul.f32 %v2120, 1.442695
        %v2232 = vpow.pop %v2231
        %v2233 = vmul.f32 %v2121, 1.442695
        %v2234 = vpow.pop %v2233
        %v2235 = vmul.f32 %v2122, 1.442695
        %v2236 = vpow.pop %v2235
        %v2237 = vmul.f32 %v2123, 1.442695
        %v2238 = vpow.pop %v2237
        %v2239 = vmul.f32 %v2124, 1.442695
        %v2240 = vpow.pop %v2239
        %v2241 = vmul.f32 %v2125, 1.442695
        %v2242 = vpow.pop %v2241
        %v2243 = vmul.f32 %v2126, 1.442695
        %v2244 = vpow.pop %v2243
        %v2245 = vmul.f32 %v2127, 1.442695
        %v2246 = vpow.pop %v2245
        %v2247 = vmul.f32 %v2128, 1.442695
        %v2248 = vpow.pop %v2247
        %v2249 = vmul.f32 %v2129, 1.442695
        %v2250 = vpow.pop %v2249
        %v2251 = vmul.f32 %v2130, 1.442695
        %v2252 = vpow.pop %v2251
        %v2253 = vmul.f32 %v2131, 1.442695
        %v2254 = vpow.pop %v2253
        %v2255 = vmul.f32 %v2132, 1.442695
        %v2256 = vpow.pop %v2255
        %v2257 = vmul.f32 %v2133, 1.442695
        %v2258 = vpow.pop %v2257
        %v2259 = vmul.f32 %v2134, 1.442695
        %v2260 = vpow.pop %v2259
        %v2261 = vmul.f32 %v2135, 1.442695
        %v2262 = vpow.pop %v2261
        %v2263 = vmul.f32 %v2136, 1.442695
        %v2264 = vpow.pop %v2263
        %v2265 = vadd.f32 %v2138, 1.0
        %v2266 = vadd.f32 %v2140, 1.0
        %v2267 = vadd.f32 %v2142, 1.0
        %v2268 = vadd.f32 %v2144, 1.0
        %v2269 = vadd.f32 %v2146, 1.0
        %v2270 = vadd.f32 %v2148, 1.0
        %v2271 = vadd.f32 %v2150, 1.0
        %v2272 = vadd.f32 %v2152, 1.0
        %v2273 = vadd.f32 %v2154, 1.0
        %v2274 = vadd.f32 %v2156, 1.0
        %v2275 = vadd.f32 %v2158, 1.0
        %v2276 = vadd.f32 %v2160, 1.0
        %v2277 = vadd.f32 %v2162, 1.0
        %v2278 = vadd.f32 %v2164, 1.0
        %v2279 = vadd.f32 %v2166, 1.0
        %v2280 = vadd.f32 %v2168, 1.0
        %v2281 = vadd.f32 %v2170, 1.0
        %v2282 = vadd.f32 %v2172, 1.0
        %v2283 = vadd.f32 %v2174, 1.0
        %v2284 = vadd.f32 %v2176, 1.0
        %v2285 = vadd.f32 %v2178, 1.0
        %v2286 = vadd.f32 %v2180, 1.0
        %v2287 = vadd.f32 %v2182, 1.0
        %v2288 = vadd.f32 %v2184, 1.0
        %v2289 = vadd.f32 %v2186, 1.0
        %v2290 = vadd.f32 %v2188, 1.0
        %v2291 = vadd.f32 %v2190, 1.0
        %v2292 = vadd.f32 %v2192, 1.0
        %v2293 = vadd.f32 %v2194, 1.0
        %v2294 = vadd.f32 %v2196, 1.0
        %v2295 = vadd.f32 %v2198, 1.0
        %v2296 = vadd.f32 %v2200, 1.0
        %v2297 = vadd.f32 %v2202, 1.0
        %v2298 = vadd.f32 %v2204, 1.0
        %v2299 = vadd.f32 %v2206, 1.0
        %v2300 = vadd.f32 %v2208, 1.0
        %v2301 = vadd.f32 %v2210, 1.0
        %v2302 = vadd.f32 %v2212, 1.0
        %v2303 = vadd.f32 %v2214, 1.0
        %v2304 = vadd.f32 %v2216, 1.0
        %v2305 = vadd.f32 %v2218, 1.0
        %v2306 = vadd.f32 %v2220, 1.0
        %v2307 = vadd.f32 %v2222, 1.0
        %v2308 = vadd.f32 %v2224, 1.0
        %v2309 = vadd.f32 %v2226, 1.0
        %v2310 = vadd.f32 %v2228, 1.0
        %v2311 = vadd.f32 %v2230, 1.0
        %v2312 = vadd.f32 %v2232, 1.0
        %v2313 = vadd.f32 %v2234, 1.0
        %v2314 = vadd.f32 %v2236, 1.0
        %v2315 = vadd.f32 %v2238, 1.0
        %v2316 = vadd.f32 %v2240, 1.0
        %v2317 = vadd.f32 %v2242, 1.0
        %v2318 = vadd.f32 %v2244, 1.0
        %v2319 = vadd.f32 %v2246, 1.0
        %v2320 = vadd.f32 %v2248, 1.0
        %v2321 = vadd.f32 %v2250, 1.0
        %v2322 = vadd.f32 %v2252, 1.0
        %v2323 = vadd.f32 %v2254, 1.0
        %v2324 = vadd.f32 %v2256, 1.0
        %v2325 = vadd.f32 %v2258, 1.0
        %v2326 = vadd.f32 %v2260, 1.0
        %v2327 = vadd.f32 %v2262, 1.0
        %v2328 = vadd.f32 %v2264, 1.0
        %v2329 = vrcp.pop %v2265
        %v2330 = vmul.f32 %v2265, %v2329
        %v2331 = vsub.f32 1.0, %v2330
        %v2332 = vmul.f32 %v2329, %v2331
        %v2333 = vadd.f32 %v2329, %v2332
        %vm2334 = vweird.f32 %v2265
        %vm2335 = vweird.f32 %v2329
        %vm2336 = vmor %vm2334, %vm2335
        %v2337 = vsel %vm2336, %v2329, %v2333
        %v2338 = vand.u32 2147483647, %v2265
        %vm2339 = vcmp.eq.f32.partialorder %v2338, 8.507059e+37
        %v2340 = vand.u32 %v2265, 2147483648
        %v2341 = vor.u32 1.1754944e-38, %v2340
        %v2342 = vsel %vm2339, %v2341, %v2337
        %v2343 = vmul.f32 1.0, %v2342
        %v2344 = vrcp.pop %v2266
        %v2345 = vmul.f32 %v2266, %v2344
        %v2346 = vsub.f32 1.0, %v2345
        %v2347 = vmul.f32 %v2344, %v2346
        %v2348 = vadd.f32 %v2344, %v2347
        %vm2349 = vweird.f32 %v2266
        %vm2350 = vweird.f32 %v2344
        %vm2351 = vmor %vm2349, %vm2350
        %v2352 = vsel %vm2351, %v2344, %v2348
        %v2353 = vand.u32 2147483647, %v2266
        %vm2354 = vcmp.eq.f32.partialorder %v2353, 8.507059e+37
        %v2355 = vand.u32 %v2266, 2147483648
        %v2356 = vor.u32 1.1754944e-38, %v2355
        %v2357 = vsel %vm2354, %v2356, %v2352
        %v2358 = vmul.f32 1.0, %v2357
        %v2359 = vrcp.pop %v2267
        %v2360 = vmul.f32 %v2267, %v2359
        %v2361 = vsub.f32 1.0, %v2360
        %v2362 = vmul.f32 %v2359, %v2361
        %v2363 = vadd.f32 %v2359, %v2362
        %vm2364 = vweird.f32 %v2267
        %vm2365 = vweird.f32 %v2359
        %vm2366 = vmor %vm2364, %vm2365
        %v2367 = vsel %vm2366, %v2359, %v2363
        %v2368 = vand.u32 2147483647, %v2267
        %vm2369 = vcmp.eq.f32.partialorder %v2368, 8.507059e+37
        %v2370 = vand.u32 %v2267, 2147483648
        %v2371 = vor.u32 1.1754944e-38, %v2370
        %v2372 = vsel %vm2369, %v2371, %v2367
        %v2373 = vmul.f32 1.0, %v2372
        %v2374 = vrcp.pop %v2268
        %v2375 = vmul.f32 %v2268, %v2374
        %v2376 = vsub.f32 1.0, %v2375
        %v2377 = vmul.f32 %v2374, %v2376
        %v2378 = vadd.f32 %v2374, %v2377
        %vm2379 = vweird.f32 %v2268
        %vm2380 = vweird.f32 %v2374
        %vm2381 = vmor %vm2379, %vm2380
        %v2382 = vsel %vm2381, %v2374, %v2378
        %v2383 = vand.u32 2147483647, %v2268
        %vm2384 = vcmp.eq.f32.partialorder %v2383, 8.507059e+37
        %v2385 = vand.u32 %v2268, 2147483648
        %v2386 = vor.u32 1.1754944e-38, %v2385
        %v2387 = vsel %vm2384, %v2386, %v2382
        %v2388 = vmul.f32 1.0, %v2387
        %v2389 = vrcp.pop %v2269
        %v2390 = vmul.f32 %v2269, %v2389
        %v2391 = vsub.f32 1.0, %v2390
        %v2392 = vmul.f32 %v2389, %v2391
        %v2393 = vadd.f32 %v2389, %v2392
        %vm2394 = vweird.f32 %v2269
        %vm2395 = vweird.f32 %v2389
        %vm2396 = vmor %vm2394, %vm2395
        %v2397 = vsel %vm2396, %v2389, %v2393
        %v2398 = vand.u32 2147483647, %v2269
        %vm2399 = vcmp.eq.f32.partialorder %v2398, 8.507059e+37
        %v2400 = vand.u32 %v2269, 2147483648
        %v2401 = vor.u32 1.1754944e-38, %v2400
        %v2402 = vsel %vm2399, %v2401, %v2397
        %v2403 = vmul.f32 1.0, %v2402
        %v2404 = vrcp.pop %v2270
        %v2405 = vmul.f32 %v2270, %v2404
        %v2406 = vsub.f32 1.0, %v2405
        %v2407 = vmul.f32 %v2404, %v2406
        %v2408 = vadd.f32 %v2404, %v2407
        %vm2409 = vweird.f32 %v2270
        %vm2410 = vweird.f32 %v2404
        %vm2411 = vmor %vm2409, %vm2410
        %v2412 = vsel %vm2411, %v2404, %v2408
        %v2413 = vand.u32 2147483647, %v2270
        %vm2414 = vcmp.eq.f32.partialorder %v2413, 8.507059e+37
        %v2415 = vand.u32 %v2270, 2147483648
        %v2416 = vor.u32 1.1754944e-38, %v2415
        %v2417 = vsel %vm2414, %v2416, %v2412
        %v2418 = vmul.f32 1.0, %v2417
        %v2419 = vrcp.pop %v2271
        %v2420 = vmul.f32 %v2271, %v2419
        %v2421 = vsub.f32 1.0, %v2420
        %v2422 = vmul.f32 %v2419, %v2421
        %v2423 = vadd.f32 %v2419, %v2422
        %vm2424 = vweird.f32 %v2271
        %vm2425 = vweird.f32 %v2419
        %vm2426 = vmor %vm2424, %vm2425
        %v2427 = vsel %vm2426, %v2419, %v2423
        %v2428 = vand.u32 2147483647, %v2271
        %vm2429 = vcmp.eq.f32.partialorder %v2428, 8.507059e+37
        %v2430 = vand.u32 %v2271, 2147483648
        %v2431 = vor.u32 1.1754944e-38, %v2430
        %v2432 = vsel %vm2429, %v2431, %v2427
        %v2433 = vmul.f32 1.0, %v2432
        %v2434 = vrcp.pop %v2272
        %v2435 = vmul.f32 %v2272, %v2434
        %v2436 = vsub.f32 1.0, %v2435
        %v2437 = vmul.f32 %v2434, %v2436
        %v2438 = vadd.f32 %v2434, %v2437
        %vm2439 = vweird.f32 %v2272
        %vm2440 = vweird.f32 %v2434
        %vm2441 = vmor %vm2439, %vm2440
        %v2442 = vsel %vm2441, %v2434, %v2438
        %v2443 = vand.u32 2147483647, %v2272
        %vm2444 = vcmp.eq.f32.partialorder %v2443, 8.507059e+37
        %v2445 = vand.u32 %v2272, 2147483648
        %v2446 = vor.u32 1.1754944e-38, %v2445
        %v2447 = vsel %vm2444, %v2446, %v2442
        %v2448 = vmul.f32 1.0, %v2447
        %v2449 = vrcp.pop %v2273
        %v2450 = vmul.f32 %v2273, %v2449
        %v2451 = vsub.f32 1.0, %v2450
        %v2452 = vmul.f32 %v2449, %v2451
        %v2453 = vadd.f32 %v2449, %v2452
        %vm2454 = vweird.f32 %v2273
        %vm2455 = vweird.f32 %v2449
        %vm2456 = vmor %vm2454, %vm2455
        %v2457 = vsel %vm2456, %v2449, %v2453
        %v2458 = vand.u32 2147483647, %v2273
        %vm2459 = vcmp.eq.f32.partialorder %v2458, 8.507059e+37
        %v2460 = vand.u32 %v2273, 2147483648
        %v2461 = vor.u32 1.1754944e-38, %v2460
        %v2462 = vsel %vm2459, %v2461, %v2457
        %v2463 = vmul.f32 1.0, %v2462
        %v2464 = vrcp.pop %v2274
        %v2465 = vmul.f32 %v2274, %v2464
        %v2466 = vsub.f32 1.0, %v2465
        %v2467 = vmul.f32 %v2464, %v2466
        %v2468 = vadd.f32 %v2464, %v2467
        %vm2469 = vweird.f32 %v2274
        %vm2470 = vweird.f32 %v2464
        %vm2471 = vmor %vm2469, %vm2470
        %v2472 = vsel %vm2471, %v2464, %v2468
        %v2473 = vand.u32 2147483647, %v2274
        %vm2474 = vcmp.eq.f32.partialorder %v2473, 8.507059e+37
        %v2475 = vand.u32 %v2274, 2147483648
        %v2476 = vor.u32 1.1754944e-38, %v2475
        %v2477 = vsel %vm2474, %v2476, %v2472
        %v2478 = vmul.f32 1.0, %v2477
        %v2479 = vrcp.pop %v2275
        %v2480 = vmul.f32 %v2275, %v2479
        %v2481 = vsub.f32 1.0, %v2480
        %v2482 = vmul.f32 %v2479, %v2481
        %v2483 = vadd.f32 %v2479, %v2482
        %vm2484 = vweird.f32 %v2275
        %vm2485 = vweird.f32 %v2479
        %vm2486 = vmor %vm2484, %vm2485
        %v2487 = vsel %vm2486, %v2479, %v2483
        %v2488 = vand.u32 2147483647, %v2275
        %vm2489 = vcmp.eq.f32.partialorder %v2488, 8.507059e+37
        %v2490 = vand.u32 %v2275, 2147483648
        %v2491 = vor.u32 1.1754944e-38, %v2490
        %v2492 = vsel %vm2489, %v2491, %v2487
        %v2493 = vmul.f32 1.0, %v2492
        %v2494 = vrcp.pop %v2276
        %v2495 = vmul.f32 %v2276, %v2494
        %v2496 = vsub.f32 1.0, %v2495
        %v2497 = vmul.f32 %v2494, %v2496
        %v2498 = vadd.f32 %v2494, %v2497
        %vm2499 = vweird.f32 %v2276
        %vm2500 = vweird.f32 %v2494
        %vm2501 = vmor %vm2499, %vm2500
        %v2502 = vsel %vm2501, %v2494, %v2498
        %v2503 = vand.u32 2147483647, %v2276
        %vm2504 = vcmp.eq.f32.partialorder %v2503, 8.507059e+37
        %v2505 = vand.u32 %v2276, 2147483648
        %v2506 = vor.u32 1.1754944e-38, %v2505
        %v2507 = vsel %vm2504, %v2506, %v2502
        %v2508 = vmul.f32 1.0, %v2507
        %v2509 = vrcp.pop %v2277
        %v2510 = vmul.f32 %v2277, %v2509
        %v2511 = vsub.f32 1.0, %v2510
        %v2512 = vmul.f32 %v2509, %v2511
        %v2513 = vadd.f32 %v2509, %v2512
        %vm2514 = vweird.f32 %v2277
        %vm2515 = vweird.f32 %v2509
        %vm2516 = vmor %vm2514, %vm2515
        %v2517 = vsel %vm2516, %v2509, %v2513
        %v2518 = vand.u32 2147483647, %v2277
        %vm2519 = vcmp.eq.f32.partialorder %v2518, 8.507059e+37
        %v2520 = vand.u32 %v2277, 2147483648
        %v2521 = vor.u32 1.1754944e-38, %v2520
        %v2522 = vsel %vm2519, %v2521, %v2517
        %v2523 = vmul.f32 1.0, %v2522
        %v2524 = vrcp.pop %v2278
        %v2525 = vmul.f32 %v2278, %v2524
        %v2526 = vsub.f32 1.0, %v2525
        %v2527 = vmul.f32 %v2524, %v2526
        %v2528 = vadd.f32 %v2524, %v2527
        %vm2529 = vweird.f32 %v2278
        %vm2530 = vweird.f32 %v2524
        %vm2531 = vmor %vm2529, %vm2530
        %v2532 = vsel %vm2531, %v2524, %v2528
        %v2533 = vand.u32 2147483647, %v2278
        %vm2534 = vcmp.eq.f32.partialorder %v2533, 8.507059e+37
        %v2535 = vand.u32 %v2278, 2147483648
        %v2536 = vor.u32 1.1754944e-38, %v2535
        %v2537 = vsel %vm2534, %v2536, %v2532
        %v2538 = vmul.f32 1.0, %v2537
        %v2539 = vrcp.pop %v2279
        %v2540 = vmul.f32 %v2279, %v2539
        %v2541 = vsub.f32 1.0, %v2540
        %v2542 = vmul.f32 %v2539, %v2541
        %v2543 = vadd.f32 %v2539, %v2542
        %vm2544 = vweird.f32 %v2279
        %vm2545 = vweird.f32 %v2539
        %vm2546 = vmor %vm2544, %vm2545
        %v2547 = vsel %vm2546, %v2539, %v2543
        %v2548 = vand.u32 2147483647, %v2279
        %vm2549 = vcmp.eq.f32.partialorder %v2548, 8.507059e+37
        %v2550 = vand.u32 %v2279, 2147483648
        %v2551 = vor.u32 1.1754944e-38, %v2550
        %v2552 = vsel %vm2549, %v2551, %v2547
        %v2553 = vmul.f32 1.0, %v2552
        %v2554 = vrcp.pop %v2280
        %v2555 = vmul.f32 %v2280, %v2554
        %v2556 = vsub.f32 1.0, %v2555
        %v2557 = vmul.f32 %v2554, %v2556
        %v2558 = vadd.f32 %v2554, %v2557
        %vm2559 = vweird.f32 %v2280
        %vm2560 = vweird.f32 %v2554
        %vm2561 = vmor %vm2559, %vm2560
        %v2562 = vsel %vm2561, %v2554, %v2558
        %v2563 = vand.u32 2147483647, %v2280
        %vm2564 = vcmp.eq.f32.partialorder %v2563, 8.507059e+37
        %v2565 = vand.u32 %v2280, 2147483648
        %v2566 = vor.u32 1.1754944e-38, %v2565
        %v2567 = vsel %vm2564, %v2566, %v2562
        %v2568 = vmul.f32 1.0, %v2567
        %v2569 = vrcp.pop %v2281
        %v2570 = vmul.f32 %v2281, %v2569
        %v2571 = vsub.f32 1.0, %v2570
        %v2572 = vmul.f32 %v2569, %v2571
        %v2573 = vadd.f32 %v2569, %v2572
        %vm2574 = vweird.f32 %v2281
        %vm2575 = vweird.f32 %v2569
        %vm2576 = vmor %vm2574, %vm2575
        %v2577 = vsel %vm2576, %v2569, %v2573
        %v2578 = vand.u32 2147483647, %v2281
        %vm2579 = vcmp.eq.f32.partialorder %v2578, 8.507059e+37
        %v2580 = vand.u32 %v2281, 2147483648
        %v2581 = vor.u32 1.1754944e-38, %v2580
        %v2582 = vsel %vm2579, %v2581, %v2577
        %v2583 = vmul.f32 1.0, %v2582
        %v2584 = vrcp.pop %v2282
        %v2585 = vmul.f32 %v2282, %v2584
        %v2586 = vsub.f32 1.0, %v2585
        %v2587 = vmul.f32 %v2584, %v2586
        %v2588 = vadd.f32 %v2584, %v2587
        %vm2589 = vweird.f32 %v2282
        %vm2590 = vweird.f32 %v2584
        %vm2591 = vmor %vm2589, %vm2590
        %v2592 = vsel %vm2591, %v2584, %v2588
        %v2593 = vand.u32 2147483647, %v2282
        %vm2594 = vcmp.eq.f32.partialorder %v2593, 8.507059e+37
        %v2595 = vand.u32 %v2282, 2147483648
        %v2596 = vor.u32 1.1754944e-38, %v2595
        %v2597 = vsel %vm2594, %v2596, %v2592
        %v2598 = vmul.f32 1.0, %v2597
        %v2599 = vrcp.pop %v2283
        %v2600 = vmul.f32 %v2283, %v2599
        %v2601 = vsub.f32 1.0, %v2600
        %v2602 = vmul.f32 %v2599, %v2601
        %v2603 = vadd.f32 %v2599, %v2602
        %vm2604 = vweird.f32 %v2283
        %vm2605 = vweird.f32 %v2599
        %vm2606 = vmor %vm2604, %vm2605
        %v2607 = vsel %vm2606, %v2599, %v2603
        %v2608 = vand.u32 2147483647, %v2283
        %vm2609 = vcmp.eq.f32.partialorder %v2608, 8.507059e+37
        %v2610 = vand.u32 %v2283, 2147483648
        %v2611 = vor.u32 1.1754944e-38, %v2610
        %v2612 = vsel %vm2609, %v2611, %v2607
        %v2613 = vmul.f32 1.0, %v2612
        %v2614 = vrcp.pop %v2284
        %v2615 = vmul.f32 %v2284, %v2614
        %v2616 = vsub.f32 1.0, %v2615
        %v2617 = vmul.f32 %v2614, %v2616
        %v2618 = vadd.f32 %v2614, %v2617
        %vm2619 = vweird.f32 %v2284
        %vm2620 = vweird.f32 %v2614
        %vm2621 = vmor %vm2619, %vm2620
        %v2622 = vsel %vm2621, %v2614, %v2618
        %v2623 = vand.u32 2147483647, %v2284
        %vm2624 = vcmp.eq.f32.partialorder %v2623, 8.507059e+37
        %v2625 = vand.u32 %v2284, 2147483648
        %v2626 = vor.u32 1.1754944e-38, %v2625
        %v2627 = vsel %vm2624, %v2626, %v2622
        %v2628 = vmul.f32 1.0, %v2627
        %v2629 = vrcp.pop %v2285
        %v2630 = vmul.f32 %v2285, %v2629
        %v2631 = vsub.f32 1.0, %v2630
        %v2632 = vmul.f32 %v2629, %v2631
        %v2633 = vadd.f32 %v2629, %v2632
        %vm2634 = vweird.f32 %v2285
        %vm2635 = vweird.f32 %v2629
        %vm2636 = vmor %vm2634, %vm2635
        %v2637 = vsel %vm2636, %v2629, %v2633
        %v2638 = vand.u32 2147483647, %v2285
        %vm2639 = vcmp.eq.f32.partialorder %v2638, 8.507059e+37
        %v2640 = vand.u32 %v2285, 2147483648
        %v2641 = vor.u32 1.1754944e-38, %v2640
        %v2642 = vsel %vm2639, %v2641, %v2637
        %v2643 = vmul.f32 1.0, %v2642
        %v2644 = vrcp.pop %v2286
        %v2645 = vmul.f32 %v2286, %v2644
        %v2646 = vsub.f32 1.0, %v2645
        %v2647 = vmul.f32 %v2644, %v2646
        %v2648 = vadd.f32 %v2644, %v2647
        %vm2649 = vweird.f32 %v2286
        %vm2650 = vweird.f32 %v2644
        %vm2651 = vmor %vm2649, %vm2650
        %v2652 = vsel %vm2651, %v2644, %v2648
        %v2653 = vand.u32 2147483647, %v2286
        %vm2654 = vcmp.eq.f32.partialorder %v2653, 8.507059e+37
        %v2655 = vand.u32 %v2286, 2147483648
        %v2656 = vor.u32 1.1754944e-38, %v2655
        %v2657 = vsel %vm2654, %v2656, %v2652
        %v2658 = vmul.f32 1.0, %v2657
        %v2659 = vrcp.pop %v2287
        %v2660 = vmul.f32 %v2287, %v2659
        %v2661 = vsub.f32 1.0, %v2660
        %v2662 = vmul.f32 %v2659, %v2661
        %v2663 = vadd.f32 %v2659, %v2662
        %vm2664 = vweird.f32 %v2287
        %vm2665 = vweird.f32 %v2659
        %vm2666 = vmor %vm2664, %vm2665
        %v2667 = vsel %vm2666, %v2659, %v2663
        %v2668 = vand.u32 2147483647, %v2287
        %vm2669 = vcmp.eq.f32.partialorder %v2668, 8.507059e+37
        %v2670 = vand.u32 %v2287, 2147483648
        %v2671 = vor.u32 1.1754944e-38, %v2670
        %v2672 = vsel %vm2669, %v2671, %v2667
        %v2673 = vmul.f32 1.0, %v2672
        %v2674 = vrcp.pop %v2288
        %v2675 = vmul.f32 %v2288, %v2674
        %v2676 = vsub.f32 1.0, %v2675
        %v2677 = vmul.f32 %v2674, %v2676
        %v2678 = vadd.f32 %v2674, %v2677
        %vm2679 = vweird.f32 %v2288
        %vm2680 = vweird.f32 %v2674
        %vm2681 = vmor %vm2679, %vm2680
        %v2682 = vsel %vm2681, %v2674, %v2678
        %v2683 = vand.u32 2147483647, %v2288
        %vm2684 = vcmp.eq.f32.partialorder %v2683, 8.507059e+37
        %v2685 = vand.u32 %v2288, 2147483648
        %v2686 = vor.u32 1.1754944e-38, %v2685
        %v2687 = vsel %vm2684, %v2686, %v2682
        %v2688 = vmul.f32 1.0, %v2687
        %v2689 = vrcp.pop %v2289
        %v2690 = vmul.f32 %v2289, %v2689
        %v2691 = vsub.f32 1.0, %v2690
        %v2692 = vmul.f32 %v2689, %v2691
        %v2693 = vadd.f32 %v2689, %v2692
        %vm2694 = vweird.f32 %v2289
        %vm2695 = vweird.f32 %v2689
        %vm2696 = vmor %vm2694, %vm2695
        %v2697 = vsel %vm2696, %v2689, %v2693
        %v2698 = vand.u32 2147483647, %v2289
        %vm2699 = vcmp.eq.f32.partialorder %v2698, 8.507059e+37
        %v2700 = vand.u32 %v2289, 2147483648
        %v2701 = vor.u32 1.1754944e-38, %v2700
        %v2702 = vsel %vm2699, %v2701, %v2697
        %v2703 = vmul.f32 1.0, %v2702
        %v2704 = vrcp.pop %v2290
        %v2705 = vmul.f32 %v2290, %v2704
        %v2706 = vsub.f32 1.0, %v2705
        %v2707 = vmul.f32 %v2704, %v2706
        %v2708 = vadd.f32 %v2704, %v2707
        %vm2709 = vweird.f32 %v2290
        %vm2710 = vweird.f32 %v2704
        %vm2711 = vmor %vm2709, %vm2710
        %v2712 = vsel %vm2711, %v2704, %v2708
        %v2713 = vand.u32 2147483647, %v2290
        %vm2714 = vcmp.eq.f32.partialorder %v2713, 8.507059e+37
        %v2715 = vand.u32 %v2290, 2147483648
        %v2716 = vor.u32 1.1754944e-38, %v2715
        %v2717 = vsel %vm2714, %v2716, %v2712
        %v2718 = vmul.f32 1.0, %v2717
        %v2719 = vrcp.pop %v2291
        %v2720 = vmul.f32 %v2291, %v2719
        %v2721 = vsub.f32 1.0, %v2720
        %v2722 = vmul.f32 %v2719, %v2721
        %v2723 = vadd.f32 %v2719, %v2722
        %vm2724 = vweird.f32 %v2291
        %vm2725 = vweird.f32 %v2719
        %vm2726 = vmor %vm2724, %vm2725
        %v2727 = vsel %vm2726, %v2719, %v2723
        %v2728 = vand.u32 2147483647, %v2291
        %vm2729 = vcmp.eq.f32.partialorder %v2728, 8.507059e+37
        %v2730 = vand.u32 %v2291, 2147483648
        %v2731 = vor.u32 1.1754944e-38, %v2730
        %v2732 = vsel %vm2729, %v2731, %v2727
        %v2733 = vmul.f32 1.0, %v2732
        %v2734 = vrcp.pop %v2292
        %v2735 = vmul.f32 %v2292, %v2734
        %v2736 = vsub.f32 1.0, %v2735
        %v2737 = vmul.f32 %v2734, %v2736
        %v2738 = vadd.f32 %v2734, %v2737
        %vm2739 = vweird.f32 %v2292
        %vm2740 = vweird.f32 %v2734
        %vm2741 = vmor %vm2739, %vm2740
        %v2742 = vsel %vm2741, %v2734, %v2738
        %v2743 = vand.u32 2147483647, %v2292
        %vm2744 = vcmp.eq.f32.partialorder %v2743, 8.507059e+37
        %v2745 = vand.u32 %v2292, 2147483648
        %v2746 = vor.u32 1.1754944e-38, %v2745
        %v2747 = vsel %vm2744, %v2746, %v2742
        %v2748 = vmul.f32 1.0, %v2747
        %v2749 = vrcp.pop %v2293
        %v2750 = vmul.f32 %v2293, %v2749
        %v2751 = vsub.f32 1.0, %v2750
        %v2752 = vmul.f32 %v2749, %v2751
        %v2753 = vadd.f32 %v2749, %v2752
        %vm2754 = vweird.f32 %v2293
        %vm2755 = vweird.f32 %v2749
        %vm2756 = vmor %vm2754, %vm2755
        %v2757 = vsel %vm2756, %v2749, %v2753
        %v2758 = vand.u32 2147483647, %v2293
        %vm2759 = vcmp.eq.f32.partialorder %v2758, 8.507059e+37
        %v2760 = vand.u32 %v2293, 2147483648
        %v2761 = vor.u32 1.1754944e-38, %v2760
        %v2762 = vsel %vm2759, %v2761, %v2757
        %v2763 = vmul.f32 1.0, %v2762
        %v2764 = vrcp.pop %v2294
        %v2765 = vmul.f32 %v2294, %v2764
        %v2766 = vsub.f32 1.0, %v2765
        %v2767 = vmul.f32 %v2764, %v2766
        %v2768 = vadd.f32 %v2764, %v2767
        %vm2769 = vweird.f32 %v2294
        %vm2770 = vweird.f32 %v2764
        %vm2771 = vmor %vm2769, %vm2770
        %v2772 = vsel %vm2771, %v2764, %v2768
        %v2773 = vand.u32 2147483647, %v2294
        %vm2774 = vcmp.eq.f32.partialorder %v2773, 8.507059e+37
        %v2775 = vand.u32 %v2294, 2147483648
        %v2776 = vor.u32 1.1754944e-38, %v2775
        %v2777 = vsel %vm2774, %v2776, %v2772
        %v2778 = vmul.f32 1.0, %v2777
        %v2779 = vrcp.pop %v2295
        %v2780 = vmul.f32 %v2295, %v2779
        %v2781 = vsub.f32 1.0, %v2780
        %v2782 = vmul.f32 %v2779, %v2781
        %v2783 = vadd.f32 %v2779, %v2782
        %vm2784 = vweird.f32 %v2295
        %vm2785 = vweird.f32 %v2779
        %vm2786 = vmor %vm2784, %vm2785
        %v2787 = vsel %vm2786, %v2779, %v2783
        %v2788 = vand.u32 2147483647, %v2295
        %vm2789 = vcmp.eq.f32.partialorder %v2788, 8.507059e+37
        %v2790 = vand.u32 %v2295, 2147483648
        %v2791 = vor.u32 1.1754944e-38, %v2790
        %v2792 = vsel %vm2789, %v2791, %v2787
        %v2793 = vmul.f32 1.0, %v2792
        %v2794 = vrcp.pop %v2296
        %v2795 = vmul.f32 %v2296, %v2794
        %v2796 = vsub.f32 1.0, %v2795
        %v2797 = vmul.f32 %v2794, %v2796
        %v2798 = vadd.f32 %v2794, %v2797
        %vm2799 = vweird.f32 %v2296
        %vm2800 = vweird.f32 %v2794
        %vm2801 = vmor %vm2799, %vm2800
        %v2802 = vsel %vm2801, %v2794, %v2798
        %v2803 = vand.u32 2147483647, %v2296
        %vm2804 = vcmp.eq.f32.partialorder %v2803, 8.507059e+37
        %v2805 = vand.u32 %v2296, 2147483648
        %v2806 = vor.u32 1.1754944e-38, %v2805
        %v2807 = vsel %vm2804, %v2806, %v2802
        %v2808 = vmul.f32 1.0, %v2807
        %v2809 = vrcp.pop %v2297
        %v2810 = vmul.f32 %v2297, %v2809
        %v2811 = vsub.f32 1.0, %v2810
        %v2812 = vmul.f32 %v2809, %v2811
        %v2813 = vadd.f32 %v2809, %v2812
        %vm2814 = vweird.f32 %v2297
        %vm2815 = vweird.f32 %v2809
        %vm2816 = vmor %vm2814, %vm2815
        %v2817 = vsel %vm2816, %v2809, %v2813
        %v2818 = vand.u32 2147483647, %v2297
        %vm2819 = vcmp.eq.f32.partialorder %v2818, 8.507059e+37
        %v2820 = vand.u32 %v2297, 2147483648
        %v2821 = vor.u32 1.1754944e-38, %v2820
        %v2822 = vsel %vm2819, %v2821, %v2817
        %v2823 = vmul.f32 1.0, %v2822
        %v2824 = vrcp.pop %v2298
        %v2825 = vmul.f32 %v2298, %v2824
        %v2826 = vsub.f32 1.0, %v2825
        %v2827 = vmul.f32 %v2824, %v2826
        %v2828 = vadd.f32 %v2824, %v2827
        %vm2829 = vweird.f32 %v2298
        %vm2830 = vweird.f32 %v2824
        %vm2831 = vmor %vm2829, %vm2830
        %v2832 = vsel %vm2831, %v2824, %v2828
        %v2833 = vand.u32 2147483647, %v2298
        %vm2834 = vcmp.eq.f32.partialorder %v2833, 8.507059e+37
        %v2835 = vand.u32 %v2298, 2147483648
        %v2836 = vor.u32 1.1754944e-38, %v2835
        %v2837 = vsel %vm2834, %v2836, %v2832
        %v2838 = vmul.f32 1.0, %v2837
        %v2839 = vrcp.pop %v2299
        %v2840 = vmul.f32 %v2299, %v2839
        %v2841 = vsub.f32 1.0, %v2840
        %v2842 = vmul.f32 %v2839, %v2841
        %v2843 = vadd.f32 %v2839, %v2842
        %vm2844 = vweird.f32 %v2299
        %vm2845 = vweird.f32 %v2839
        %vm2846 = vmor %vm2844, %vm2845
        %v2847 = vsel %vm2846, %v2839, %v2843
        %v2848 = vand.u32 2147483647, %v2299
        %vm2849 = vcmp.eq.f32.partialorder %v2848, 8.507059e+37
        %v2850 = vand.u32 %v2299, 2147483648
        %v2851 = vor.u32 1.1754944e-38, %v2850
        %v2852 = vsel %vm2849, %v2851, %v2847
        %v2853 = vmul.f32 1.0, %v2852
        %v2854 = vrcp.pop %v2300
        %v2855 = vmul.f32 %v2300, %v2854
        %v2856 = vsub.f32 1.0, %v2855
        %v2857 = vmul.f32 %v2854, %v2856
        %v2858 = vadd.f32 %v2854, %v2857
        %vm2859 = vweird.f32 %v2300
        %vm2860 = vweird.f32 %v2854
        %vm2861 = vmor %vm2859, %vm2860
        %v2862 = vsel %vm2861, %v2854, %v2858
        %v2863 = vand.u32 2147483647, %v2300
        %vm2864 = vcmp.eq.f32.partialorder %v2863, 8.507059e+37
        %v2865 = vand.u32 %v2300, 2147483648
        %v2866 = vor.u32 1.1754944e-38, %v2865
        %v2867 = vsel %vm2864, %v2866, %v2862
        %v2868 = vmul.f32 1.0, %v2867
        %v2869 = vrcp.pop %v2301
        %v2870 = vmul.f32 %v2301, %v2869
        %v2871 = vsub.f32 1.0, %v2870
        %v2872 = vmul.f32 %v2869, %v2871
        %v2873 = vadd.f32 %v2869, %v2872
        %vm2874 = vweird.f32 %v2301
        %vm2875 = vweird.f32 %v2869
        %vm2876 = vmor %vm2874, %vm2875
        %v2877 = vsel %vm2876, %v2869, %v2873
        %v2878 = vand.u32 2147483647, %v2301
        %vm2879 = vcmp.eq.f32.partialorder %v2878, 8.507059e+37
        %v2880 = vand.u32 %v2301, 2147483648
        %v2881 = vor.u32 1.1754944e-38, %v2880
        %v2882 = vsel %vm2879, %v2881, %v2877
        %v2883 = vmul.f32 1.0, %v2882
        %v2884 = vrcp.pop %v2302
        %v2885 = vmul.f32 %v2302, %v2884
        %v2886 = vsub.f32 1.0, %v2885
        %v2887 = vmul.f32 %v2884, %v2886
        %v2888 = vadd.f32 %v2884, %v2887
        %vm2889 = vweird.f32 %v2302
        %vm2890 = vweird.f32 %v2884
        %vm2891 = vmor %vm2889, %vm2890
        %v2892 = vsel %vm2891, %v2884, %v2888
        %v2893 = vand.u32 2147483647, %v2302
        %vm2894 = vcmp.eq.f32.partialorder %v2893, 8.507059e+37
        %v2895 = vand.u32 %v2302, 2147483648
        %v2896 = vor.u32 1.1754944e-38, %v2895
        %v2897 = vsel %vm2894, %v2896, %v2892
        %v2898 = vmul.f32 1.0, %v2897
        %v2899 = vrcp.pop %v2303
        %v2900 = vmul.f32 %v2303, %v2899
        %v2901 = vsub.f32 1.0, %v2900
        %v2902 = vmul.f32 %v2899, %v2901
        %v2903 = vadd.f32 %v2899, %v2902
        %vm2904 = vweird.f32 %v2303
        %vm2905 = vweird.f32 %v2899
        %vm2906 = vmor %vm2904, %vm2905
        %v2907 = vsel %vm2906, %v2899, %v2903
        %v2908 = vand.u32 2147483647, %v2303
        %vm2909 = vcmp.eq.f32.partialorder %v2908, 8.507059e+37
        %v2910 = vand.u32 %v2303, 2147483648
        %v2911 = vor.u32 1.1754944e-38, %v2910
        %v2912 = vsel %vm2909, %v2911, %v2907
        %v2913 = vmul.f32 1.0, %v2912
        %v2914 = vrcp.pop %v2304
        %v2915 = vmul.f32 %v2304, %v2914
        %v2916 = vsub.f32 1.0, %v2915
        %v2917 = vmul.f32 %v2914, %v2916
        %v2918 = vadd.f32 %v2914, %v2917
        %vm2919 = vweird.f32 %v2304
        %vm2920 = vweird.f32 %v2914
        %vm2921 = vmor %vm2919, %vm2920
        %v2922 = vsel %vm2921, %v2914, %v2918
        %v2923 = vand.u32 2147483647, %v2304
        %vm2924 = vcmp.eq.f32.partialorder %v2923, 8.507059e+37
        %v2925 = vand.u32 %v2304, 2147483648
        %v2926 = vor.u32 1.1754944e-38, %v2925
        %v2927 = vsel %vm2924, %v2926, %v2922
        %v2928 = vmul.f32 1.0, %v2927
        %v2929 = vrcp.pop %v2305
        %v2930 = vmul.f32 %v2305, %v2929
        %v2931 = vsub.f32 1.0, %v2930
        %v2932 = vmul.f32 %v2929, %v2931
        %v2933 = vadd.f32 %v2929, %v2932
        %vm2934 = vweird.f32 %v2305
        %vm2935 = vweird.f32 %v2929
        %vm2936 = vmor %vm2934, %vm2935
        %v2937 = vsel %vm2936, %v2929, %v2933
        %v2938 = vand.u32 2147483647, %v2305
        %vm2939 = vcmp.eq.f32.partialorder %v2938, 8.507059e+37
        %v2940 = vand.u32 %v2305, 2147483648
        %v2941 = vor.u32 1.1754944e-38, %v2940
        %v2942 = vsel %vm2939, %v2941, %v2937
        %v2943 = vmul.f32 1.0, %v2942
        %v2944 = vrcp.pop %v2306
        %v2945 = vmul.f32 %v2306, %v2944
        %v2946 = vsub.f32 1.0, %v2945
        %v2947 = vmul.f32 %v2944, %v2946
        %v2948 = vadd.f32 %v2944, %v2947
        %vm2949 = vweird.f32 %v2306
        %vm2950 = vweird.f32 %v2944
        %vm2951 = vmor %vm2949, %vm2950
        %v2952 = vsel %vm2951, %v2944, %v2948
        %v2953 = vand.u32 2147483647, %v2306
        %vm2954 = vcmp.eq.f32.partialorder %v2953, 8.507059e+37
        %v2955 = vand.u32 %v2306, 2147483648
        %v2956 = vor.u32 1.1754944e-38, %v2955
        %v2957 = vsel %vm2954, %v2956, %v2952
        %v2958 = vmul.f32 1.0, %v2957
        %v2959 = vrcp.pop %v2307
        %v2960 = vmul.f32 %v2307, %v2959
        %v2961 = vsub.f32 1.0, %v2960
        %v2962 = vmul.f32 %v2959, %v2961
        %v2963 = vadd.f32 %v2959, %v2962
        %vm2964 = vweird.f32 %v2307
        %vm2965 = vweird.f32 %v2959
        %vm2966 = vmor %vm2964, %vm2965
        %v2967 = vsel %vm2966, %v2959, %v2963
        %v2968 = vand.u32 2147483647, %v2307
        %vm2969 = vcmp.eq.f32.partialorder %v2968, 8.507059e+37
        %v2970 = vand.u32 %v2307, 2147483648
        %v2971 = vor.u32 1.1754944e-38, %v2970
        %v2972 = vsel %vm2969, %v2971, %v2967
        %v2973 = vmul.f32 1.0, %v2972
        %v2974 = vrcp.pop %v2308
        %v2975 = vmul.f32 %v2308, %v2974
        %v2976 = vsub.f32 1.0, %v2975
        %v2977 = vmul.f32 %v2974, %v2976
        %v2978 = vadd.f32 %v2974, %v2977
        %vm2979 = vweird.f32 %v2308
        %vm2980 = vweird.f32 %v2974
        %vm2981 = vmor %vm2979, %vm2980
        %v2982 = vsel %vm2981, %v2974, %v2978
        %v2983 = vand.u32 2147483647, %v2308
        %vm2984 = vcmp.eq.f32.partialorder %v2983, 8.507059e+37
        %v2985 = vand.u32 %v2308, 2147483648
        %v2986 = vor.u32 1.1754944e-38, %v2985
        %v2987 = vsel %vm2984, %v2986, %v2982
        %v2988 = vmul.f32 1.0, %v2987
        %v2989 = vrcp.pop %v2309
        %v2990 = vmul.f32 %v2309, %v2989
        %v2991 = vsub.f32 1.0, %v2990
        %v2992 = vmul.f32 %v2989, %v2991
        %v2993 = vadd.f32 %v2989, %v2992
        %vm2994 = vweird.f32 %v2309
        %vm2995 = vweird.f32 %v2989
        %vm2996 = vmor %vm2994, %vm2995
        %v2997 = vsel %vm2996, %v2989, %v2993
        %v2998 = vand.u32 2147483647, %v2309
        %vm2999 = vcmp.eq.f32.partialorder %v2998, 8.507059e+37
        %v3000 = vand.u32 %v2309, 2147483648
        %v3001 = vor.u32 1.1754944e-38, %v3000
        %v3002 = vsel %vm2999, %v3001, %v2997
        %v3003 = vmul.f32 1.0, %v3002
        %v3004 = vrcp.pop %v2310
        %v3005 = vmul.f32 %v2310, %v3004
        %v3006 = vsub.f32 1.0, %v3005
        %v3007 = vmul.f32 %v3004, %v3006
        %v3008 = vadd.f32 %v3004, %v3007
        %vm3009 = vweird.f32 %v2310
        %vm3010 = vweird.f32 %v3004
        %vm3011 = vmor %vm3009, %vm3010
        %v3012 = vsel %vm3011, %v3004, %v3008
        %v3013 = vand.u32 2147483647, %v2310
        %vm3014 = vcmp.eq.f32.partialorder %v3013, 8.507059e+37
        %v3015 = vand.u32 %v2310, 2147483648
        %v3016 = vor.u32 1.1754944e-38, %v3015
        %v3017 = vsel %vm3014, %v3016, %v3012
        %v3018 = vmul.f32 1.0, %v3017
        %v3019 = vrcp.pop %v2311
        %v3020 = vmul.f32 %v2311, %v3019
        %v3021 = vsub.f32 1.0, %v3020
        %v3022 = vmul.f32 %v3019, %v3021
        %v3023 = vadd.f32 %v3019, %v3022
        %vm3024 = vweird.f32 %v2311
        %vm3025 = vweird.f32 %v3019
        %vm3026 = vmor %vm3024, %vm3025
        %v3027 = vsel %vm3026, %v3019, %v3023
        %v3028 = vand.u32 2147483647, %v2311
        %vm3029 = vcmp.eq.f32.partialorder %v3028, 8.507059e+37
        %v3030 = vand.u32 %v2311, 2147483648
        %v3031 = vor.u32 1.1754944e-38, %v3030
        %v3032 = vsel %vm3029, %v3031, %v3027
        %v3033 = vmul.f32 1.0, %v3032
        %v3034 = vrcp.pop %v2312
        %v3035 = vmul.f32 %v2312, %v3034
        %v3036 = vsub.f32 1.0, %v3035
        %v3037 = vmul.f32 %v3034, %v3036
        %v3038 = vadd.f32 %v3034, %v3037
        %vm3039 = vweird.f32 %v2312
        %vm3040 = vweird.f32 %v3034
        %vm3041 = vmor %vm3039, %vm3040
        %v3042 = vsel %vm3041, %v3034, %v3038
        %v3043 = vand.u32 2147483647, %v2312
        %vm3044 = vcmp.eq.f32.partialorder %v3043, 8.507059e+37
        %v3045 = vand.u32 %v2312, 2147483648
        %v3046 = vor.u32 1.1754944e-38, %v3045
        %v3047 = vsel %vm3044, %v3046, %v3042
        %v3048 = vmul.f32 1.0, %v3047
        %v3049 = vrcp.pop %v2313
        %v3050 = vmul.f32 %v2313, %v3049
        %v3051 = vsub.f32 1.0, %v3050
        %v3052 = vmul.f32 %v3049, %v3051
        %v3053 = vadd.f32 %v3049, %v3052
        %vm3054 = vweird.f32 %v2313
        %vm3055 = vweird.f32 %v3049
        %vm3056 = vmor %vm3054, %vm3055
        %v3057 = vsel %vm3056, %v3049, %v3053
        %v3058 = vand.u32 2147483647, %v2313
        %vm3059 = vcmp.eq.f32.partialorder %v3058, 8.507059e+37
        %v3060 = vand.u32 %v2313, 2147483648
        %v3061 = vor.u32 1.1754944e-38, %v3060
        %v3062 = vsel %vm3059, %v3061, %v3057
        %v3063 = vmul.f32 1.0, %v3062
        %v3064 = vrcp.pop %v2314
        %v3065 = vmul.f32 %v2314, %v3064
        %v3066 = vsub.f32 1.0, %v3065
        %v3067 = vmul.f32 %v3064, %v3066
        %v3068 = vadd.f32 %v3064, %v3067
        %vm3069 = vweird.f32 %v2314
        %vm3070 = vweird.f32 %v3064
        %vm3071 = vmor %vm3069, %vm3070
        %v3072 = vsel %vm3071, %v3064, %v3068
        %v3073 = vand.u32 2147483647, %v2314
        %vm3074 = vcmp.eq.f32.partialorder %v3073, 8.507059e+37
        %v3075 = vand.u32 %v2314, 2147483648
        %v3076 = vor.u32 1.1754944e-38, %v3075
        %v3077 = vsel %vm3074, %v3076, %v3072
        %v3078 = vmul.f32 1.0, %v3077
        %v3079 = vrcp.pop %v2315
        %v3080 = vmul.f32 %v2315, %v3079
        %v3081 = vsub.f32 1.0, %v3080
        %v3082 = vmul.f32 %v3079, %v3081
        %v3083 = vadd.f32 %v3079, %v3082
        %vm3084 = vweird.f32 %v2315
        %vm3085 = vweird.f32 %v3079
        %vm3086 = vmor %vm3084, %vm3085
        %v3087 = vsel %vm3086, %v3079, %v3083
        %v3088 = vand.u32 2147483647, %v2315
        %vm3089 = vcmp.eq.f32.partialorder %v3088, 8.507059e+37
        %v3090 = vand.u32 %v2315, 2147483648
        %v3091 = vor.u32 1.1754944e-38, %v3090
        %v3092 = vsel %vm3089, %v3091, %v3087
        %v3093 = vmul.f32 1.0, %v3092
        %v3094 = vrcp.pop %v2316
        %v3095 = vmul.f32 %v2316, %v3094
        %v3096 = vsub.f32 1.0, %v3095
        %v3097 = vmul.f32 %v3094, %v3096
        %v3098 = vadd.f32 %v3094, %v3097
        %vm3099 = vweird.f32 %v2316
        %vm3100 = vweird.f32 %v3094
        %vm3101 = vmor %vm3099, %vm3100
        %v3102 = vsel %vm3101, %v3094, %v3098
        %v3103 = vand.u32 2147483647, %v2316
        %vm3104 = vcmp.eq.f32.partialorder %v3103, 8.507059e+37
        %v3105 = vand.u32 %v2316, 2147483648
        %v3106 = vor.u32 1.1754944e-38, %v3105
        %v3107 = vsel %vm3104, %v3106, %v3102
        %v3108 = vmul.f32 1.0, %v3107
        %v3109 = vrcp.pop %v2317
        %v3110 = vmul.f32 %v2317, %v3109
        %v3111 = vsub.f32 1.0, %v3110
        %v3112 = vmul.f32 %v3109, %v3111
        %v3113 = vadd.f32 %v3109, %v3112
        %vm3114 = vweird.f32 %v2317
        %vm3115 = vweird.f32 %v3109
        %vm3116 = vmor %vm3114, %vm3115
        %v3117 = vsel %vm3116, %v3109, %v3113
        %v3118 = vand.u32 2147483647, %v2317
        %vm3119 = vcmp.eq.f32.partialorder %v3118, 8.507059e+37
        %v3120 = vand.u32 %v2317, 2147483648
        %v3121 = vor.u32 1.1754944e-38, %v3120
        %v3122 = vsel %vm3119, %v3121, %v3117
        %v3123 = vmul.f32 1.0, %v3122
        %v3124 = vrcp.pop %v2318
        %v3125 = vmul.f32 %v2318, %v3124
        %v3126 = vsub.f32 1.0, %v3125
        %v3127 = vmul.f32 %v3124, %v3126
        %v3128 = vadd.f32 %v3124, %v3127
        %vm3129 = vweird.f32 %v2318
        %vm3130 = vweird.f32 %v3124
        %vm3131 = vmor %vm3129, %vm3130
        %v3132 = vsel %vm3131, %v3124, %v3128
        %v3133 = vand.u32 2147483647, %v2318
        %vm3134 = vcmp.eq.f32.partialorder %v3133, 8.507059e+37
        %v3135 = vand.u32 %v2318, 2147483648
        %v3136 = vor.u32 1.1754944e-38, %v3135
        %v3137 = vsel %vm3134, %v3136, %v3132
        %v3138 = vmul.f32 1.0, %v3137
        %v3139 = vrcp.pop %v2319
        %v3140 = vmul.f32 %v2319, %v3139
        %v3141 = vsub.f32 1.0, %v3140
        %v3142 = vmul.f32 %v3139, %v3141
        %v3143 = vadd.f32 %v3139, %v3142
        %vm3144 = vweird.f32 %v2319
        %vm3145 = vweird.f32 %v3139
        %vm3146 = vmor %vm3144, %vm3145
        %v3147 = vsel %vm3146, %v3139, %v3143
        %v3148 = vand.u32 2147483647, %v2319
        %vm3149 = vcmp.eq.f32.partialorder %v3148, 8.507059e+37
        %v3150 = vand.u32 %v2319, 2147483648
        %v3151 = vor.u32 1.1754944e-38, %v3150
        %v3152 = vsel %vm3149, %v3151, %v3147
        %v3153 = vmul.f32 1.0, %v3152
        %v3154 = vrcp.pop %v2320
        %v3155 = vmul.f32 %v2320, %v3154
        %v3156 = vsub.f32 1.0, %v3155
        %v3157 = vmul.f32 %v3154, %v3156
        %v3158 = vadd.f32 %v3154, %v3157
        %vm3159 = vweird.f32 %v2320
        %vm3160 = vweird.f32 %v3154
        %vm3161 = vmor %vm3159, %vm3160
        %v3162 = vsel %vm3161, %v3154, %v3158
        %v3163 = vand.u32 2147483647, %v2320
        %vm3164 = vcmp.eq.f32.partialorder %v3163, 8.507059e+37
        %v3165 = vand.u32 %v2320, 2147483648
        %v3166 = vor.u32 1.1754944e-38, %v3165
        %v3167 = vsel %vm3164, %v3166, %v3162
        %v3168 = vmul.f32 1.0, %v3167
        %v3169 = vrcp.pop %v2321
        %v3170 = vmul.f32 %v2321, %v3169
        %v3171 = vsub.f32 1.0, %v3170
        %v3172 = vmul.f32 %v3169, %v3171
        %v3173 = vadd.f32 %v3169, %v3172
        %vm3174 = vweird.f32 %v2321
        %vm3175 = vweird.f32 %v3169
        %vm3176 = vmor %vm3174, %vm3175
        %v3177 = vsel %vm3176, %v3169, %v3173
        %v3178 = vand.u32 2147483647, %v2321
        %vm3179 = vcmp.eq.f32.partialorder %v3178, 8.507059e+37
        %v3180 = vand.u32 %v2321, 2147483648
        %v3181 = vor.u32 1.1754944e-38, %v3180
        %v3182 = vsel %vm3179, %v3181, %v3177
        %v3183 = vmul.f32 1.0, %v3182
        %v3184 = vrcp.pop %v2322
        %v3185 = vmul.f32 %v2322, %v3184
        %v3186 = vsub.f32 1.0, %v3185
        %v3187 = vmul.f32 %v3184, %v3186
        %v3188 = vadd.f32 %v3184, %v3187
        %vm3189 = vweird.f32 %v2322
        %vm3190 = vweird.f32 %v3184
        %vm3191 = vmor %vm3189, %vm3190
        %v3192 = vsel %vm3191, %v3184, %v3188
        %v3193 = vand.u32 2147483647, %v2322
        %vm3194 = vcmp.eq.f32.partialorder %v3193, 8.507059e+37
        %v3195 = vand.u32 %v2322, 2147483648
        %v3196 = vor.u32 1.1754944e-38, %v3195
        %v3197 = vsel %vm3194, %v3196, %v3192
        %v3198 = vmul.f32 1.0, %v3197
        %v3199 = vrcp.pop %v2323
        %v3200 = vmul.f32 %v2323, %v3199
        %v3201 = vsub.f32 1.0, %v3200
        %v3202 = vmul.f32 %v3199, %v3201
        %v3203 = vadd.f32 %v3199, %v3202
        %vm3204 = vweird.f32 %v2323
        %vm3205 = vweird.f32 %v3199
        %vm3206 = vmor %vm3204, %vm3205
        %v3207 = vsel %vm3206, %v3199, %v3203
        %v3208 = vand.u32 2147483647, %v2323
        %vm3209 = vcmp.eq.f32.partialorder %v3208, 8.507059e+37
        %v3210 = vand.u32 %v2323, 2147483648
        %v3211 = vor.u32 1.1754944e-38, %v3210
        %v3212 = vsel %vm3209, %v3211, %v3207
        %v3213 = vmul.f32 1.0, %v3212
        %v3214 = vrcp.pop %v2324
        %v3215 = vmul.f32 %v2324, %v3214
        %v3216 = vsub.f32 1.0, %v3215
        %v3217 = vmul.f32 %v3214, %v3216
        %v3218 = vadd.f32 %v3214, %v3217
        %vm3219 = vweird.f32 %v2324
        %vm3220 = vweird.f32 %v3214
        %vm3221 = vmor %vm3219, %vm3220
        %v3222 = vsel %vm3221, %v3214, %v3218
        %v3223 = vand.u32 2147483647, %v2324
        %vm3224 = vcmp.eq.f32.partialorder %v3223, 8.507059e+37
        %v3225 = vand.u32 %v2324, 2147483648
        %v3226 = vor.u32 1.1754944e-38, %v3225
        %v3227 = vsel %vm3224, %v3226, %v3222
        %v3228 = vmul.f32 1.0, %v3227
        %v3229 = vrcp.pop %v2325
        %v3230 = vmul.f32 %v2325, %v3229
        %v3231 = vsub.f32 1.0, %v3230
        %v3232 = vmul.f32 %v3229, %v3231
        %v3233 = vadd.f32 %v3229, %v3232
        %vm3234 = vweird.f32 %v2325
        %vm3235 = vweird.f32 %v3229
        %vm3236 = vmor %vm3234, %vm3235
        %v3237 = vsel %vm3236, %v3229, %v3233
        %v3238 = vand.u32 2147483647, %v2325
        %vm3239 = vcmp.eq.f32.partialorder %v3238, 8.507059e+37
        %v3240 = vand.u32 %v2325, 2147483648
        %v3241 = vor.u32 1.1754944e-38, %v3240
        %v3242 = vsel %vm3239, %v3241, %v3237
        %v3243 = vmul.f32 1.0, %v3242
        %v3244 = vrcp.pop %v2326
        %v3245 = vmul.f32 %v2326, %v3244
        %v3246 = vsub.f32 1.0, %v3245
        %v3247 = vmul.f32 %v3244, %v3246
        %v3248 = vadd.f32 %v3244, %v3247
        %vm3249 = vweird.f32 %v2326
        %vm3250 = vweird.f32 %v3244
        %vm3251 = vmor %vm3249, %vm3250
        %v3252 = vsel %vm3251, %v3244, %v3248
        %v3253 = vand.u32 2147483647, %v2326
        %vm3254 = vcmp.eq.f32.partialorder %v3253, 8.507059e+37
        %v3255 = vand.u32 %v2326, 2147483648
        %v3256 = vor.u32 1.1754944e-38, %v3255
        %v3257 = vsel %vm3254, %v3256, %v3252
        %v3258 = vmul.f32 1.0, %v3257
        %v3259 = vrcp.pop %v2327
        %v3260 = vmul.f32 %v2327, %v3259
        %v3261 = vsub.f32 1.0, %v3260
        %v3262 = vmul.f32 %v3259, %v3261
        %v3263 = vadd.f32 %v3259, %v3262
        %vm3264 = vweird.f32 %v2327
        %vm3265 = vweird.f32 %v3259
        %vm3266 = vmor %vm3264, %vm3265
        %v3267 = vsel %vm3266, %v3259, %v3263
        %v3268 = vand.u32 2147483647, %v2327
        %vm3269 = vcmp.eq.f32.partialorder %v3268, 8.507059e+37
        %v3270 = vand.u32 %v2327, 2147483648
        %v3271 = vor.u32 1.1754944e-38, %v3270
        %v3272 = vsel %vm3269, %v3271, %v3267
        %v3273 = vmul.f32 1.0, %v3272
        %v3274 = vrcp.pop %v2328
        %v3275 = vmul.f32 %v2328, %v3274
        %v3276 = vsub.f32 1.0, %v3275
        %v3277 = vmul.f32 %v3274, %v3276
        %v3278 = vadd.f32 %v3274, %v3277
        %vm3279 = vweird.f32 %v2328
        %vm3280 = vweird.f32 %v3274
        %vm3281 = vmor %vm3279, %vm3280
        %v3282 = vsel %vm3281, %v3274, %v3278
        %v3283 = vand.u32 2147483647, %v2328
        %vm3284 = vcmp.eq.f32.partialorder %v3283, 8.507059e+37
        %v3285 = vand.u32 %v2328, 2147483648
        %v3286 = vor.u32 1.1754944e-38, %v3285
        %v3287 = vsel %vm3284, %v3286, %v3282
        %v3288 = vmul.f32 1.0, %v3287
        %v3289 = vmul.f32 %v2009, %v2343
        %v3290 = vmul.f32 %v2010, %v2358
        %v3291 = vmul.f32 %v2011, %v2373
        %v3292 = vmul.f32 %v2012, %v2388
        %v3293 = vmul.f32 %v2013, %v2403
        %v3294 = vmul.f32 %v2014, %v2418
        %v3295 = vmul.f32 %v2015, %v2433
        %v3296 = vmul.f32 %v2016, %v2448
        %v3297 = vmul.f32 %v2017, %v2463
        %v3298 = vmul.f32 %v2018, %v2478
        %v3299 = vmul.f32 %v2019, %v2493
        %v3300 = vmul.f32 %v2020, %v2508
        %v3301 = vmul.f32 %v2021, %v2523
        %v3302 = vmul.f32 %v2022, %v2538
        %v3303 = vmul.f32 %v2023, %v2553
        %v3304 = vmul.f32 %v2024, %v2568
        %v3305 = vmul.f32 %v2025, %v2583
        %v3306 = vmul.f32 %v2026, %v2598
        %v3307 = vmul.f32 %v2027, %v2613
        %v3308 = vmul.f32 %v2028, %v2628
        %v3309 = vmul.f32 %v2029, %v2643
        %v3310 = vmul.f32 %v2030, %v2658
        %v3311 = vmul.f32 %v2031, %v2673
        %v3312 = vmul.f32 %v2032, %v2688
        %v3313 = vmul.f32 %v2033, %v2703
        %v3314 = vmul.f32 %v2034, %v2718
        %v3315 = vmul.f32 %v2035, %v2733
        %v3316 = vmul.f32 %v2036, %v2748
        %v3317 = vmul.f32 %v2037, %v2763
        %v3318 = vmul.f32 %v2038, %v2778
        %v3319 = vmul.f32 %v2039, %v2793
        %v3320 = vmul.f32 %v2040, %v2808
        %v3321 = vmul.f32 %v2041, %v2823
        %v3322 = vmul.f32 %v2042, %v2838
        %v3323 = vmul.f32 %v2043, %v2853
        %v3324 = vmul.f32 %v2044, %v2868
        %v3325 = vmul.f32 %v2045, %v2883
        %v3326 = vmul.f32 %v2046, %v2898
        %v3327 = vmul.f32 %v2047, %v2913
        %v3328 = vmul.f32 %v2048, %v2928
        %v3329 = vmul.f32 %v2049, %v2943
        %v3330 = vmul.f32 %v2050, %v2958
        %v3331 = vmul.f32 %v2051, %v2973
        %v3332 = vmul.f32 %v2052, %v2988
        %v3333 = vmul.f32 %v2053, %v3003
        %v3334 = vmul.f32 %v2054, %v3018
        %v3335 = vmul.f32 %v2055, %v3033
        %v3336 = vmul.f32 %v2056, %v3048
        %v3337 = vmul.f32 %v2057, %v3063
        %v3338 = vmul.f32 %v2058, %v3078
        %v3339 = vmul.f32 %v2059, %v3093
        %v3340 = vmul.f32 %v2060, %v3108
        %v3341 = vmul.f32 %v2061, %v3123
        %v3342 = vmul.f32 %v2062, %v3138
        %v3343 = vmul.f32 %v2063, %v3153
        %v3344 = vmul.f32 %v2064, %v3168
        %v3345 = vmul.f32 %v2065, %v3183
        %v3346 = vmul.f32 %v2066, %v3198
        %v3347 = vmul.f32 %v2067, %v3213
        %v3348 = vmul.f32 %v2068, %v3228
        %v3349 = vmul.f32 %v2069, %v3243
        %v3350 = vmul.f32 %v2070, %v3258
        %v3351 = vmul.f32 %v2071, %v3273
        %v3352 = vmul.f32 %v2072, %v3288
        %v3353 = vpack.c.bf16 %v3290, %v3289
        %v3354 = vpack.c.bf16 %v3292, %v3291
        %v3355 = vpack.c.bf16 %v3294, %v3293
        %v3356 = vpack.c.bf16 %v3296, %v3295
        %v3357 = vpack.c.bf16 %v3298, %v3297
        %v3358 = vpack.c.bf16 %v3300, %v3299
        %v3359 = vpack.c.bf16 %v3302, %v3301
        %v3360 = vpack.c.bf16 %v3304, %v3303
        %v3361 = vpack.c.bf16 %v3306, %v3305
        %v3362 = vpack.c.bf16 %v3308, %v3307
        %v3363 = vpack.c.bf16 %v3310, %v3309
        %v3364 = vpack.c.bf16 %v3312, %v3311
        %v3365 = vpack.c.bf16 %v3314, %v3313
        %v3366 = vpack.c.bf16 %v3316, %v3315
        %v3367 = vpack.c.bf16 %v3318, %v3317
        %v3368 = vpack.c.bf16 %v3320, %v3319
        %v3369 = vpack.c.bf16 %v3322, %v3321
        %v3370 = vpack.c.bf16 %v3324, %v3323
        %v3371 = vpack.c.bf16 %v3326, %v3325
        %v3372 = vpack.c.bf16 %v3328, %v3327
        %v3373 = vpack.c.bf16 %v3330, %v3329
        %v3374 = vpack.c.bf16 %v3332, %v3331
        %v3375 = vpack.c.bf16 %v3334, %v3333
        %v3376 = vpack.c.bf16 %v3336, %v3335
        %v3377 = vpack.c.bf16 %v3338, %v3337
        %v3378 = vpack.c.bf16 %v3340, %v3339
        %v3379 = vpack.c.bf16 %v3342, %v3341
        %v3380 = vpack.c.bf16 %v3344, %v3343
        %v3381 = vpack.c.bf16 %v3346, %v3345
        %v3382 = vpack.c.bf16 %v3348, %v3347
        %v3383 = vpack.c.bf16 %v3350, %v3349
        %v3384 = vpack.c.bf16 %v3352, %v3351
        %v3385 = vld [vmem:[%s4] sm:$0x3]
        %v3386 = vld [vmem:[%s5] sm:$0xf]
        %3388 = vset.pattern.permute.xlu0 0
        %3389 = vperm.xlu0 %3388, %v3386
        %v3390 = vpop.permute.xlu0 %3389
        %3392 = vmatpush.bf16.xpose.msra.mxu0 %v3360
        %3393 = vmatpush.bf16.xpose.msra.mxu0 %v3359
        %3394 = vmatpush.bf16.xpose.msra.mxu0 %v3358
        %3395 = vmatpush.bf16.xpose.msra.mxu0 %v3357
        %3396 = vmatpush.bf16.xpose.msra.mxu0 %v3356
        %3397 = vmatpush.bf16.xpose.msra.mxu0 %v3355
        %3398 = vmatpush.bf16.xpose.msra.mxu0 %v3354
        %3399 = vmatpush.bf16.xpose.msra.mxu0 %v3353
        %3400 = vmatmul.bf16.gmra.mxu0 %v3385
        %v3401 = vpop.f32.mrf.mxu0
        %v3402 = vadd.f32 %v3390, %v3401
        %v3403 = vpop.f32.mrf.mxu0
        %3404 = vdwg.mxu0
        %3405 = vmatpush.bf16.xpose.msra.mxu0 %v3368
        %3406 = vmatpush.bf16.xpose.msra.mxu0 %v3367
        %3407 = vmatpush.bf16.xpose.msra.mxu0 %v3366
        %3408 = vmatpush.bf16.xpose.msra.mxu0 %v3365
        %3409 = vmatpush.bf16.xpose.msra.mxu0 %v3364
        %3410 = vmatpush.bf16.xpose.msra.mxu0 %v3363
        %3411 = vmatpush.bf16.xpose.msra.mxu0 %v3362
        %3412 = vmatpush.bf16.xpose.msra.mxu0 %v3361
        %3413 = vmatmul.bf16.gmra.mxu0 %v3385
        %v3414 = vpop.f32.mrf.mxu0
        %v3415 = vadd.f32 %v3390, %v3414
        %v3416 = vpop.f32.mrf.mxu0
        %3417 = vdwg.mxu0
        %3418 = vmatpush.bf16.xpose.msra.mxu0 %v3376
        %3419 = vmatpush.bf16.xpose.msra.mxu0 %v3375
        %3420 = vmatpush.bf16.xpose.msra.mxu0 %v3374
        %3421 = vmatpush.bf16.xpose.msra.mxu0 %v3373
        %3422 = vmatpush.bf16.xpose.msra.mxu0 %v3372
        %3423 = vmatpush.bf16.xpose.msra.mxu0 %v3371
        %3424 = vmatpush.bf16.xpose.msra.mxu0 %v3370
        %3425 = vmatpush.bf16.xpose.msra.mxu0 %v3369
        %3426 = vmatmul.bf16.gmra.mxu0 %v3385
        %v3427 = vpop.f32.mrf.mxu0
        %v3428 = vadd.f32 %v3390, %v3427
        %v3429 = vpop.f32.mrf.mxu0
        %3430 = vdwg.mxu0
        %3431 = vmatpush.bf16.xpose.msra.mxu0 %v3384
        %3432 = vmatpush.bf16.xpose.msra.mxu0 %v3383
        %3433 = vmatpush.bf16.xpose.msra.mxu0 %v3382
        %3434 = vmatpush.bf16.xpose.msra.mxu0 %v3381
        %3435 = vmatpush.bf16.xpose.msra.mxu0 %v3380
        %3436 = vmatpush.bf16.xpose.msra.mxu0 %v3379
        %3437 = vmatpush.bf16.xpose.msra.mxu0 %v3378
        %3438 = vmatpush.bf16.xpose.msra.mxu0 %v3377
        %3439 = vmatmul.bf16.gmra.mxu0 %v3385
        %v3440 = vpop.f32.mrf.mxu0
        %v3441 = vadd.f32 %v3390, %v3440
        %v3442 = vpop.f32.mrf.mxu0
        %3443 = vdwg.mxu0
        %v3444 = vlaneseq
        %v3445 = vand.u32 %v3444, 127
        %v3446 = vadd.s32 %v3445, 128
        %v3447 = vadd.s32 %v3445, 256
        %v3448 = vadd.s32 %v3445, 384
        %v3449 = vadd.s32 %v3445, %v1216
        %v3450 = vadd.s32 %v3446, %v1216
        %v3451 = vadd.s32 %v3447, %v1216
        %v3452 = vadd.s32 %v3448, %v1216
        %vm3453 = vcmp.lt.s32.totalorder %v3449, 700
        %vm3454 = vcmp.lt.s32.totalorder %v3450, 700
        %vm3455 = vcmp.lt.s32.totalorder %v3451, 700
        %vm3456 = vcmp.lt.s32.totalorder %v3452, 700
        %v3457 = vsel %vm3453, %v3402, -1e+30
        %v3458 = vsel %vm3454, %v3415, -1e+30
        %v3459 = vsel %vm3455, %v3428, -1e+30
        %v3460 = vsel %vm3456, %v3441, -1e+30
        %v3461 = vld [vmem:[#allocation2] sm:$0xf]
        %vm3462 = vcmask 1043456
        %v3463 = vsel %vm3462, %v3457, -inf
        %v3464 = vsel %vm3462, %v3458, -inf
        %v3465 = vsel %vm3462, %v3459, -inf
        %v3466 = vsel %vm3462, %v3460, -inf
        %v3467 = vmax.f32 %v3463, %v3464
        %v3468 = vmax.f32 %v3465, %v3466
        %v3469 = vmax.f32 %v3467, %v3468
        %3470 = vmax.xlane.f32.xlu0 %v3469
        %v3471 = vpop.xlane.xlu0 %3470
        %v3472 = vmax.f32 %v3461, %v3471
        %v3473 = vsub.f32 %v3461, %v3472
        %v3474 = vmul.f32 %v3473, 1.442695
        %v3475 = vpow.pop %v3474
        %3477 = vset.pattern.permute.xlu0 0
        %3478 = vperm.xlu0 %3477, %v3472
        %v3479 = vpop.permute.xlu0 %3478
        %v3481 = vsub.f32 %v3457, %v3479
        %v3482 = vsub.f32 %v3458, %v3479
        %v3483 = vsub.f32 %v3459, %v3479
        %v3484 = vsub.f32 %v3460, %v3479
        %v3485 = vmul.f32 %v3481, 1.442695
        %v3486 = vpow.pop %v3485
        %v3487 = vmul.f32 %v3482, 1.442695
        %v3488 = vpow.pop %v3487
        %v3489 = vmul.f32 %v3483, 1.442695
        %v3490 = vpow.pop %v3489
        %v3491 = vmul.f32 %v3484, 1.442695
        %v3492 = vpow.pop %v3491
        %v3493 = vsel %vm3453, %v3486, 0.0
        %v3494 = vsel %vm3454, %v3488, 0.0
        %v3495 = vsel %vm3455, %v3490, 0.0
        %v3496 = vsel %vm3456, %v3492, 0.0
        %v3497 = vld [vmem:[#allocation3] sm:$0xf]
        %v3498 = vmul.f32 %v3475, %v3497
        %v3499 = vsel %vm3462, %v3493, 0.0
        %v3500 = vsel %vm3462, %v3494, 0.0
        %v3501 = vadd.f32 %v3499, %v3500
        %v3502 = vsel %vm3462, %v3495, 0.0
        %v3503 = vadd.f32 %v3501, %v3502
        %v3504 = vsel %vm3462, %v3496, 0.0
        %v3505 = vadd.f32 %v3503, %v3504
        %3506 = vadd.xlane.f32.xlu0 %v3505
        %v3507 = vpop.xlane.xlu0 %3506
        %v3508 = vadd.f32 %v3498, %v3507
        %vm3509 = vcmask 3072
        %3510 = vst.msk [vmem:[#allocation3] sm:$0xf] %vm3509, %v3508
        %v3511 = vld [vmem:[#allocation4] sm:$0xf]
        %3513 = vset.pattern.permute.xlu0 0
        %3514 = vperm.xlu0 %3513, %v3475
        %v3515 = vpop.permute.xlu0 %3514
        %v3517 = vmul.f32 %v3515, %v3511
        %v3518 = vpack.c.bf16 %v3493, %v3493
        %v3519 = vpack.c.bf16 %v3494, %v3494
        %v3520 = vpack.c.bf16 %v3495, %v3495
        %v3521 = vpack.c.bf16 %v3496, %v3496
        %3522 = vmatpush.bf16.msra.mxu0 %v1544
        %3523 = vmatpush.bf16.msra.mxu0 %v1543
        %3524 = vmatpush.bf16.msra.mxu0 %v1542
        %3525 = vmatpush.bf16.msra.mxu0 %v1541
        %3526 = vmatpush.bf16.msra.mxu0 %v1540
        %3527 = vmatpush.bf16.msra.mxu0 %v1539
        %3528 = vmatpush.bf16.msra.mxu0 %v1538
        %3529 = vmatpush.bf16.msra.mxu0 %v1537
        %3530 = vmatmul.bf16.gmra.mxu0 %v3518
        %v3531 = vpop.f32.mrf.mxu0
        %v3532 = vadd.f32 0.0, %v3531
        %v3533 = vpop.f32.mrf.mxu0
        %3534 = vdwg.mxu0
        %3535 = vmatpush.bf16.msra.mxu0 %v1552
        %3536 = vmatpush.bf16.msra.mxu0 %v1551
        %3537 = vmatpush.bf16.msra.mxu0 %v1550
        %3538 = vmatpush.bf16.msra.mxu0 %v1549
        %3539 = vmatpush.bf16.msra.mxu0 %v1548
        %3540 = vmatpush.bf16.msra.mxu0 %v1547
        %3541 = vmatpush.bf16.msra.mxu0 %v1546
        %3542 = vmatpush.bf16.msra.mxu0 %v1545
        %3543 = vmatmul.bf16.gmra.mxu0 %v3519
        %v3544 = vpop.f32.mrf.mxu0
        %v3545 = vadd.f32 %v3532, %v3544
        %v3546 = vpop.f32.mrf.mxu0
        %3547 = vdwg.mxu0
        %3548 = vmatpush.bf16.msra.mxu0 %v1560
        %3549 = vmatpush.bf16.msra.mxu0 %v1559
        %3550 = vmatpush.bf16.msra.mxu0 %v1558
        %3551 = vmatpush.bf16.msra.mxu0 %v1557
        %3552 = vmatpush.bf16.msra.mxu0 %v1556
        %3553 = vmatpush.bf16.msra.mxu0 %v1555
        %3554 = vmatpush.bf16.msra.mxu0 %v1554
        %3555 = vmatpush.bf16.msra.mxu0 %v1553
        %3556 = vmatmul.bf16.gmra.mxu0 %v3520
        %v3557 = vpop.f32.mrf.mxu0
        %v3558 = vadd.f32 %v3545, %v3557
        %v3559 = vpop.f32.mrf.mxu0
        %3560 = vdwg.mxu0
        %3561 = vmatpush.bf16.msra.mxu0 %v1568
        %3562 = vmatpush.bf16.msra.mxu0 %v1567
        %3563 = vmatpush.bf16.msra.mxu0 %v1566
        %3564 = vmatpush.bf16.msra.mxu0 %v1565
        %3565 = vmatpush.bf16.msra.mxu0 %v1564
        %3566 = vmatpush.bf16.msra.mxu0 %v1563
        %3567 = vmatpush.bf16.msra.mxu0 %v1562
        %3568 = vmatpush.bf16.msra.mxu0 %v1561
        %3569 = vmatmul.bf16.gmra.mxu0 %v3521
        %v3570 = vpop.f32.mrf.mxu0
        %v3571 = vadd.f32 %v3558, %v3570
        %v3572 = vpop.f32.mrf.mxu0
        %3573 = vdwg.mxu0
        %v3574 = vadd.f32 %v3517, %v3571
        %3575 = vst [vmem:[#allocation4] sm:$0xf] %v3574
        %3576 = vst.msk [vmem:[#allocation2] sm:$0xf] %vm3509, %v3472
        // Predicated region
        $region61: #{tpu_custom_call.1} parent=43 // pred_check
          %p3577 = pneg %p419
        $region62: #{tpu_custom_call.1} parent=43 // pred_check_branch
          %3579 = sbr.rel (%p3577) target = $region64
        $region63: #{tpu_custom_call.1} parent=43 // pred_region
          %v3580 = vld [vmem:[#allocation2] sm:$0xf]
          %3581 = vst.msk [vmem:[%s414] sm:$0xf] %vm3509, %v3580
          %v3582 = vld [vmem:[#allocation3] sm:$0xf]
          %3583 = vst.msk [vmem:[%s418] sm:$0xf] %vm3509, %v3582
          %v3584 = vld [vmem:[#allocation4] sm:$0xf]
          %3585 = vst [vmem:[%s401] sm:$0xf] %v3584
        $region64: #{tpu_custom_call.1} parent=43 // pred_fallthru
          _
        %p3586 = scmp.lt.s32.totalorder %s31, 1
        %s3587 = scalar_select %p3586, %s31, 1
        %s3588 = smul.addr %s3587, 4
        %s3589 = scalar_lea.vmem %s6, %s3588
        %p3590 = scmp.lt.s32.totalorder %s31, 1
        %s3591 = scalar_select %p3590, %s31, 1
        %s3592 = smul.addr %s3591, 4
        %s3593 = scalar_lea.vmem %s7, %s3592
        %s3594 = sand.u32 %s236, 1
        %s3595 = scalar_lea.sflag [#allocation7], %s3594
        %s3596 = sand.u32 %s236, 1
        %s3597 = smul.addr %s3596, 4
        %s3598 = scalar_lea.vmem [#allocation11], %s3597
        // Predicated region
        $region65: #{tpu_custom_call.1} parent=43 // pred_check
          %p3599 = pneg %p194
        $region66: #{tpu_custom_call.1} parent=43 // pred_check_branch
          %3601 = sbr.rel (%p3599) target = $region68
        $region67: #{tpu_custom_call.1} parent=43 // pred_region
          _
        $region68: #{tpu_custom_call.1} parent=43 // pred_fallthru
          _
        // Predicated region
        $region69: #{tpu_custom_call.1} parent=43 // pred_check
          %p3602 = pneg %p220
        $region70: #{tpu_custom_call.1} parent=43 // pred_check_branch
          %3604 = sbr.rel (%p3602) target = $region72
        $region71: #{tpu_custom_call.1} parent=43 // pred_region
          _
        $region72: #{tpu_custom_call.1} parent=43 // pred_fallthru
          _
        // Predicated region
        $region73: #{tpu_custom_call.1} parent=43 // pred_check
          %p3605 = pneg %p246
        $region74: #{tpu_custom_call.1} parent=43 // pred_check_branch
          %3607 = sbr.rel (%p3605) target = $region76
        $region75: #{tpu_custom_call.1} parent=43 // pred_region
          %3609 = vsyncadd %s3595, 0
          %s3610 = smul.addr %s31, 4
          %s3611 = scalar_lea.hbm %s8, %s3610
          %s3613 = sshll.u32 %s3598, 4
          %s3614 = int_to_ptr.vmem [resolvable:$true] %s3613
          %s3615 = sshll.u32 %s3611, 4
          %s3616 = int_to_ptr.hbm [resolvable:$true] %s3615
          %3618 = dma.vmem_to_hbm [thread:$0]  %s3614, 64, %s3616, %s3595
        $region76: #{tpu_custom_call.1} parent=43 // pred_fallthru
          _
      $region44: #{tpu_custom_call.1} parent=5 // pred_fallthru
        _
      %p3619 = scmp.le.s32.totalorder 2, %s22
      // Predicated region
      $region77: #{tpu_custom_call.1} parent=5 // pred_check
        %p3620 = pneg %p3619
      $region78: #{tpu_custom_call.1} parent=5 // pred_check_branch
        %3622 = sbr.rel (%p3620) target = $region80
      $region79: #{tpu_custom_call.1} parent=5 // pred_region
        %s3623 = ssub.s32 %s22, 2
        // Predicated region
        $region81: #{tpu_custom_call.1} parent=79 // pred_check
          %p3624 = pneg %p200
        $region82: #{tpu_custom_call.1} parent=79 // pred_check_branch
          %3626 = sbr.rel (%p3624) target = $region84
        $region83: #{tpu_custom_call.1} parent=79 // pred_region
          %p3627 = scmp.lt.s32.totalorder %s33, 1
          %s3628 = scalar_select %p3627, %s33, 1
          %s3629 = smul.addr %s3628, 4
          %s3630 = scalar_lea.vmem %s6, %s3629
        $region84: #{tpu_custom_call.1} parent=79 // pred_fallthru
          _
        // Predicated region
        $region85: #{tpu_custom_call.1} parent=79 // pred_check
          %p3631 = pneg %p226
        $region86: #{tpu_custom_call.1} parent=79 // pred_check_branch
          %3633 = sbr.rel (%p3631) target = $region88
        $region87: #{tpu_custom_call.1} parent=79 // pred_region
          %p3634 = scmp.lt.s32.totalorder %s33, 1
          %s3635 = scalar_select %p3634, %s33, 1
          %s3636 = smul.addr %s3635, 4
          %s3637 = scalar_lea.vmem %s7, %s3636
        $region88: #{tpu_custom_call.1} parent=79 // pred_fallthru
          _
        // Predicated region
        $region89: #{tpu_custom_call.1} parent=79 // pred_check
          %p3638 = pneg %p252
        $region90: #{tpu_custom_call.1} parent=79 // pred_check_branch
          %3640 = sbr.rel (%p3638) target = $region92
        $region91: #{tpu_custom_call.1} parent=79 // pred_region
          %s3641 = sand.u32 %s237, 1
          %s3642 = scalar_lea.sflag [#allocation7], %s3641
          %s3643 = sand.u32 %s237, 1
          %s3644 = smul.addr %s3643, 4
          %s3645 = scalar_lea.vmem [#allocation11], %s3644
          %3647 = dma.done %s3642, 64
        $region92: #{tpu_custom_call.1} parent=79 // pred_fallthru
          _
      $region80: #{tpu_custom_call.1} parent=5 // pred_fallthru
        _
    $region6: #{tpu_custom_call.1} parent=1 // loop_footer
      %s26 = sadd.s32 1, %s22
    $region7: #{tpu_custom_call.1} parent=1 // loop_footer_branch
      %21 = sbr.rel target = $region3
    $region8: #{tpu_custom_call.1} parent=1 // loop_exit
      _
    %3648 = vsyncpa [#allocation6], 1
    %s3649 = scalar_lea.sflag [#allocation6], 1
    %3650 = vsyncpa %s3649, 1
    %3651 = vsyncpa [#allocation9], 1
    %3652 = vsyncpa [#allocation7], 1
    %s3653 = scalar_lea.sflag [#allocation7], 1
    %3654 = vsyncpa %s3653, 1

</llo_original>
